<compile_context>
chip_gen: v7x
topology: tpu7x:2x2x1
jax: 0.10.0
libtpu: 0.0.40
codegen_flags: <defaults>
</compile_context>

<pallas_src>
import functools

import jax
import jax.numpy as jnp
from jax import lax
from jax.experimental import pallas as pl
from jax.experimental.pallas import tpu as pltpu


def _layer_norm(x, g, b, eps=1e-5):
    # f32 elementwise math (VPU/EUP); matches nn.LayerNorm(eps=1e-5).
    mu = jnp.mean(x, axis=-1, keepdims=True)
    var = jnp.mean((x - mu) ** 2, axis=-1, keepdims=True)
    return (x - mu) * lax.rsqrt(var + eps) * g + b


def encoder_kernel(x_ref, wqkv_ref, bqkv_ref, wo_ref, bo_ref,
                   ln1g_ref, ln1b_ref, w1_ref, b1_ref, w2_ref, b2_ref,
                   ln2g_ref, ln2b_ref, o_ref, *, num_heads):
    B, S, E = x_ref.shape
    num_layers = wqkv_ref.shape[0]
    N = B * S
    dh = E // num_heads
    scale = 1.0 / (dh ** 0.5)
    bf16 = jnp.bfloat16

    # Whole batch as one lane/sublane-dense slab, resident for all layers.
    x = x_ref[...].reshape(N, E)                              # (N, E) f32

    for l in range(num_layers):                               # static unroll
        # -------- per-layer weights (pre-transposed, bf16) --------
        wqkv = wqkv_ref[l]                                    # (E, 3E)
        wo = wo_ref[l]                                        # (E, E)
        w1 = w1_ref[l]                                        # (E, H)
        w2 = w2_ref[l]                                        # (H, E)

        # -------- self-attention --------
        # Packed QKV projection on the full slab (one MXU matmul).
        qkv = jnp.dot(x.astype(bf16), wqkv,
                      preferred_element_type=jnp.float32) + bqkv_ref[l]   # (N, 3E)
        q = qkv[:, :E].reshape(B, S, E)
        k = qkv[:, E:2 * E].reshape(B, S, E)
        v = qkv[:, 2 * E:].reshape(B, S, E)

        # Out-projection accumulated per head (no concatenate); bias added once.
        attn = jnp.zeros((N, E), jnp.float32) + bo_ref[l]
        for h in range(num_heads):                            # nh=4 static loop
            sl = slice(h * dh, (h + 1) * dh)
            qh = q[:, :, sl].astype(bf16)                     # (B, S, dh)
            kh = k[:, :, sl].astype(bf16)
            vh = v[:, :, sl].astype(bf16)

            s = jnp.einsum("bqd,bkd->bqk", qh, kh,
                           preferred_element_type=jnp.float32) * scale
            s = s - jnp.max(s, axis=-1, keepdims=True)        # f32 softmax
            p = jnp.exp(s)
            p = p * pl.reciprocal(jnp.sum(p, axis=-1, keepdims=True), approx=True)

            oh = jnp.einsum("bqk,bkd->bqd", p.astype(bf16), vh,
                            preferred_element_type=jnp.float32)           # (B,S,dh)
            # Head contribution to the out-projection: (N, dh) @ (dh, E).
            attn = attn + jnp.dot(oh.reshape(N, dh).astype(bf16), wo[sl, :],
                                  preferred_element_type=jnp.float32)

        # dropout = identity (eval mode); residual + post-LayerNorm 1.
        y = _layer_norm(x + attn, ln1g_ref[l], ln1b_ref[l])

        # -------- feed-forward: Linear(E->H) -> ReLU -> Linear(H->E) --------
        h1 = jnp.dot(y.astype(bf16), w1,
                     preferred_element_type=jnp.float32) + b1_ref[l]
        h1 = jnp.maximum(h1, 0.0)
        h2 = jnp.dot(h1.astype(bf16), w2,
                     preferred_element_type=jnp.float32) + b2_ref[l]

        # residual + post-LayerNorm 2 -> input of next layer (stays in VMEM/vregs).
        x = _layer_norm(y + h2, ln2g_ref[l], ln2b_ref[l])

    o_ref[...] = x.reshape(B, S, E)


def transformer_encoder_pallas(x, sp, num_heads):
    """x: (B, S, E) f32.  sp: stacked, pre-transposed params (see prepare_params)."""
    B, S, E = x.shape
    kernel = functools.partial(encoder_kernel, num_heads=num_heads)
    vmem = pl.BlockSpec(memory_space=pltpu.MemorySpace.VMEM)   # whole array in VMEM
    args = (x, sp["wqkv"], sp["bqkv"], sp["wo"], sp["bo"], sp["ln1g"], sp["ln1b"],
            sp["w1"], sp["b1"], sp["w2"], sp["b2"], sp["ln2g"], sp["ln2b"])
    return pl.pallas_call(
        kernel,
        out_shape=jax.ShapeDtypeStruct((B, S, E), jnp.float32),
        in_specs=[vmem] * len(args),
        out_specs=vmem,
    )(*args)


def prepare_params(params):
    """Stack per-layer PyTorch-layout params, pre-transpose weights, cast to bf16."""
    def stack(fn, dtype=jnp.float32):
        return jnp.stack([fn(p) for p in params]).astype(dtype)
    return {
        "wqkv": stack(lambda p: p["wqkv"].T, jnp.bfloat16),   # (L, E, 3E)
        "bqkv": stack(lambda p: p["bqkv"]),                   # (L, 1, 3E)
        "wo":   stack(lambda p: p["wo"].T, jnp.bfloat16),     # (L, E, E)
        "bo":   stack(lambda p: p["bo"]),                     # (L, 1, E)
        "ln1g": stack(lambda p: p["ln1g"]),
        "ln1b": stack(lambda p: p["ln1b"]),
        "w1":   stack(lambda p: p["w1"].T, jnp.bfloat16),     # (L, E, H)
        "b1":   stack(lambda p: p["b1"]),                     # (L, 1, H)
        "w2":   stack(lambda p: p["w2"].T, jnp.bfloat16),     # (L, H, E)
        "b2":   stack(lambda p: p["b2"]),                     # (L, 1, E)
        "ln2g": stack(lambda p: p["ln2g"]),
        "ln2b": stack(lambda p: p["ln2b"]),
    }


# ---------------- pure-JAX f32 reference (same math, for a sanity check) -------------
def _ref_layer(x, p, num_heads):
    B, S, E = x.shape
    dh = E // num_heads
    hp = lax.Precision.HIGHEST
    qkv = jnp.einsum("bse,fe->bsf", x, p["wqkv"], precision=hp) + p["bqkv"][0]
    q, k, v = qkv[..., :E], qkv[..., E:2 * E], qkv[..., 2 * E:]
    q = q.reshape(B, S, num_heads, dh).transpose(0, 2, 1, 3)
    k = k.reshape(B, S, num_heads, dh).transpose(0, 2, 1, 3)
    v = v.reshape(B, S, num_heads, dh).transpose(0, 2, 1, 3)
    s = jnp.einsum("bhqd,bhkd->bhqk", q, k, precision=hp) / (dh ** 0.5)
    a = jax.nn.softmax(s, axis=-1)
    o = jnp.einsum("bhqk,bhkd->bhqd", a, v, precision=hp)
    o = o.transpose(0, 2, 1, 3).reshape(B, S, E)
    o = jnp.einsum("bse,fe->bsf", o, p["wo"], precision=hp) + p["bo"][0]

    def ln(z, g, b):
        mu = jnp.mean(z, -1, keepdims=True)
        var = jnp.mean((z - mu) ** 2, -1, keepdims=True)
        return (z - mu) * lax.rsqrt(var + 1e-5) * g[0] + b[0]

    y = ln(x + o, p["ln1g"], p["ln1b"])
    h1 = jnp.maximum(jnp.einsum("bse,fe->bsf", y, p["w1"], precision=hp) + p["b1"][0], 0.0)
    h2 = jnp.einsum("bsf,ef->bse", h1, p["w2"], precision=hp) + p["b2"][0]
    return ln(y + h2, p["ln2g"], p["ln2b"])


def _ref_encoder(x, params, num_heads):
    for p in params:
        x = _ref_layer(x, p, num_heads)
    return x


def init_params(key, E, H_ff, num_layers):
    """Per-layer params in PyTorch nn.TransformerEncoderLayer layout."""
    params = []
    for layer in range(num_layers):
        ks = jax.random.split(jax.random.fold_in(key, layer), 8)
        params.append({
            "wqkv": jax.random.normal(ks[0], (3 * E, E), jnp.float32) * 0.05,
            "bqkv": jax.random.normal(ks[1], (1, 3 * E), jnp.float32) * 0.01,
            "wo":   jax.random.normal(ks[2], (E, E), jnp.float32) * 0.05,
            "bo":   jax.random.normal(ks[3], (1, E), jnp.float32) * 0.01,
            "ln1g": jnp.ones((1, E), jnp.float32),
            "ln1b": jnp.zeros((1, E), jnp.float32),
            "w1":   jax.random.normal(ks[4], (H_ff, E), jnp.float32) * 0.05,
            "b1":   jax.random.normal(ks[5], (1, H_ff), jnp.float32) * 0.01,
            "w2":   jax.random.normal(ks[6], (E, H_ff), jnp.float32) * 0.05,
            "b2":   jax.random.normal(ks[7], (1, E), jnp.float32) * 0.01,
            "ln2g": jnp.ones((1, E), jnp.float32),
            "ln2b": jnp.zeros((1, E), jnp.float32),
        })
    return params


if __name__ == "__main__":
    # TransformerEncoderBlock(input_dim=32, num_heads=4, hidden_dim=64, num_layers=2)
    B, S, E = 2, 8, 32
    num_heads, hidden_dim, num_layers = 4, 64, 2

    key = jax.random.PRNGKey(0)
    kx, kp = jax.random.split(key)
    x = jax.random.normal(kx, (B, S, E), jnp.float32)
    params = init_params(kp, E, hidden_dim, num_layers)
    stacked = prepare_params(params)

    out = jax.block_until_ready(transformer_encoder_pallas(x, stacked, num_heads))

    ref = _ref_encoder(x, params, num_heads)
    assert out.shape == (B, S, E)
    # Tolerance accommodates bf16 MXU operands + approx reciprocal vs the f32
    # HIGHEST-precision reference (post-LN values are O(1), so this still catches
    # any real math/layout bug).
    assert jnp.allclose(out, ref, atol=5e-2, rtol=5e-2), "mismatch vs pure-JAX reference"

    print("KERNEL_OK")
</pallas_src>

<mosaic_0001>
module attributes {stable_mosaic.version = 11 : i64} {
  func.func @encoder_kernel(%arg0: memref<2x8x32xf32, #tpu.memory_space<vmem>>, %arg1: memref<2x32x96xbf16, #tpu.memory_space<vmem>>, %arg2: memref<2x1x96xf32, #tpu.memory_space<vmem>>, %arg3: memref<2x32x32xbf16, #tpu.memory_space<vmem>>, %arg4: memref<2x1x32xf32, #tpu.memory_space<vmem>>, %arg5: memref<2x1x32xf32, #tpu.memory_space<vmem>>, %arg6: memref<2x1x32xf32, #tpu.memory_space<vmem>>, %arg7: memref<2x32x64xbf16, #tpu.memory_space<vmem>>, %arg8: memref<2x1x64xf32, #tpu.memory_space<vmem>>, %arg9: memref<2x64x32xbf16, #tpu.memory_space<vmem>>, %arg10: memref<2x1x32xf32, #tpu.memory_space<vmem>>, %arg11: memref<2x1x32xf32, #tpu.memory_space<vmem>>, %arg12: memref<2x1x32xf32, #tpu.memory_space<vmem>>, %arg13: memref<2x8x32xf32, #tpu.memory_space<vmem>>) attributes {dimension_semantics = [], scalar_prefetch = 0 : i64, scratch_operands = 0 : i64, tpu.core_type = #tpu.core_type<tc>} {
    %c0 = arith.constant 0 : index
    %c0_0 = arith.constant 0 : index
    %c0_1 = arith.constant 0 : index
    %0 = vector.load %arg0[%c0, %c0_0, %c0_1] : memref<2x8x32xf32, #tpu.memory_space<vmem>>, vector<2x8x32xf32>
    %1 = vector.shape_cast %0 : vector<2x8x32xf32> to vector<16x32xf32>
    %c0_2 = arith.constant 0 : index
    %c0_3 = arith.constant 0 : index
    %c0_4 = arith.constant 0 : index
    %2 = vector.load %arg1[%c0_2, %c0_3, %c0_4] : memref<2x32x96xbf16, #tpu.memory_space<vmem>>, vector<1x32x96xbf16>
    %3 = vector.shape_cast %2 : vector<1x32x96xbf16> to vector<32x96xbf16>
    %c0_5 = arith.constant 0 : index
    %c0_6 = arith.constant 0 : index
    %c0_7 = arith.constant 0 : index
    %4 = vector.load %arg3[%c0_5, %c0_6, %c0_7] : memref<2x32x32xbf16, #tpu.memory_space<vmem>>, vector<1x32x32xbf16>
    %5 = vector.shape_cast %4 : vector<1x32x32xbf16> to vector<32x32xbf16>
    %c0_8 = arith.constant 0 : index
    %c0_9 = arith.constant 0 : index
    %c0_10 = arith.constant 0 : index
    %6 = vector.load %arg7[%c0_8, %c0_9, %c0_10] : memref<2x32x64xbf16, #tpu.memory_space<vmem>>, vector<1x32x64xbf16>
    %7 = vector.shape_cast %6 : vector<1x32x64xbf16> to vector<32x64xbf16>
    %c0_11 = arith.constant 0 : index
    %c0_12 = arith.constant 0 : index
    %c0_13 = arith.constant 0 : index
    %8 = vector.load %arg9[%c0_11, %c0_12, %c0_13] : memref<2x64x32xbf16, #tpu.memory_space<vmem>>, vector<1x64x32xbf16>
    %9 = vector.shape_cast %8 : vector<1x64x32xbf16> to vector<64x32xbf16>
    %10 = arith.truncf %1 : vector<16x32xf32> to vector<16x32xbf16>
    %cst = arith.constant dense<0.000000e+00> : vector<16x96xf32>
    %11 = tpu.matmul %10, %3, %cst {dimension_numbers = #tpu.dot_dimension_numbers<[1], [0], [0], [1], [0, 0, 1, 1], [], []>} : vector<16x32xbf16>, vector<32x96xbf16>, vector<16x96xf32> -> vector<16x96xf32>
    %c0_14 = arith.constant 0 : index
    %c0_15 = arith.constant 0 : index
    %c0_16 = arith.constant 0 : index
    %12 = vector.load %arg2[%c0_14, %c0_15, %c0_16] : memref<2x1x96xf32, #tpu.memory_space<vmem>>, vector<1x1x96xf32>
    %13 = vector.shape_cast %12 : vector<1x1x96xf32> to vector<1x96xf32>
    %14 = vector.broadcast %13 : vector<1x96xf32> to vector<16x96xf32>
    %15 = arith.addf %11, %14 : vector<16x96xf32>
    %16 = vector.extract_strided_slice %15 {offsets = [0, 0], sizes = [16, 32], strides = [1, 1]} : vector<16x96xf32> to vector<16x32xf32>
    %17 = vector.shape_cast %16 : vector<16x32xf32> to vector<2x8x32xf32>
    %18 = vector.extract_strided_slice %15 {offsets = [0, 32], sizes = [16, 32], strides = [1, 1]} : vector<16x96xf32> to vector<16x32xf32>
    %19 = vector.shape_cast %18 : vector<16x32xf32> to vector<2x8x32xf32>
    %20 = vector.extract_strided_slice %15 {offsets = [0, 64], sizes = [16, 32], strides = [1, 1]} : vector<16x96xf32> to vector<16x32xf32>
    %21 = vector.shape_cast %20 : vector<16x32xf32> to vector<2x8x32xf32>
    %cst_17 = arith.constant 0.000000e+00 : f32
    %22 = vector.broadcast %cst_17 : f32 to vector<16x32xf32>
    %c0_18 = arith.constant 0 : index
    %c0_19 = arith.constant 0 : index
    %c0_20 = arith.constant 0 : index
    %23 = vector.load %arg4[%c0_18, %c0_19, %c0_20] : memref<2x1x32xf32, #tpu.memory_space<vmem>>, vector<1x1x32xf32>
    %24 = vector.shape_cast %23 : vector<1x1x32xf32> to vector<1x32xf32>
    %25 = vector.broadcast %24 : vector<1x32xf32> to vector<16x32xf32>
    %26 = arith.addf %22, %25 : vector<16x32xf32>
    %27 = vector.extract_strided_slice %17 {offsets = [0, 0, 0], sizes = [2, 8, 8], strides = [1, 1, 1]} : vector<2x8x32xf32> to vector<2x8x8xf32>
    %28 = arith.truncf %27 : vector<2x8x8xf32> to vector<2x8x8xbf16>
    %29 = vector.extract_strided_slice %19 {offsets = [0, 0, 0], sizes = [2, 8, 8], strides = [1, 1, 1]} : vector<2x8x32xf32> to vector<2x8x8xf32>
    %30 = arith.truncf %29 : vector<2x8x8xf32> to vector<2x8x8xbf16>
    %31 = vector.extract_strided_slice %21 {offsets = [0, 0, 0], sizes = [2, 8, 8], strides = [1, 1, 1]} : vector<2x8x32xf32> to vector<2x8x8xf32>
    %32 = arith.truncf %31 : vector<2x8x8xf32> to vector<2x8x8xbf16>
    "tpu.trace_start"() <{level = 10 : i32, message = "bqd,bkd->bqk"}> : () -> ()
    %cst_21 = arith.constant dense<0.000000e+00> : vector<2x8x8xf32>
    %33 = tpu.matmul %28, %30, %cst_21 {dimension_numbers = #tpu.dot_dimension_numbers<[2], [2], [1], [1], [0, 0, 0, 1, 1, 1], [0], [0]>} : vector<2x8x8xbf16>, vector<2x8x8xbf16>, vector<2x8x8xf32> -> vector<2x8x8xf32>
    "tpu.trace_stop"() : () -> ()
    %cst_22 = arith.constant 0.353553385 : f32
    %34 = vector.broadcast %cst_22 : f32 to vector<2x8x8xf32>
    %35 = arith.mulf %33, %34 : vector<2x8x8xf32>
    %cst_23 = arith.constant dense<0xFF800000> : vector<2x8xf32>
    %36 = vector.multi_reduction <maximumf>, %35, %cst_23 [2] : vector<2x8x8xf32> to vector<2x8xf32>
    %37 = vector.shape_cast %36 : vector<2x8xf32> to vector<2x8x1xf32>
    %38 = vector.broadcast %37 : vector<2x8x1xf32> to vector<2x8x8xf32>
    %39 = arith.subf %35, %38 : vector<2x8x8xf32>
    %40 = math.exp %39 : vector<2x8x8xf32>
    %cst_24 = arith.constant dense<0.000000e+00> : vector<2x8xf32>
    %41 = vector.multi_reduction <add>, %40, %cst_24 [2] : vector<2x8x8xf32> to vector<2x8xf32>
    %42 = vector.shape_cast %41 : vector<2x8xf32> to vector<2x8x1xf32>
    %43 = tpu.reciprocal %42 {approx = true} : vector<2x8x1xf32> -> vector<2x8x1xf32>
    %44 = vector.broadcast %43 : vector<2x8x1xf32> to vector<2x8x8xf32>
    %45 = arith.mulf %40, %44 : vector<2x8x8xf32>
    %46 = arith.truncf %45 : vector<2x8x8xf32> to vector<2x8x8xbf16>
    "tpu.trace_start"() <{level = 10 : i32, message = "bqk,bkd->bqd"}> : () -> ()
    %cst_25 = arith.constant dense<0.000000e+00> : vector<2x8x8xf32>
    %47 = tpu.matmul %46, %32, %cst_25 {dimension_numbers = #tpu.dot_dimension_numbers<[2], [1], [1], [2], [0, 0, 0, 1, 1, 2], [0], [0]>} : vector<2x8x8xbf16>, vector<2x8x8xbf16>, vector<2x8x8xf32> -> vector<2x8x8xf32>
    "tpu.trace_stop"() : () -> ()
    %48 = vector.shape_cast %47 : vector<2x8x8xf32> to vector<16x8xf32>
    %49 = arith.truncf %48 : vector<16x8xf32> to vector<16x8xbf16>
    %50 = vector.extract_strided_slice %5 {offsets = [0, 0], sizes = [8, 32], strides = [1, 1]} : vector<32x32xbf16> to vector<8x32xbf16>
    %cst_26 = arith.constant dense<0.000000e+00> : vector<16x32xf32>
    %51 = tpu.matmul %49, %50, %cst_26 {dimension_numbers = #tpu.dot_dimension_numbers<[1], [0], [0], [1], [0, 0, 1, 1], [], []>} : vector<16x8xbf16>, vector<8x32xbf16>, vector<16x32xf32> -> vector<16x32xf32>
    %52 = arith.addf %26, %51 : vector<16x32xf32>
    %53 = vector.extract_strided_slice %17 {offsets = [0, 0, 8], sizes = [2, 8, 8], strides = [1, 1, 1]} : vector<2x8x32xf32> to vector<2x8x8xf32>
    %54 = arith.truncf %53 : vector<2x8x8xf32> to vector<2x8x8xbf16>
    %55 = vector.extract_strided_slice %19 {offsets = [0, 0, 8], sizes = [2, 8, 8], strides = [1, 1, 1]} : vector<2x8x32xf32> to vector<2x8x8xf32>
    %56 = arith.truncf %55 : vector<2x8x8xf32> to vector<2x8x8xbf16>
    %57 = vector.extract_strided_slice %21 {offsets = [0, 0, 8], sizes = [2, 8, 8], strides = [1, 1, 1]} : vector<2x8x32xf32> to vector<2x8x8xf32>
    %58 = arith.truncf %57 : vector<2x8x8xf32> to vector<2x8x8xbf16>
    "tpu.trace_start"() <{level = 10 : i32, message = "bqd,bkd->bqk"}> : () -> ()
    %cst_27 = arith.constant dense<0.000000e+00> : vector<2x8x8xf32>
    %59 = tpu.matmul %54, %56, %cst_27 {dimension_numbers = #tpu.dot_dimension_numbers<[2], [2], [1], [1], [0, 0, 0, 1, 1, 1], [0], [0]>} : vector<2x8x8xbf16>, vector<2x8x8xbf16>, vector<2x8x8xf32> -> vector<2x8x8xf32>
    "tpu.trace_stop"() : () -> ()
    %cst_28 = arith.constant 0.353553385 : f32
    %60 = vector.broadcast %cst_28 : f32 to vector<2x8x8xf32>
    %61 = arith.mulf %59, %60 : vector<2x8x8xf32>
    %cst_29 = arith.constant dense<0xFF800000> : vector<2x8xf32>
    %62 = vector.multi_reduction <maximumf>, %61, %cst_29 [2] : vector<2x8x8xf32> to vector<2x8xf32>
    %63 = vector.shape_cast %62 : vector<2x8xf32> to vector<2x8x1xf32>
    %64 = vector.broadcast %63 : vector<2x8x1xf32> to vector<2x8x8xf32>
    %65 = arith.subf %61, %64 : vector<2x8x8xf32>
    %66 = math.exp %65 : vector<2x8x8xf32>
    %cst_30 = arith.constant dense<0.000000e+00> : vector<2x8xf32>
    %67 = vector.multi_reduction <add>, %66, %cst_30 [2] : vector<2x8x8xf32> to vector<2x8xf32>
    %68 = vector.shape_cast %67 : vector<2x8xf32> to vector<2x8x1xf32>
    %69 = tpu.reciprocal %68 {approx = true} : vector<2x8x1xf32> -> vector<2x8x1xf32>
    %70 = vector.broadcast %69 : vector<2x8x1xf32> to vector<2x8x8xf32>
    %71 = arith.mulf %66, %70 : vector<2x8x8xf32>
    %72 = arith.truncf %71 : vector<2x8x8xf32> to vector<2x8x8xbf16>
    "tpu.trace_start"() <{level = 10 : i32, message = "bqk,bkd->bqd"}> : () -> ()
    %cst_31 = arith.constant dense<0.000000e+00> : vector<2x8x8xf32>
    %73 = tpu.matmul %72, %58, %cst_31 {dimension_numbers = #tpu.dot_dimension_numbers<[2], [1], [1], [2], [0, 0, 0, 1, 1, 2], [0], [0]>} : vector<2x8x8xbf16>, vector<2x8x8xbf16>, vector<2x8x8xf32> -> vector<2x8x8xf32>
    "tpu.trace_stop"() : () -> ()
    %74 = vector.shape_cast %73 : vector<2x8x8xf32> to vector<16x8xf32>
    %75 = arith.truncf %74 : vector<16x8xf32> to vector<16x8xbf16>
    %76 = vector.extract_strided_slice %5 {offsets = [8, 0], sizes = [8, 32], strides = [1, 1]} : vector<32x32xbf16> to vector<8x32xbf16>
    %cst_32 = arith.constant dense<0.000000e+00> : vector<16x32xf32>
    %77 = tpu.matmul %75, %76, %cst_32 {dimension_numbers = #tpu.dot_dimension_numbers<[1], [0], [0], [1], [0, 0, 1, 1], [], []>} : vector<16x8xbf16>, vector<8x32xbf16>, vector<16x32xf32> -> vector<16x32xf32>
    %78 = arith.addf %52, %77 : vector<16x32xf32>
    %79 = vector.extract_strided_slice %17 {offsets = [0, 0, 16], sizes = [2, 8, 8], strides = [1, 1, 1]} : vector<2x8x32xf32> to vector<2x8x8xf32>
    %80 = arith.truncf %79 : vector<2x8x8xf32> to vector<2x8x8xbf16>
    %81 = vector.extract_strided_slice %19 {offsets = [0, 0, 16], sizes = [2, 8, 8], strides = [1, 1, 1]} : vector<2x8x32xf32> to vector<2x8x8xf32>
    %82 = arith.truncf %81 : vector<2x8x8xf32> to vector<2x8x8xbf16>
    %83 = vector.extract_strided_slice %21 {offsets = [0, 0, 16], sizes = [2, 8, 8], strides = [1, 1, 1]} : vector<2x8x32xf32> to vector<2x8x8xf32>
    %84 = arith.truncf %83 : vector<2x8x8xf32> to vector<2x8x8xbf16>
    "tpu.trace_start"() <{level = 10 : i32, message = "bqd,bkd->bqk"}> : () -> ()
    %cst_33 = arith.constant dense<0.000000e+00> : vector<2x8x8xf32>
    %85 = tpu.matmul %80, %82, %cst_33 {dimension_numbers = #tpu.dot_dimension_numbers<[2], [2], [1], [1], [0, 0, 0, 1, 1, 1], [0], [0]>} : vector<2x8x8xbf16>, vector<2x8x8xbf16>, vector<2x8x8xf32> -> vector<2x8x8xf32>
    "tpu.trace_stop"() : () -> ()
    %cst_34 = arith.constant 0.353553385 : f32
    %86 = vector.broadcast %cst_34 : f32 to vector<2x8x8xf32>
    %87 = arith.mulf %85, %86 : vector<2x8x8xf32>
    %cst_35 = arith.constant dense<0xFF800000> : vector<2x8xf32>
    %88 = vector.multi_reduction <maximumf>, %87, %cst_35 [2] : vector<2x8x8xf32> to vector<2x8xf32>
    %89 = vector.shape_cast %88 : vector<2x8xf32> to vector<2x8x1xf32>
    %90 = vector.broadcast %89 : vector<2x8x1xf32> to vector<2x8x8xf32>
    %91 = arith.subf %87, %90 : vector<2x8x8xf32>
    %92 = math.exp %91 : vector<2x8x8xf32>
    %cst_36 = arith.constant dense<0.000000e+00> : vector<2x8xf32>
    %93 = vector.multi_reduction <add>, %92, %cst_36 [2] : vector<2x8x8xf32> to vector<2x8xf32>
    %94 = vector.shape_cast %93 : vector<2x8xf32> to vector<2x8x1xf32>
    %95 = tpu.reciprocal %94 {approx = true} : vector<2x8x1xf32> -> vector<2x8x1xf32>
    %96 = vector.broadcast %95 : vector<2x8x1xf32> to vector<2x8x8xf32>
    %97 = arith.mulf %92, %96 : vector<2x8x8xf32>
    %98 = arith.truncf %97 : vector<2x8x8xf32> to vector<2x8x8xbf16>
    "tpu.trace_start"() <{level = 10 : i32, message = "bqk,bkd->bqd"}> : () -> ()
    %cst_37 = arith.constant dense<0.000000e+00> : vector<2x8x8xf32>
    %99 = tpu.matmul %98, %84, %cst_37 {dimension_numbers = #tpu.dot_dimension_numbers<[2], [1], [1], [2], [0, 0, 0, 1, 1, 2], [0], [0]>} : vector<2x8x8xbf16>, vector<2x8x8xbf16>, vector<2x8x8xf32> -> vector<2x8x8xf32>
    "tpu.trace_stop"() : () -> ()
    %100 = vector.shape_cast %99 : vector<2x8x8xf32> to vector<16x8xf32>
    %101 = arith.truncf %100 : vector<16x8xf32> to vector<16x8xbf16>
    %102 = vector.extract_strided_slice %5 {offsets = [16, 0], sizes = [8, 32], strides = [1, 1]} : vector<32x32xbf16> to vector<8x32xbf16>
    %cst_38 = arith.constant dense<0.000000e+00> : vector<16x32xf32>
    %103 = tpu.matmul %101, %102, %cst_38 {dimension_numbers = #tpu.dot_dimension_numbers<[1], [0], [0], [1], [0, 0, 1, 1], [], []>} : vector<16x8xbf16>, vector<8x32xbf16>, vector<16x32xf32> -> vector<16x32xf32>
    %104 = arith.addf %78, %103 : vector<16x32xf32>
    %105 = vector.extract_strided_slice %17 {offsets = [0, 0, 24], sizes = [2, 8, 8], strides = [1, 1, 1]} : vector<2x8x32xf32> to vector<2x8x8xf32>
    %106 = arith.truncf %105 : vector<2x8x8xf32> to vector<2x8x8xbf16>
    %107 = vector.extract_strided_slice %19 {offsets = [0, 0, 24], sizes = [2, 8, 8], strides = [1, 1, 1]} : vector<2x8x32xf32> to vector<2x8x8xf32>
    %108 = arith.truncf %107 : vector<2x8x8xf32> to vector<2x8x8xbf16>
    %109 = vector.extract_strided_slice %21 {offsets = [0, 0, 24], sizes = [2, 8, 8], strides = [1, 1, 1]} : vector<2x8x32xf32> to vector<2x8x8xf32>
    %110 = arith.truncf %109 : vector<2x8x8xf32> to vector<2x8x8xbf16>
    "tpu.trace_start"() <{level = 10 : i32, message = "bqd,bkd->bqk"}> : () -> ()
    %cst_39 = arith.constant dense<0.000000e+00> : vector<2x8x8xf32>
    %111 = tpu.matmul %106, %108, %cst_39 {dimension_numbers = #tpu.dot_dimension_numbers<[2], [2], [1], [1], [0, 0, 0, 1, 1, 1], [0], [0]>} : vector<2x8x8xbf16>, vector<2x8x8xbf16>, vector<2x8x8xf32> -> vector<2x8x8xf32>
    "tpu.trace_stop"() : () -> ()
    %cst_40 = arith.constant 0.353553385 : f32
    %112 = vector.broadcast %cst_40 : f32 to vector<2x8x8xf32>
    %113 = arith.mulf %111, %112 : vector<2x8x8xf32>
    %cst_41 = arith.constant dense<0xFF800000> : vector<2x8xf32>
    %114 = vector.multi_reduction <maximumf>, %113, %cst_41 [2] : vector<2x8x8xf32> to vector<2x8xf32>
    %115 = vector.shape_cast %114 : vector<2x8xf32> to vector<2x8x1xf32>
    %116 = vector.broadcast %115 : vector<2x8x1xf32> to vector<2x8x8xf32>
    %117 = arith.subf %113, %116 : vector<2x8x8xf32>
    %118 = math.exp %117 : vector<2x8x8xf32>
    %cst_42 = arith.constant dense<0.000000e+00> : vector<2x8xf32>
    %119 = vector.multi_reduction <add>, %118, %cst_42 [2] : vector<2x8x8xf32> to vector<2x8xf32>
    %120 = vector.shape_cast %119 : vector<2x8xf32> to vector<2x8x1xf32>
    %121 = tpu.reciprocal %120 {approx = true} : vector<2x8x1xf32> -> vector<2x8x1xf32>
    %122 = vector.broadcast %121 : vector<2x8x1xf32> to vector<2x8x8xf32>
    %123 = arith.mulf %118, %122 : vector<2x8x8xf32>
    %124 = arith.truncf %123 : vector<2x8x8xf32> to vector<2x8x8xbf16>
    "tpu.trace_start"() <{level = 10 : i32, message = "bqk,bkd->bqd"}> : () -> ()
    %cst_43 = arith.constant dense<0.000000e+00> : vector<2x8x8xf32>
    %125 = tpu.matmul %124, %110, %cst_43 {dimension_numbers = #tpu.dot_dimension_numbers<[2], [1], [1], [2], [0, 0, 0, 1, 1, 2], [0], [0]>} : vector<2x8x8xbf16>, vector<2x8x8xbf16>, vector<2x8x8xf32> -> vector<2x8x8xf32>
    "tpu.trace_stop"() : () -> ()
    %126 = vector.shape_cast %125 : vector<2x8x8xf32> to vector<16x8xf32>
    %127 = arith.truncf %126 : vector<16x8xf32> to vector<16x8xbf16>
    %128 = vector.extract_strided_slice %5 {offsets = [24, 0], sizes = [8, 32], strides = [1, 1]} : vector<32x32xbf16> to vector<8x32xbf16>
    %cst_44 = arith.constant dense<0.000000e+00> : vector<16x32xf32>
    %129 = tpu.matmul %127, %128, %cst_44 {dimension_numbers = #tpu.dot_dimension_numbers<[1], [0], [0], [1], [0, 0, 1, 1], [], []>} : vector<16x8xbf16>, vector<8x32xbf16>, vector<16x32xf32> -> vector<16x32xf32>
    %130 = arith.addf %104, %129 : vector<16x32xf32>
    %131 = arith.addf %1, %130 : vector<16x32xf32>
    %c0_45 = arith.constant 0 : index
    %c0_46 = arith.constant 0 : index
    %c0_47 = arith.constant 0 : index
    %132 = vector.load %arg5[%c0_45, %c0_46, %c0_47] : memref<2x1x32xf32, #tpu.memory_space<vmem>>, vector<1x1x32xf32>
    %133 = vector.shape_cast %132 : vector<1x1x32xf32> to vector<1x32xf32>
    %c0_48 = arith.constant 0 : index
    %c0_49 = arith.constant 0 : index
    %c0_50 = arith.constant 0 : index
    %134 = vector.load %arg6[%c0_48, %c0_49, %c0_50] : memref<2x1x32xf32, #tpu.memory_space<vmem>>, vector<1x1x32xf32>
    %135 = vector.shape_cast %134 : vector<1x1x32xf32> to vector<1x32xf32>
    %cst_51 = arith.constant dense<0.000000e+00> : vector<16xf32>
    %136 = vector.multi_reduction <add>, %131, %cst_51 [1] : vector<16x32xf32> to vector<16xf32>
    %137 = vector.shape_cast %136 : vector<16xf32> to vector<16x1xf32>
    %cst_52 = arith.constant 3.200000e+01 : f32
    %138 = vector.broadcast %cst_52 : f32 to vector<16x1xf32>
    %139 = arith.divf %137, %138 : vector<16x1xf32>
    %140 = vector.broadcast %139 : vector<16x1xf32> to vector<16x32xf32>
    %141 = arith.subf %131, %140 : vector<16x32xf32>
    %142 = arith.mulf %141, %141 : vector<16x32xf32>
    %cst_53 = arith.constant dense<0.000000e+00> : vector<16xf32>
    %143 = vector.multi_reduction <add>, %142, %cst_53 [1] : vector<16x32xf32> to vector<16xf32>
    %144 = vector.shape_cast %143 : vector<16xf32> to vector<16x1xf32>
    %cst_54 = arith.constant 3.200000e+01 : f32
    %145 = vector.broadcast %cst_54 : f32 to vector<16x1xf32>
    %146 = arith.divf %144, %145 : vector<16x1xf32>
    %147 = vector.broadcast %139 : vector<16x1xf32> to vector<16x32xf32>
    %148 = arith.subf %131, %147 : vector<16x32xf32>
    %cst_55 = arith.constant 9.99999974E-6 : f32
    %149 = vector.broadcast %cst_55 : f32 to vector<16x1xf32>
    %150 = arith.addf %146, %149 : vector<16x1xf32>
    %151 = math.rsqrt %150 : vector<16x1xf32>
    %152 = vector.broadcast %151 : vector<16x1xf32> to vector<16x32xf32>
    %153 = arith.mulf %148, %152 : vector<16x32xf32>
    %154 = vector.broadcast %133 : vector<1x32xf32> to vector<16x32xf32>
    %155 = arith.mulf %153, %154 : vector<16x32xf32>
    %156 = vector.broadcast %135 : vector<1x32xf32> to vector<16x32xf32>
    %157 = arith.addf %155, %156 : vector<16x32xf32>
    %158 = arith.truncf %157 : vector<16x32xf32> to vector<16x32xbf16>
    %cst_56 = arith.constant dense<0.000000e+00> : vector<16x64xf32>
    %159 = tpu.matmul %158, %7, %cst_56 {dimension_numbers = #tpu.dot_dimension_numbers<[1], [0], [0], [1], [0, 0, 1, 1], [], []>} : vector<16x32xbf16>, vector<32x64xbf16>, vector<16x64xf32> -> vector<16x64xf32>
    %c0_57 = arith.constant 0 : index
    %c0_58 = arith.constant 0 : index
    %c0_59 = arith.constant 0 : index
    %160 = vector.load %arg8[%c0_57, %c0_58, %c0_59] : memref<2x1x64xf32, #tpu.memory_space<vmem>>, vector<1x1x64xf32>
    %161 = vector.shape_cast %160 : vector<1x1x64xf32> to vector<1x64xf32>
    %162 = vector.broadcast %161 : vector<1x64xf32> to vector<16x64xf32>
    %163 = arith.addf %159, %162 : vector<16x64xf32>
    %cst_60 = arith.constant 0.000000e+00 : f32
    %164 = vector.broadcast %cst_60 : f32 to vector<16x64xf32>
    %165 = arith.maximumf %163, %164 : vector<16x64xf32>
    %166 = arith.truncf %165 : vector<16x64xf32> to vector<16x64xbf16>
    %cst_61 = arith.constant dense<0.000000e+00> : vector<16x32xf32>
    %167 = tpu.matmul %166, %9, %cst_61 {dimension_numbers = #tpu.dot_dimension_numbers<[1], [0], [0], [1], [0, 0, 1, 1], [], []>} : vector<16x64xbf16>, vector<64x32xbf16>, vector<16x32xf32> -> vector<16x32xf32>
    %c0_62 = arith.constant 0 : index
    %c0_63 = arith.constant 0 : index
    %c0_64 = arith.constant 0 : index
    %168 = vector.load %arg10[%c0_62, %c0_63, %c0_64] : memref<2x1x32xf32, #tpu.memory_space<vmem>>, vector<1x1x32xf32>
    %169 = vector.shape_cast %168 : vector<1x1x32xf32> to vector<1x32xf32>
    %170 = vector.broadcast %169 : vector<1x32xf32> to vector<16x32xf32>
    %171 = arith.addf %167, %170 : vector<16x32xf32>
    %172 = arith.addf %157, %171 : vector<16x32xf32>
    %c0_65 = arith.constant 0 : index
    %c0_66 = arith.constant 0 : index
    %c0_67 = arith.constant 0 : index
    %173 = vector.load %arg11[%c0_65, %c0_66, %c0_67] : memref<2x1x32xf32, #tpu.memory_space<vmem>>, vector<1x1x32xf32>
    %174 = vector.shape_cast %173 : vector<1x1x32xf32> to vector<1x32xf32>
    %c0_68 = arith.constant 0 : index
    %c0_69 = arith.constant 0 : index
    %c0_70 = arith.constant 0 : index
    %175 = vector.load %arg12[%c0_68, %c0_69, %c0_70] : memref<2x1x32xf32, #tpu.memory_space<vmem>>, vector<1x1x32xf32>
    %176 = vector.shape_cast %175 : vector<1x1x32xf32> to vector<1x32xf32>
    %cst_71 = arith.constant dense<0.000000e+00> : vector<16xf32>
    %177 = vector.multi_reduction <add>, %172, %cst_71 [1] : vector<16x32xf32> to vector<16xf32>
    %178 = vector.shape_cast %177 : vector<16xf32> to vector<16x1xf32>
    %cst_72 = arith.constant 3.200000e+01 : f32
    %179 = vector.broadcast %cst_72 : f32 to vector<16x1xf32>
    %180 = arith.divf %178, %179 : vector<16x1xf32>
    %181 = vector.broadcast %180 : vector<16x1xf32> to vector<16x32xf32>
    %182 = arith.subf %172, %181 : vector<16x32xf32>
    %183 = arith.mulf %182, %182 : vector<16x32xf32>
    %cst_73 = arith.constant dense<0.000000e+00> : vector<16xf32>
    %184 = vector.multi_reduction <add>, %183, %cst_73 [1] : vector<16x32xf32> to vector<16xf32>
    %185 = vector.shape_cast %184 : vector<16xf32> to vector<16x1xf32>
    %cst_74 = arith.constant 3.200000e+01 : f32
    %186 = vector.broadcast %cst_74 : f32 to vector<16x1xf32>
    %187 = arith.divf %185, %186 : vector<16x1xf32>
    %188 = vector.broadcast %180 : vector<16x1xf32> to vector<16x32xf32>
    %189 = arith.subf %172, %188 : vector<16x32xf32>
    %cst_75 = arith.constant 9.99999974E-6 : f32
    %190 = vector.broadcast %cst_75 : f32 to vector<16x1xf32>
    %191 = arith.addf %187, %190 : vector<16x1xf32>
    %192 = math.rsqrt %191 : vector<16x1xf32>
    %193 = vector.broadcast %192 : vector<16x1xf32> to vector<16x32xf32>
    %194 = arith.mulf %189, %193 : vector<16x32xf32>
    %195 = vector.broadcast %174 : vector<1x32xf32> to vector<16x32xf32>
    %196 = arith.mulf %194, %195 : vector<16x32xf32>
    %197 = vector.broadcast %176 : vector<1x32xf32> to vector<16x32xf32>
    %198 = arith.addf %196, %197 : vector<16x32xf32>
    %c1 = arith.constant 1 : index
    %c0_76 = arith.constant 0 : index
    %c0_77 = arith.constant 0 : index
    %199 = vector.load %arg1[%c1, %c0_76, %c0_77] : memref<2x32x96xbf16, #tpu.memory_space<vmem>>, vector<1x32x96xbf16>
    %200 = vector.shape_cast %199 : vector<1x32x96xbf16> to vector<32x96xbf16>
    %c1_78 = arith.constant 1 : index
    %c0_79 = arith.constant 0 : index
    %c0_80 = arith.constant 0 : index
    %201 = vector.load %arg3[%c1_78, %c0_79, %c0_80] : memref<2x32x32xbf16, #tpu.memory_space<vmem>>, vector<1x32x32xbf16>
    %202 = vector.shape_cast %201 : vector<1x32x32xbf16> to vector<32x32xbf16>
    %c1_81 = arith.constant 1 : index
    %c0_82 = arith.constant 0 : index
    %c0_83 = arith.constant 0 : index
    %203 = vector.load %arg7[%c1_81, %c0_82, %c0_83] : memref<2x32x64xbf16, #tpu.memory_space<vmem>>, vector<1x32x64xbf16>
    %204 = vector.shape_cast %203 : vector<1x32x64xbf16> to vector<32x64xbf16>
    %c1_84 = arith.constant 1 : index
    %c0_85 = arith.constant 0 : index
    %c0_86 = arith.constant 0 : index
    %205 = vector.load %arg9[%c1_84, %c0_85, %c0_86] : memref<2x64x32xbf16, #tpu.memory_space<vmem>>, vector<1x64x32xbf16>
    %206 = vector.shape_cast %205 : vector<1x64x32xbf16> to vector<64x32xbf16>
    %207 = arith.truncf %198 : vector<16x32xf32> to vector<16x32xbf16>
    %cst_87 = arith.constant dense<0.000000e+00> : vector<16x96xf32>
    %208 = tpu.matmul %207, %200, %cst_87 {dimension_numbers = #tpu.dot_dimension_numbers<[1], [0], [0], [1], [0, 0, 1, 1], [], []>} : vector<16x32xbf16>, vector<32x96xbf16>, vector<16x96xf32> -> vector<16x96xf32>
    %c1_88 = arith.constant 1 : index
    %c0_89 = arith.constant 0 : index
    %c0_90 = arith.constant 0 : index
    %209 = vector.load %arg2[%c1_88, %c0_89, %c0_90] : memref<2x1x96xf32, #tpu.memory_space<vmem>>, vector<1x1x96xf32>
    %210 = vector.shape_cast %209 : vector<1x1x96xf32> to vector<1x96xf32>
    %211 = vector.broadcast %210 : vector<1x96xf32> to vector<16x96xf32>
    %212 = arith.addf %208, %211 : vector<16x96xf32>
    %213 = vector.extract_strided_slice %212 {offsets = [0, 0], sizes = [16, 32], strides = [1, 1]} : vector<16x96xf32> to vector<16x32xf32>
    %214 = vector.shape_cast %213 : vector<16x32xf32> to vector<2x8x32xf32>
    %215 = vector.extract_strided_slice %212 {offsets = [0, 32], sizes = [16, 32], strides = [1, 1]} : vector<16x96xf32> to vector<16x32xf32>
    %216 = vector.shape_cast %215 : vector<16x32xf32> to vector<2x8x32xf32>
    %217 = vector.extract_strided_slice %212 {offsets = [0, 64], sizes = [16, 32], strides = [1, 1]} : vector<16x96xf32> to vector<16x32xf32>
    %218 = vector.shape_cast %217 : vector<16x32xf32> to vector<2x8x32xf32>
    %cst_91 = arith.constant 0.000000e+00 : f32
    %219 = vector.broadcast %cst_91 : f32 to vector<16x32xf32>
    %c1_92 = arith.constant 1 : index
    %c0_93 = arith.constant 0 : index
    %c0_94 = arith.constant 0 : index
    %220 = vector.load %arg4[%c1_92, %c0_93, %c0_94] : memref<2x1x32xf32, #tpu.memory_space<vmem>>, vector<1x1x32xf32>
    %221 = vector.shape_cast %220 : vector<1x1x32xf32> to vector<1x32xf32>
    %222 = vector.broadcast %221 : vector<1x32xf32> to vector<16x32xf32>
    %223 = arith.addf %219, %222 : vector<16x32xf32>
    %224 = vector.extract_strided_slice %214 {offsets = [0, 0, 0], sizes = [2, 8, 8], strides = [1, 1, 1]} : vector<2x8x32xf32> to vector<2x8x8xf32>
    %225 = arith.truncf %224 : vector<2x8x8xf32> to vector<2x8x8xbf16>
    %226 = vector.extract_strided_slice %216 {offsets = [0, 0, 0], sizes = [2, 8, 8], strides = [1, 1, 1]} : vector<2x8x32xf32> to vector<2x8x8xf32>
    %227 = arith.truncf %226 : vector<2x8x8xf32> to vector<2x8x8xbf16>
    %228 = vector.extract_strided_slice %218 {offsets = [0, 0, 0], sizes = [2, 8, 8], strides = [1, 1, 1]} : vector<2x8x32xf32> to vector<2x8x8xf32>
    %229 = arith.truncf %228 : vector<2x8x8xf32> to vector<2x8x8xbf16>
    "tpu.trace_start"() <{level = 10 : i32, message = "bqd,bkd->bqk"}> : () -> ()
    %cst_95 = arith.constant dense<0.000000e+00> : vector<2x8x8xf32>
    %230 = tpu.matmul %225, %227, %cst_95 {dimension_numbers = #tpu.dot_dimension_numbers<[2], [2], [1], [1], [0, 0, 0, 1, 1, 1], [0], [0]>} : vector<2x8x8xbf16>, vector<2x8x8xbf16>, vector<2x8x8xf32> -> vector<2x8x8xf32>
    "tpu.trace_stop"() : () -> ()
    %cst_96 = arith.constant 0.353553385 : f32
    %231 = vector.broadcast %cst_96 : f32 to vector<2x8x8xf32>
    %232 = arith.mulf %230, %231 : vector<2x8x8xf32>
    %cst_97 = arith.constant dense<0xFF800000> : vector<2x8xf32>
    %233 = vector.multi_reduction <maximumf>, %232, %cst_97 [2] : vector<2x8x8xf32> to vector<2x8xf32>
    %234 = vector.shape_cast %233 : vector<2x8xf32> to vector<2x8x1xf32>
    %235 = vector.broadcast %234 : vector<2x8x1xf32> to vector<2x8x8xf32>
    %236 = arith.subf %232, %235 : vector<2x8x8xf32>
    %237 = math.exp %236 : vector<2x8x8xf32>
    %cst_98 = arith.constant dense<0.000000e+00> : vector<2x8xf32>
    %238 = vector.multi_reduction <add>, %237, %cst_98 [2] : vector<2x8x8xf32> to vector<2x8xf32>
    %239 = vector.shape_cast %238 : vector<2x8xf32> to vector<2x8x1xf32>
    %240 = tpu.reciprocal %239 {approx = true} : vector<2x8x1xf32> -> vector<2x8x1xf32>
    %241 = vector.broadcast %240 : vector<2x8x1xf32> to vector<2x8x8xf32>
    %242 = arith.mulf %237, %241 : vector<2x8x8xf32>
    %243 = arith.truncf %242 : vector<2x8x8xf32> to vector<2x8x8xbf16>
    "tpu.trace_start"() <{level = 10 : i32, message = "bqk,bkd->bqd"}> : () -> ()
    %cst_99 = arith.constant dense<0.000000e+00> : vector<2x8x8xf32>
    %244 = tpu.matmul %243, %229, %cst_99 {dimension_numbers = #tpu.dot_dimension_numbers<[2], [1], [1], [2], [0, 0, 0, 1, 1, 2], [0], [0]>} : vector<2x8x8xbf16>, vector<2x8x8xbf16>, vector<2x8x8xf32> -> vector<2x8x8xf32>
    "tpu.trace_stop"() : () -> ()
    %245 = vector.shape_cast %244 : vector<2x8x8xf32> to vector<16x8xf32>
    %246 = arith.truncf %245 : vector<16x8xf32> to vector<16x8xbf16>
    %247 = vector.extract_strided_slice %202 {offsets = [0, 0], sizes = [8, 32], strides = [1, 1]} : vector<32x32xbf16> to vector<8x32xbf16>
    %cst_100 = arith.constant dense<0.000000e+00> : vector<16x32xf32>
    %248 = tpu.matmul %246, %247, %cst_100 {dimension_numbers = #tpu.dot_dimension_numbers<[1], [0], [0], [1], [0, 0, 1, 1], [], []>} : vector<16x8xbf16>, vector<8x32xbf16>, vector<16x32xf32> -> vector<16x32xf32>
    %249 = arith.addf %223, %248 : vector<16x32xf32>
    %250 = vector.extract_strided_slice %214 {offsets = [0, 0, 8], sizes = [2, 8, 8], strides = [1, 1, 1]} : vector<2x8x32xf32> to vector<2x8x8xf32>
    %251 = arith.truncf %250 : vector<2x8x8xf32> to vector<2x8x8xbf16>
    %252 = vector.extract_strided_slice %216 {offsets = [0, 0, 8], sizes = [2, 8, 8], strides = [1, 1, 1]} : vector<2x8x32xf32> to vector<2x8x8xf32>
    %253 = arith.truncf %252 : vector<2x8x8xf32> to vector<2x8x8xbf16>
    %254 = vector.extract_strided_slice %218 {offsets = [0, 0, 8], sizes = [2, 8, 8], strides = [1, 1, 1]} : vector<2x8x32xf32> to vector<2x8x8xf32>
    %255 = arith.truncf %254 : vector<2x8x8xf32> to vector<2x8x8xbf16>
    "tpu.trace_start"() <{level = 10 : i32, message = "bqd,bkd->bqk"}> : () -> ()
    %cst_101 = arith.constant dense<0.000000e+00> : vector<2x8x8xf32>
    %256 = tpu.matmul %251, %253, %cst_101 {dimension_numbers = #tpu.dot_dimension_numbers<[2], [2], [1], [1], [0, 0, 0, 1, 1, 1], [0], [0]>} : vector<2x8x8xbf16>, vector<2x8x8xbf16>, vector<2x8x8xf32> -> vector<2x8x8xf32>
    "tpu.trace_stop"() : () -> ()
    %cst_102 = arith.constant 0.353553385 : f32
    %257 = vector.broadcast %cst_102 : f32 to vector<2x8x8xf32>
    %258 = arith.mulf %256, %257 : vector<2x8x8xf32>
    %cst_103 = arith.constant dense<0xFF800000> : vector<2x8xf32>
    %259 = vector.multi_reduction <maximumf>, %258, %cst_103 [2] : vector<2x8x8xf32> to vector<2x8xf32>
    %260 = vector.shape_cast %259 : vector<2x8xf32> to vector<2x8x1xf32>
    %261 = vector.broadcast %260 : vector<2x8x1xf32> to vector<2x8x8xf32>
    %262 = arith.subf %258, %261 : vector<2x8x8xf32>
    %263 = math.exp %262 : vector<2x8x8xf32>
    %cst_104 = arith.constant dense<0.000000e+00> : vector<2x8xf32>
    %264 = vector.multi_reduction <add>, %263, %cst_104 [2] : vector<2x8x8xf32> to vector<2x8xf32>
    %265 = vector.shape_cast %264 : vector<2x8xf32> to vector<2x8x1xf32>
    %266 = tpu.reciprocal %265 {approx = true} : vector<2x8x1xf32> -> vector<2x8x1xf32>
    %267 = vector.broadcast %266 : vector<2x8x1xf32> to vector<2x8x8xf32>
    %268 = arith.mulf %263, %267 : vector<2x8x8xf32>
    %269 = arith.truncf %268 : vector<2x8x8xf32> to vector<2x8x8xbf16>
    "tpu.trace_start"() <{level = 10 : i32, message = "bqk,bkd->bqd"}> : () -> ()
    %cst_105 = arith.constant dense<0.000000e+00> : vector<2x8x8xf32>
    %270 = tpu.matmul %269, %255, %cst_105 {dimension_numbers = #tpu.dot_dimension_numbers<[2], [1], [1], [2], [0, 0, 0, 1, 1, 2], [0], [0]>} : vector<2x8x8xbf16>, vector<2x8x8xbf16>, vector<2x8x8xf32> -> vector<2x8x8xf32>
    "tpu.trace_stop"() : () -> ()
    %271 = vector.shape_cast %270 : vector<2x8x8xf32> to vector<16x8xf32>
    %272 = arith.truncf %271 : vector<16x8xf32> to vector<16x8xbf16>
    %273 = vector.extract_strided_slice %202 {offsets = [8, 0], sizes = [8, 32], strides = [1, 1]} : vector<32x32xbf16> to vector<8x32xbf16>
    %cst_106 = arith.constant dense<0.000000e+00> : vector<16x32xf32>
    %274 = tpu.matmul %272, %273, %cst_106 {dimension_numbers = #tpu.dot_dimension_numbers<[1], [0], [0], [1], [0, 0, 1, 1], [], []>} : vector<16x8xbf16>, vector<8x32xbf16>, vector<16x32xf32> -> vector<16x32xf32>
    %275 = arith.addf %249, %274 : vector<16x32xf32>
    %276 = vector.extract_strided_slice %214 {offsets = [0, 0, 16], sizes = [2, 8, 8], strides = [1, 1, 1]} : vector<2x8x32xf32> to vector<2x8x8xf32>
    %277 = arith.truncf %276 : vector<2x8x8xf32> to vector<2x8x8xbf16>
    %278 = vector.extract_strided_slice %216 {offsets = [0, 0, 16], sizes = [2, 8, 8], strides = [1, 1, 1]} : vector<2x8x32xf32> to vector<2x8x8xf32>
    %279 = arith.truncf %278 : vector<2x8x8xf32> to vector<2x8x8xbf16>
    %280 = vector.extract_strided_slice %218 {offsets = [0, 0, 16], sizes = [2, 8, 8], strides = [1, 1, 1]} : vector<2x8x32xf32> to vector<2x8x8xf32>
    %281 = arith.truncf %280 : vector<2x8x8xf32> to vector<2x8x8xbf16>
    "tpu.trace_start"() <{level = 10 : i32, message = "bqd,bkd->bqk"}> : () -> ()
    %cst_107 = arith.constant dense<0.000000e+00> : vector<2x8x8xf32>
    %282 = tpu.matmul %277, %279, %cst_107 {dimension_numbers = #tpu.dot_dimension_numbers<[2], [2], [1], [1], [0, 0, 0, 1, 1, 1], [0], [0]>} : vector<2x8x8xbf16>, vector<2x8x8xbf16>, vector<2x8x8xf32> -> vector<2x8x8xf32>
    "tpu.trace_stop"() : () -> ()
    %cst_108 = arith.constant 0.353553385 : f32
    %283 = vector.broadcast %cst_108 : f32 to vector<2x8x8xf32>
    %284 = arith.mulf %282, %283 : vector<2x8x8xf32>
    %cst_109 = arith.constant dense<0xFF800000> : vector<2x8xf32>
    %285 = vector.multi_reduction <maximumf>, %284, %cst_109 [2] : vector<2x8x8xf32> to vector<2x8xf32>
    %286 = vector.shape_cast %285 : vector<2x8xf32> to vector<2x8x1xf32>
    %287 = vector.broadcast %286 : vector<2x8x1xf32> to vector<2x8x8xf32>
    %288 = arith.subf %284, %287 : vector<2x8x8xf32>
    %289 = math.exp %288 : vector<2x8x8xf32>
    %cst_110 = arith.constant dense<0.000000e+00> : vector<2x8xf32>
    %290 = vector.multi_reduction <add>, %289, %cst_110 [2] : vector<2x8x8xf32> to vector<2x8xf32>
    %291 = vector.shape_cast %290 : vector<2x8xf32> to vector<2x8x1xf32>
    %292 = tpu.reciprocal %291 {approx = true} : vector<2x8x1xf32> -> vector<2x8x1xf32>
    %293 = vector.broadcast %292 : vector<2x8x1xf32> to vector<2x8x8xf32>
    %294 = arith.mulf %289, %293 : vector<2x8x8xf32>
    %295 = arith.truncf %294 : vector<2x8x8xf32> to vector<2x8x8xbf16>
    "tpu.trace_start"() <{level = 10 : i32, message = "bqk,bkd->bqd"}> : () -> ()
    %cst_111 = arith.constant dense<0.000000e+00> : vector<2x8x8xf32>
    %296 = tpu.matmul %295, %281, %cst_111 {dimension_numbers = #tpu.dot_dimension_numbers<[2], [1], [1], [2], [0, 0, 0, 1, 1, 2], [0], [0]>} : vector<2x8x8xbf16>, vector<2x8x8xbf16>, vector<2x8x8xf32> -> vector<2x8x8xf32>
    "tpu.trace_stop"() : () -> ()
    %297 = vector.shape_cast %296 : vector<2x8x8xf32> to vector<16x8xf32>
    %298 = arith.truncf %297 : vector<16x8xf32> to vector<16x8xbf16>
    %299 = vector.extract_strided_slice %202 {offsets = [16, 0], sizes = [8, 32], strides = [1, 1]} : vector<32x32xbf16> to vector<8x32xbf16>
    %cst_112 = arith.constant dense<0.000000e+00> : vector<16x32xf32>
    %300 = tpu.matmul %298, %299, %cst_112 {dimension_numbers = #tpu.dot_dimension_numbers<[1], [0], [0], [1], [0, 0, 1, 1], [], []>} : vector<16x8xbf16>, vector<8x32xbf16>, vector<16x32xf32> -> vector<16x32xf32>
    %301 = arith.addf %275, %300 : vector<16x32xf32>
    %302 = vector.extract_strided_slice %214 {offsets = [0, 0, 24], sizes = [2, 8, 8], strides = [1, 1, 1]} : vector<2x8x32xf32> to vector<2x8x8xf32>
    %303 = arith.truncf %302 : vector<2x8x8xf32> to vector<2x8x8xbf16>
    %304 = vector.extract_strided_slice %216 {offsets = [0, 0, 24], sizes = [2, 8, 8], strides = [1, 1, 1]} : vector<2x8x32xf32> to vector<2x8x8xf32>
    %305 = arith.truncf %304 : vector<2x8x8xf32> to vector<2x8x8xbf16>
    %306 = vector.extract_strided_slice %218 {offsets = [0, 0, 24], sizes = [2, 8, 8], strides = [1, 1, 1]} : vector<2x8x32xf32> to vector<2x8x8xf32>
    %307 = arith.truncf %306 : vector<2x8x8xf32> to vector<2x8x8xbf16>
    "tpu.trace_start"() <{level = 10 : i32, message = "bqd,bkd->bqk"}> : () -> ()
    %cst_113 = arith.constant dense<0.000000e+00> : vector<2x8x8xf32>
    %308 = tpu.matmul %303, %305, %cst_113 {dimension_numbers = #tpu.dot_dimension_numbers<[2], [2], [1], [1], [0, 0, 0, 1, 1, 1], [0], [0]>} : vector<2x8x8xbf16>, vector<2x8x8xbf16>, vector<2x8x8xf32> -> vector<2x8x8xf32>
    "tpu.trace_stop"() : () -> ()
    %cst_114 = arith.constant 0.353553385 : f32
    %309 = vector.broadcast %cst_114 : f32 to vector<2x8x8xf32>
    %310 = arith.mulf %308, %309 : vector<2x8x8xf32>
    %cst_115 = arith.constant dense<0xFF800000> : vector<2x8xf32>
    %311 = vector.multi_reduction <maximumf>, %310, %cst_115 [2] : vector<2x8x8xf32> to vector<2x8xf32>
    %312 = vector.shape_cast %311 : vector<2x8xf32> to vector<2x8x1xf32>
    %313 = vector.broadcast %312 : vector<2x8x1xf32> to vector<2x8x8xf32>
    %314 = arith.subf %310, %313 : vector<2x8x8xf32>
    %315 = math.exp %314 : vector<2x8x8xf32>
    %cst_116 = arith.constant dense<0.000000e+00> : vector<2x8xf32>
    %316 = vector.multi_reduction <add>, %315, %cst_116 [2] : vector<2x8x8xf32> to vector<2x8xf32>
    %317 = vector.shape_cast %316 : vector<2x8xf32> to vector<2x8x1xf32>
    %318 = tpu.reciprocal %317 {approx = true} : vector<2x8x1xf32> -> vector<2x8x1xf32>
    %319 = vector.broadcast %318 : vector<2x8x1xf32> to vector<2x8x8xf32>
    %320 = arith.mulf %315, %319 : vector<2x8x8xf32>
    %321 = arith.truncf %320 : vector<2x8x8xf32> to vector<2x8x8xbf16>
    "tpu.trace_start"() <{level = 10 : i32, message = "bqk,bkd->bqd"}> : () -> ()
    %cst_117 = arith.constant dense<0.000000e+00> : vector<2x8x8xf32>
    %322 = tpu.matmul %321, %307, %cst_117 {dimension_numbers = #tpu.dot_dimension_numbers<[2], [1], [1], [2], [0, 0, 0, 1, 1, 2], [0], [0]>} : vector<2x8x8xbf16>, vector<2x8x8xbf16>, vector<2x8x8xf32> -> vector<2x8x8xf32>
    "tpu.trace_stop"() : () -> ()
    %323 = vector.shape_cast %322 : vector<2x8x8xf32> to vector<16x8xf32>
    %324 = arith.truncf %323 : vector<16x8xf32> to vector<16x8xbf16>
    %325 = vector.extract_strided_slice %202 {offsets = [24, 0], sizes = [8, 32], strides = [1, 1]} : vector<32x32xbf16> to vector<8x32xbf16>
    %cst_118 = arith.constant dense<0.000000e+00> : vector<16x32xf32>
    %326 = tpu.matmul %324, %325, %cst_118 {dimension_numbers = #tpu.dot_dimension_numbers<[1], [0], [0], [1], [0, 0, 1, 1], [], []>} : vector<16x8xbf16>, vector<8x32xbf16>, vector<16x32xf32> -> vector<16x32xf32>
    %327 = arith.addf %301, %326 : vector<16x32xf32>
    %328 = arith.addf %198, %327 : vector<16x32xf32>
    %c1_119 = arith.constant 1 : index
    %c0_120 = arith.constant 0 : index
    %c0_121 = arith.constant 0 : index
    %329 = vector.load %arg5[%c1_119, %c0_120, %c0_121] : memref<2x1x32xf32, #tpu.memory_space<vmem>>, vector<1x1x32xf32>
    %330 = vector.shape_cast %329 : vector<1x1x32xf32> to vector<1x32xf32>
    %c1_122 = arith.constant 1 : index
    %c0_123 = arith.constant 0 : index
    %c0_124 = arith.constant 0 : index
    %331 = vector.load %arg6[%c1_122, %c0_123, %c0_124] : memref<2x1x32xf32, #tpu.memory_space<vmem>>, vector<1x1x32xf32>
    %332 = vector.shape_cast %331 : vector<1x1x32xf32> to vector<1x32xf32>
    %cst_125 = arith.constant dense<0.000000e+00> : vector<16xf32>
    %333 = vector.multi_reduction <add>, %328, %cst_125 [1] : vector<16x32xf32> to vector<16xf32>
    %334 = vector.shape_cast %333 : vector<16xf32> to vector<16x1xf32>
    %cst_126 = arith.constant 3.200000e+01 : f32
    %335 = vector.broadcast %cst_126 : f32 to vector<16x1xf32>
    %336 = arith.divf %334, %335 : vector<16x1xf32>
    %337 = vector.broadcast %336 : vector<16x1xf32> to vector<16x32xf32>
    %338 = arith.subf %328, %337 : vector<16x32xf32>
    %339 = arith.mulf %338, %338 : vector<16x32xf32>
    %cst_127 = arith.constant dense<0.000000e+00> : vector<16xf32>
    %340 = vector.multi_reduction <add>, %339, %cst_127 [1] : vector<16x32xf32> to vector<16xf32>
    %341 = vector.shape_cast %340 : vector<16xf32> to vector<16x1xf32>
    %cst_128 = arith.constant 3.200000e+01 : f32
    %342 = vector.broadcast %cst_128 : f32 to vector<16x1xf32>
    %343 = arith.divf %341, %342 : vector<16x1xf32>
    %344 = vector.broadcast %336 : vector<16x1xf32> to vector<16x32xf32>
    %345 = arith.subf %328, %344 : vector<16x32xf32>
    %cst_129 = arith.constant 9.99999974E-6 : f32
    %346 = vector.broadcast %cst_129 : f32 to vector<16x1xf32>
    %347 = arith.addf %343, %346 : vector<16x1xf32>
    %348 = math.rsqrt %347 : vector<16x1xf32>
    %349 = vector.broadcast %348 : vector<16x1xf32> to vector<16x32xf32>
    %350 = arith.mulf %345, %349 : vector<16x32xf32>
    %351 = vector.broadcast %330 : vector<1x32xf32> to vector<16x32xf32>
    %352 = arith.mulf %350, %351 : vector<16x32xf32>
    %353 = vector.broadcast %332 : vector<1x32xf32> to vector<16x32xf32>
    %354 = arith.addf %352, %353 : vector<16x32xf32>
    %355 = arith.truncf %354 : vector<16x32xf32> to vector<16x32xbf16>
    %cst_130 = arith.constant dense<0.000000e+00> : vector<16x64xf32>
    %356 = tpu.matmul %355, %204, %cst_130 {dimension_numbers = #tpu.dot_dimension_numbers<[1], [0], [0], [1], [0, 0, 1, 1], [], []>} : vector<16x32xbf16>, vector<32x64xbf16>, vector<16x64xf32> -> vector<16x64xf32>
    %c1_131 = arith.constant 1 : index
    %c0_132 = arith.constant 0 : index
    %c0_133 = arith.constant 0 : index
    %357 = vector.load %arg8[%c1_131, %c0_132, %c0_133] : memref<2x1x64xf32, #tpu.memory_space<vmem>>, vector<1x1x64xf32>
    %358 = vector.shape_cast %357 : vector<1x1x64xf32> to vector<1x64xf32>
    %359 = vector.broadcast %358 : vector<1x64xf32> to vector<16x64xf32>
    %360 = arith.addf %356, %359 : vector<16x64xf32>
    %cst_134 = arith.constant 0.000000e+00 : f32
    %361 = vector.broadcast %cst_134 : f32 to vector<16x64xf32>
    %362 = arith.maximumf %360, %361 : vector<16x64xf32>
    %363 = arith.truncf %362 : vector<16x64xf32> to vector<16x64xbf16>
    %cst_135 = arith.constant dense<0.000000e+00> : vector<16x32xf32>
    %364 = tpu.matmul %363, %206, %cst_135 {dimension_numbers = #tpu.dot_dimension_numbers<[1], [0], [0], [1], [0, 0, 1, 1], [], []>} : vector<16x64xbf16>, vector<64x32xbf16>, vector<16x32xf32> -> vector<16x32xf32>
    %c1_136 = arith.constant 1 : index
    %c0_137 = arith.constant 0 : index
    %c0_138 = arith.constant 0 : index
    %365 = vector.load %arg10[%c1_136, %c0_137, %c0_138] : memref<2x1x32xf32, #tpu.memory_space<vmem>>, vector<1x1x32xf32>
    %366 = vector.shape_cast %365 : vector<1x1x32xf32> to vector<1x32xf32>
    %367 = vector.broadcast %366 : vector<1x32xf32> to vector<16x32xf32>
    %368 = arith.addf %364, %367 : vector<16x32xf32>
    %369 = arith.addf %354, %368 : vector<16x32xf32>
    %c1_139 = arith.constant 1 : index
    %c0_140 = arith.constant 0 : index
    %c0_141 = arith.constant 0 : index
    %370 = vector.load %arg11[%c1_139, %c0_140, %c0_141] : memref<2x1x32xf32, #tpu.memory_space<vmem>>, vector<1x1x32xf32>
    %371 = vector.shape_cast %370 : vector<1x1x32xf32> to vector<1x32xf32>
    %c1_142 = arith.constant 1 : index
    %c0_143 = arith.constant 0 : index
    %c0_144 = arith.constant 0 : index
    %372 = vector.load %arg12[%c1_142, %c0_143, %c0_144] : memref<2x1x32xf32, #tpu.memory_space<vmem>>, vector<1x1x32xf32>
    %373 = vector.shape_cast %372 : vector<1x1x32xf32> to vector<1x32xf32>
    %cst_145 = arith.constant dense<0.000000e+00> : vector<16xf32>
    %374 = vector.multi_reduction <add>, %369, %cst_145 [1] : vector<16x32xf32> to vector<16xf32>
    %375 = vector.shape_cast %374 : vector<16xf32> to vector<16x1xf32>
    %cst_146 = arith.constant 3.200000e+01 : f32
    %376 = vector.broadcast %cst_146 : f32 to vector<16x1xf32>
    %377 = arith.divf %375, %376 : vector<16x1xf32>
    %378 = vector.broadcast %377 : vector<16x1xf32> to vector<16x32xf32>
    %379 = arith.subf %369, %378 : vector<16x32xf32>
    %380 = arith.mulf %379, %379 : vector<16x32xf32>
    %cst_147 = arith.constant dense<0.000000e+00> : vector<16xf32>
    %381 = vector.multi_reduction <add>, %380, %cst_147 [1] : vector<16x32xf32> to vector<16xf32>
    %382 = vector.shape_cast %381 : vector<16xf32> to vector<16x1xf32>
    %cst_148 = arith.constant 3.200000e+01 : f32
    %383 = vector.broadcast %cst_148 : f32 to vector<16x1xf32>
    %384 = arith.divf %382, %383 : vector<16x1xf32>
    %385 = vector.broadcast %377 : vector<16x1xf32> to vector<16x32xf32>
    %386 = arith.subf %369, %385 : vector<16x32xf32>
    %cst_149 = arith.constant 9.99999974E-6 : f32
    %387 = vector.broadcast %cst_149 : f32 to vector<16x1xf32>
    %388 = arith.addf %384, %387 : vector<16x1xf32>
    %389 = math.rsqrt %388 : vector<16x1xf32>
    %390 = vector.broadcast %389 : vector<16x1xf32> to vector<16x32xf32>
    %391 = arith.mulf %386, %390 : vector<16x32xf32>
    %392 = vector.broadcast %371 : vector<1x32xf32> to vector<16x32xf32>
    %393 = arith.mulf %391, %392 : vector<16x32xf32>
    %394 = vector.broadcast %373 : vector<1x32xf32> to vector<16x32xf32>
    %395 = arith.addf %393, %394 : vector<16x32xf32>
    %396 = vector.shape_cast %395 : vector<16x32xf32> to vector<2x8x32xf32>
    %c0_150 = arith.constant 0 : index
    %c0_151 = arith.constant 0 : index
    %c0_152 = arith.constant 0 : index
    %397 = vector.load %arg13[%c0_150, %c0_151, %c0_152] : memref<2x8x32xf32, #tpu.memory_space<vmem>>, vector<2x8x32xf32>
    tpu.vector_store %arg13[%c0_150, %c0_151, %c0_152], %396 {strides = array<i32>} : memref<2x8x32xf32, #tpu.memory_space<vmem>>, vector<2x8x32xf32>,
    return
  }
}

</mosaic_0001>

<llo_original>
// kernel: tpu_custom_call.1
$region0: #{tpu_custom_call.1}
  #allocation0 [shape = 'u32[]', space=smem, size = 0x4, offset = 0x4, fixed_abs, tag = 'smem constant byte address 0x4 - core index']
  #allocation1 [shape = 'u32[144,128]{1,0:T(1,128)}', space=vmem, size = 0x12000, scoped, tag = 'internal scratch']
  %s0 = inlined_call_operand.hbm [shape: f32[2,8,32], index: 0, kind: input, shape index: {}]
  %s1 = inlined_call_operand.vmem [shape: bf16[2,32,96], index: 1, kind: input, shape index: {}]
  %s2 = inlined_call_operand.vmem [shape: f32[2,1,96], index: 2, kind: input, shape index: {}]
  %s3 = inlined_call_operand.vmem [shape: bf16[2,32,32], index: 3, kind: input, shape index: {}]
  %s4 = inlined_call_operand.hbm [shape: f32[2,1,32], index: 4, kind: input, shape index: {}]
  %s5 = inlined_call_operand.hbm [shape: f32[2,1,32], index: 5, kind: input, shape index: {}]
  %s6 = inlined_call_operand.hbm [shape: f32[2,1,32], index: 6, kind: input, shape index: {}]
  %s7 = inlined_call_operand.vmem [shape: bf16[2,32,64], index: 7, kind: input, shape index: {}]
  %s8 = inlined_call_operand.hbm [shape: f32[2,1,64], index: 8, kind: input, shape index: {}]
  %s9 = inlined_call_operand.vmem [shape: bf16[2,64,32], index: 9, kind: input, shape index: {}]
  %s10 = inlined_call_operand.vmem [shape: f32[2,1,32], index: 10, kind: input, shape index: {}]
  %s11 = inlined_call_operand.vmem [shape: f32[2,1,32], index: 11, kind: input, shape index: {}]
  %s12 = inlined_call_operand.vmem [shape: f32[2,1,32], index: 12, kind: input, shape index: {}]
  %s13 = inlined_call_operand.hbm [shape: f32[2,8,32], index: 13, kind: output, shape index: {}]
  %s14 = sld [smem:[#allocation0]]
  $region82: #{tpu_custom_call.1} parent=0
    _
  %s16 = ssub.s32 1, %s14
  %s17 = scalar_select 0, %s16, %s14
  $region1: #{tpu_custom_call.1} parent=0
    #allocation2 [shape = 'u8[8192]{0}', space=vmem, size = 0x2000, scoped, tag = 'input window, operand 0, single buffered']
    #allocation3 [shape = 's32[1]{0}', space=sflag, size = 0x4, scoped, tag = 'scoped memory for tpu_custom_call.1']
    #allocation4 [shape = 's32[1]{0}', space=sflag, size = 0x4, scoped, tag = 'scoped memory for tpu_custom_call.1']
    #allocation5 [shape = 'u8[1024]{0}', space=vmem, size = 0x400, scoped, tag = 'input window, operand 4, single buffered']
    #allocation6 [shape = 's32[1]{0}', space=sflag, size = 0x4, scoped, tag = 'scoped memory for tpu_custom_call.1']
    #allocation7 [shape = 'u8[1024]{0}', space=vmem, size = 0x400, scoped, tag = 'input window, operand 5, single buffered']
    #allocation8 [shape = 'u8[1024]{0}', space=vmem, size = 0x400, scoped, tag = 'input window, operand 6, single buffered']
    #allocation9 [shape = 's32[1]{0}', space=sflag, size = 0x4, scoped, tag = 'scoped memory for tpu_custom_call.1']
    #allocation10 [shape = 'u8[1024]{0}', space=vmem, size = 0x400, scoped, tag = 'input window, operand 8, single buffered']
    #allocation11 [shape = 'u8[8192]{0}', space=vmem, size = 0x2000, scoped, tag = 'output window, operand 0, single buffered']
    %18 = vsyncpa [#allocation3], 0
    %19 = vsyncpa [#allocation6], 0
    %20 = vsyncpa [#allocation9], 0
    %21 = vsyncpa [#allocation4], 0
    // Predicated region
    $region2: #{tpu_custom_call.1} parent=1 // pred_check
      _
    $region3: #{tpu_custom_call.1} parent=1 // pred_check_branch
      %23 = sbr.rel (0) target = $region5
    $region4: #{tpu_custom_call.1} parent=1 // pred_region
      %s25 = ssub.s32 256, 256
      %26 = vsyncadd [#allocation3], %s25
      %s27 = sshll.u32 [#allocation2], 4
      %s28 = int_to_ptr.vmem [resolvable:$true] %s27
      %33 = dma.hbm_to_vmem [thread:$0]  %s0, 256, %s28, [#allocation3], 128, 128, 8
    $region5: #{tpu_custom_call.1} parent=1 // pred_fallthru
      _
    // Predicated region
    $region6: #{tpu_custom_call.1} parent=1 // pred_check
      _
    $region7: #{tpu_custom_call.1} parent=1 // pred_check_branch
      %35 = sbr.rel (0) target = $region9
    $region8: #{tpu_custom_call.1} parent=1 // pred_region
      _
    $region9: #{tpu_custom_call.1} parent=1 // pred_fallthru
      _
    // Predicated region
    $region10: #{tpu_custom_call.1} parent=1 // pred_check
      _
    $region11: #{tpu_custom_call.1} parent=1 // pred_check_branch
      %37 = sbr.rel (0) target = $region13
    $region12: #{tpu_custom_call.1} parent=1 // pred_region
      _
    $region13: #{tpu_custom_call.1} parent=1 // pred_fallthru
      _
    // Predicated region
    $region14: #{tpu_custom_call.1} parent=1 // pred_check
      _
    $region15: #{tpu_custom_call.1} parent=1 // pred_check_branch
      %39 = sbr.rel (0) target = $region17
    $region16: #{tpu_custom_call.1} parent=1 // pred_region
      _
    $region17: #{tpu_custom_call.1} parent=1 // pred_fallthru
      _
    // Predicated region
    $region18: #{tpu_custom_call.1} parent=1 // pred_check
      _
    $region19: #{tpu_custom_call.1} parent=1 // pred_check_branch
      %41 = sbr.rel (0) target = $region21
    $region20: #{tpu_custom_call.1} parent=1 // pred_region
      %s43 = ssub.s32 32, 32
      %44 = vsyncadd [#allocation6], %s43
      %s45 = sshll.u32 [#allocation5], 4
      %s46 = int_to_ptr.vmem [resolvable:$true] %s45
      %51 = dma.hbm_to_vmem [thread:$0]  %s4, 32, %s46, [#allocation6], 16, 16, 1
    $region21: #{tpu_custom_call.1} parent=1 // pred_fallthru
      _
    // Predicated region
    $region22: #{tpu_custom_call.1} parent=1 // pred_check
      _
    $region23: #{tpu_custom_call.1} parent=1 // pred_check_branch
      %53 = sbr.rel (0) target = $region25
    $region24: #{tpu_custom_call.1} parent=1 // pred_region
      %s55 = ssub.s32 32, 32
      %56 = vsyncadd [#allocation6], %s55
      %s57 = sshll.u32 [#allocation7], 4
      %s58 = int_to_ptr.vmem [resolvable:$true] %s57
      %63 = dma.hbm_to_vmem [thread:$0]  %s5, 32, %s58, [#allocation6], 16, 16, 1
    $region25: #{tpu_custom_call.1} parent=1 // pred_fallthru
      _
    // Predicated region
    $region26: #{tpu_custom_call.1} parent=1 // pred_check
      _
    $region27: #{tpu_custom_call.1} parent=1 // pred_check_branch
      %65 = sbr.rel (0) target = $region29
    $region28: #{tpu_custom_call.1} parent=1 // pred_region
      %s67 = ssub.s32 32, 32
      %68 = vsyncadd [#allocation9], %s67
      %s69 = sshll.u32 [#allocation8], 4
      %s70 = int_to_ptr.vmem [resolvable:$true] %s69
      %75 = dma.hbm_to_vmem [thread:$0]  %s6, 32, %s70, [#allocation9], 16, 16, 1
    $region29: #{tpu_custom_call.1} parent=1 // pred_fallthru
      _
    // Predicated region
    $region30: #{tpu_custom_call.1} parent=1 // pred_check
      _
    $region31: #{tpu_custom_call.1} parent=1 // pred_check_branch
      %77 = sbr.rel (0) target = $region33
    $region32: #{tpu_custom_call.1} parent=1 // pred_region
      _
    $region33: #{tpu_custom_call.1} parent=1 // pred_fallthru
      _
    // Predicated region
    $region34: #{tpu_custom_call.1} parent=1 // pred_check
      _
    $region35: #{tpu_custom_call.1} parent=1 // pred_check_branch
      %79 = sbr.rel (0) target = $region37
    $region36: #{tpu_custom_call.1} parent=1 // pred_region
      %s81 = ssub.s32 32, 32
      %82 = vsyncadd [#allocation9], %s81
      %s83 = sshll.u32 [#allocation10], 4
      %s84 = int_to_ptr.vmem [resolvable:$true] %s83
      %89 = dma.hbm_to_vmem [thread:$0]  %s8, 32, %s84, [#allocation9], 16, 16, 1
    $region37: #{tpu_custom_call.1} parent=1 // pred_fallthru
      _
    // Predicated region
    $region38: #{tpu_custom_call.1} parent=1 // pred_check
      _
    $region39: #{tpu_custom_call.1} parent=1 // pred_check_branch
      %91 = sbr.rel (0) target = $region41
    $region40: #{tpu_custom_call.1} parent=1 // pred_region
      _
    $region41: #{tpu_custom_call.1} parent=1 // pred_fallthru
      _
    // Predicated region
    $region42: #{tpu_custom_call.1} parent=1 // pred_check
      _
    $region43: #{tpu_custom_call.1} parent=1 // pred_check_branch
      %93 = sbr.rel (0) target = $region45
    $region44: #{tpu_custom_call.1} parent=1 // pred_region
      _
    $region45: #{tpu_custom_call.1} parent=1 // pred_fallthru
      _
    // Predicated region
    $region46: #{tpu_custom_call.1} parent=1 // pred_check
      _
    $region47: #{tpu_custom_call.1} parent=1 // pred_check_branch
      %95 = sbr.rel (0) target = $region49
    $region48: #{tpu_custom_call.1} parent=1 // pred_region
      _
    $region49: #{tpu_custom_call.1} parent=1 // pred_fallthru
      _
    // Predicated region
    $region50: #{tpu_custom_call.1} parent=1 // pred_check
      _
    $region51: #{tpu_custom_call.1} parent=1 // pred_check_branch
      %97 = sbr.rel (0) target = $region53
    $region52: #{tpu_custom_call.1} parent=1 // pred_region
      _
    $region53: #{tpu_custom_call.1} parent=1 // pred_fallthru
      _
    // Predicated region
    $region54: #{tpu_custom_call.1} parent=1 // pred_check
      _
    $region55: #{tpu_custom_call.1} parent=1 // pred_check_branch
      %99 = sbr.rel (0) target = $region57
    $region56: #{tpu_custom_call.1} parent=1 // pred_region
      %100 = dma.done [#allocation3], 256
    $region57: #{tpu_custom_call.1} parent=1 // pred_fallthru
      _
    // Predicated region
    $region58: #{tpu_custom_call.1} parent=1 // pred_check
      _
    $region59: #{tpu_custom_call.1} parent=1 // pred_check_branch
      %102 = sbr.rel (0) target = $region61
    $region60: #{tpu_custom_call.1} parent=1 // pred_region
      %103 = dma.done [#allocation6], 32
    $region61: #{tpu_custom_call.1} parent=1 // pred_fallthru
      _
    // Predicated region
    $region62: #{tpu_custom_call.1} parent=1 // pred_check
      _
    $region63: #{tpu_custom_call.1} parent=1 // pred_check_branch
      %105 = sbr.rel (0) target = $region65
    $region64: #{tpu_custom_call.1} parent=1 // pred_region
      %106 = dma.done [#allocation6], 32
    $region65: #{tpu_custom_call.1} parent=1 // pred_fallthru
      _
    // Predicated region
    $region66: #{tpu_custom_call.1} parent=1 // pred_check
      _
    $region67: #{tpu_custom_call.1} parent=1 // pred_check_branch
      %108 = sbr.rel (0) target = $region69
    $region68: #{tpu_custom_call.1} parent=1 // pred_region
      %109 = dma.done [#allocation9], 32
    $region69: #{tpu_custom_call.1} parent=1 // pred_fallthru
      _
    // Predicated region
    $region70: #{tpu_custom_call.1} parent=1 // pred_check
      _
    $region71: #{tpu_custom_call.1} parent=1 // pred_check_branch
      %111 = sbr.rel (0) target = $region73
    $region72: #{tpu_custom_call.1} parent=1 // pred_region
      %112 = dma.done [#allocation9], 32
    $region73: #{tpu_custom_call.1} parent=1 // pred_fallthru
      _
    %v114 = vld [vmem:[#allocation2] sm:$0xff]
    %v115 = vld [vmem:[#allocation2 + $0x8] sm:$0xff]
    %v116 = vld [vmem:[%s1] sm:$0xf]
    %v117 = vld [vmem:[%s1 + $0x4] sm:$0xf]
    %v118 = vld [vmem:[%s1 + $0x8] sm:$0xf]
    %v119 = vld [vmem:[%s1 + $0xc] sm:$0xf]
    %v120 = vld [vmem:[%s3] sm:$0xf]
    %v121 = vld [vmem:[%s3 + $0x4] sm:$0xf]
    %v122 = vld [vmem:[%s3 + $0x8] sm:$0xf]
    %v123 = vld [vmem:[%s3 + $0xc] sm:$0xf]
    %v124 = vld [vmem:[%s7] sm:$0xf]
    %v125 = vld [vmem:[%s7 + $0x4] sm:$0xf]
    %v126 = vld [vmem:[%s7 + $0x8] sm:$0xf]
    %v127 = vld [vmem:[%s7 + $0xc] sm:$0xf]
    %v128 = vld [vmem:[%s9] sm:$0xf]
    %v129 = vld [vmem:[%s9 + $0x4] sm:$0xf]
    %v130 = vld [vmem:[%s9 + $0x8] sm:$0xf]
    %v131 = vld [vmem:[%s9 + $0xc] sm:$0xf]
    %v132 = vld [vmem:[%s9 + $0x10] sm:$0xf]
    %v133 = vld [vmem:[%s9 + $0x14] sm:$0xf]
    %v134 = vld [vmem:[%s9 + $0x18] sm:$0xf]
    %v135 = vld [vmem:[%s9 + $0x1c] sm:$0xf]
    %v136 = vpack.c.bf16 %v115, %v114
    %v137 = vld [vmem:[%s2] sm:$0x1]
    %v139 = vlaneseq
    %v140 = vshrl.u32 %v139, 7
    %v141 = vsub.s32 0, %v140
    %v142 = vrot.slane %v137, %v141
    %v148 = vunpack.c.l.b16 %v116
    %v149 = vunpack.c.l.b16 %v117
    %v150 = vunpack.c.l.b16 %v118
    %v151 = vunpack.c.l.b16 %v119
    %v152 = vpack.c.b16 %v149, %v148
    %v153 = vpack.c.b16 %v151, %v150
    %vm156 = vcmask 261120
    %v158 = vsel %vm156, %v136, 0
    %160 = vmatprep.subr.bf16.mxu0 0
    %161 = vmatpush1.bf16.msra.mxu0 %v152
    %162 = vmatprep.subr.bf16.mxu0 0
    %163 = vmatpush1.bf16.msra.mxu0 %v153
    %164 = vmatprep.subr.bf16.mxu0 0
    %165 = vmatpush1.bf16.msra.mxu0 0
    %166 = vmatprep.subr.bf16.mxu0 0
    %167 = vmatpush1.bf16.msra.mxu0 0
    %168 = vmatprep.subr.bf16.mxu0 0
    %169 = vmatpush1.bf16.msra.mxu0 0
    %170 = vmatprep.subr.bf16.mxu0 0
    %171 = vmatpush1.bf16.msra.mxu0 0
    %172 = vmatprep.subr.bf16.mxu0 0
    %173 = vmatpush1.bf16.msra.mxu0 0
    %174 = vmatprep.subr.bf16.mxu0 0
    %175 = vmatpush1.bf16.msra.mxu0 0
    %176 = vmatprep.subr.bf16.mxu0 0
    %177 = vmatpush1.bf16.msra.mxu0 0
    %178 = vmatprep.subr.bf16.mxu0 0
    %179 = vmatpush1.bf16.msra.mxu0 0
    %180 = vmatprep.subr.bf16.mxu0 0
    %181 = vmatpush1.bf16.msra.mxu0 0
    %182 = vmatprep.subr.bf16.mxu0 0
    %183 = vmatpush1.bf16.msra.mxu0 0
    %184 = vmatprep.subr.bf16.mxu0 0
    %185 = vmatpush1.bf16.msra.mxu0 0
    %186 = vmatprep.subr.bf16.mxu0 0
    %187 = vmatpush1.bf16.msra.mxu0 0
    %188 = vmatprep.subr.bf16.mxu0 0
    %189 = vmatpush1.bf16.msra.mxu0 0
    %190 = vmatprep.subr.bf16.mxu0 0
    %191 = vmatpush1.bf16.msra.mxu0 0
    %192 = vmatprep.mubr.bf16.mxu0 0
    %193 = vmatmul.mubr.bf16.gmra.mrb[0].mxu0 %v158
    %v194 = vpop.f32.mrb[0].mxu0
    %v195 = vadd.f32 %v142, %v194
    %v196 = vpop.f32.mrb[0].mxu0
    %v197 = vpop.f32.mrb[0].mxu0
    %v198 = vadd.f32 %v142, %v197
    %v199 = vpop.f32.mrb[0].mxu0
    %200 = vdwg.mxu0
    %v201 = vld [vmem:[#allocation5] sm:$0x1]
    %v203 = vlaneseq
    %v204 = vshrl.u32 %v203, 7
    %v205 = vsub.s32 0, %v204
    %v206 = vrot.slane %v201, %v205
    %v208 = vadd.f32 %v206, 0.0
    %v209 = vpack.c.bf16 %v195, %v195
    %v210 = vpack.c.bf16 %v198, %v198
    %212 = vrot.lane.b32.xlu0 %v209, 96
    %v213 = vpop.permute.xlu0 %212
    %vm214 = vcmask 64512
    %v216 = vsel %vm214, %v209, 0
    %v219 = vsel %vm214, %v213, 0
    %221 = vmatprep.subr.bf16.mxu0 0
    %222 = vmatpush1.bf16.xpose.msra.mxu0 %v219
    %223 = vmatprep.subr.bf16.mxu0 0
    %224 = vmatpush1.bf16.xpose.msra.mxu0 0
    %225 = vmatprep.subr.bf16.mxu0 0
    %226 = vmatpush1.bf16.xpose.msra.mxu0 0
    %227 = vmatprep.subr.bf16.mxu0 0
    %228 = vmatpush1.bf16.xpose.msra.mxu0 0
    %229 = vmatprep.subr.bf16.mxu0 0
    %230 = vmatpush1.bf16.xpose.msra.mxu0 0
    %231 = vmatprep.subr.bf16.mxu0 0
    %232 = vmatpush1.bf16.xpose.msra.mxu0 0
    %233 = vmatprep.subr.bf16.mxu0 0
    %234 = vmatpush1.bf16.xpose.msra.mxu0 0
    %235 = vmatprep.subr.bf16.mxu0 0
    %236 = vmatpush1.bf16.xpose.msra.mxu0 0
    %237 = vmatprep.subr.bf16.mxu0 0
    %238 = vmatpush1.bf16.xpose.msra.mxu0 0
    %239 = vmatprep.subr.bf16.mxu0 0
    %240 = vmatpush1.bf16.xpose.msra.mxu0 0
    %241 = vmatprep.subr.bf16.mxu0 0
    %242 = vmatpush1.bf16.xpose.msra.mxu0 0
    %243 = vmatprep.subr.bf16.mxu0 0
    %244 = vmatpush1.bf16.xpose.msra.mxu0 0
    %245 = vmatprep.subr.bf16.mxu0 0
    %246 = vmatpush1.bf16.xpose.msra.mxu0 0
    %247 = vmatprep.subr.bf16.mxu0 0
    %248 = vmatpush1.bf16.xpose.msra.mxu0 0
    %249 = vmatprep.subr.bf16.mxu0 0
    %250 = vmatpush1.bf16.xpose.msra.mxu0 0
    %251 = vmatprep.subr.bf16.mxu0 0
    %252 = vmatpush1.bf16.xpose.msra.mxu0 0
    %253 = vmatprep.mubr.bf16.mxu0 0
    %254 = vmatmul.mubr.bf16.gmra.mrb[0].mxu0 %v216
    %v255 = vpop.f32.mrb[0].mxu0
    %v256 = vadd.f32 0.0, %v255
    %v257 = vpop.f32.mrb[0].mxu0
    %v258 = vpop.f32.mrb[0].mxu0
    %v259 = vpop.f32.mrb[0].mxu0
    %260 = vdwg.mxu0
    %262 = vrot.lane.b32.xlu0 %v210, 96
    %v263 = vpop.permute.xlu0 %262
    %v265 = vsel %vm214, %v210, 0
    %v268 = vsel %vm214, %v263, 0
    %270 = vmatprep.subr.bf16.mxu0 0
    %271 = vmatpush1.bf16.xpose.msra.mxu0 %v268
    %272 = vmatprep.subr.bf16.mxu0 0
    %273 = vmatpush1.bf16.xpose.msra.mxu0 0
    %274 = vmatprep.subr.bf16.mxu0 0
    %275 = vmatpush1.bf16.xpose.msra.mxu0 0
    %276 = vmatprep.subr.bf16.mxu0 0
    %277 = vmatpush1.bf16.xpose.msra.mxu0 0
    %278 = vmatprep.subr.bf16.mxu0 0
    %279 = vmatpush1.bf16.xpose.msra.mxu0 0
    %280 = vmatprep.subr.bf16.mxu0 0
    %281 = vmatpush1.bf16.xpose.msra.mxu0 0
    %282 = vmatprep.subr.bf16.mxu0 0
    %283 = vmatpush1.bf16.xpose.msra.mxu0 0
    %284 = vmatprep.subr.bf16.mxu0 0
    %285 = vmatpush1.bf16.xpose.msra.mxu0 0
    %286 = vmatprep.subr.bf16.mxu0 0
    %287 = vmatpush1.bf16.xpose.msra.mxu0 0
    %288 = vmatprep.subr.bf16.mxu0 0
    %289 = vmatpush1.bf16.xpose.msra.mxu0 0
    %290 = vmatprep.subr.bf16.mxu0 0
    %291 = vmatpush1.bf16.xpose.msra.mxu0 0
    %292 = vmatprep.subr.bf16.mxu0 0
    %293 = vmatpush1.bf16.xpose.msra.mxu0 0
    %294 = vmatprep.subr.bf16.mxu0 0
    %295 = vmatpush1.bf16.xpose.msra.mxu0 0
    %296 = vmatprep.subr.bf16.mxu0 0
    %297 = vmatpush1.bf16.xpose.msra.mxu0 0
    %298 = vmatprep.subr.bf16.mxu0 0
    %299 = vmatpush1.bf16.xpose.msra.mxu0 0
    %300 = vmatprep.subr.bf16.mxu0 0
    %301 = vmatpush1.bf16.xpose.msra.mxu0 0
    %302 = vmatprep.mubr.bf16.mxu0 0
    %303 = vmatmul.mubr.bf16.gmra.mrb[0].mxu0 %v265
    %v304 = vpop.f32.mrb[0].mxu0
    %v305 = vadd.f32 0.0, %v304
    %v306 = vpop.f32.mrb[0].mxu0
    %v307 = vpop.f32.mrb[0].mxu0
    %v308 = vpop.f32.mrb[0].mxu0
    %309 = vdwg.mxu0
    %v310 = vmul.f32 %v256, 0.35355338
    %v311 = vmul.f32 %v305, 0.35355338
    %v312 = vsel %vm214, %v310, -inf
    %313 = vmax.xlane.f32.xlu0 %v312
    %v314 = vpop.xlane.xlu0 %313
    %v315 = vsel %vm214, %v311, -inf
    %316 = vmax.xlane.f32.xlu0 %v315
    %v317 = vpop.xlane.xlu0 %316
    %v318 = vsub.f32 %v310, %v314
    %v319 = vsub.f32 %v311, %v317
    %v320 = vmul.f32 %v318, 1.442695
    %v321 = vpow.pop %v320
    %v322 = vmul.f32 %v319, 1.442695
    %v323 = vpow.pop %v322
    %v324 = vsel %vm214, %v321, 0.0
    %325 = vadd.xlane.f32.xlu0 %v324
    %v326 = vpop.xlane.xlu0 %325
    %v327 = vsel %vm214, %v323, 0.0
    %328 = vadd.xlane.f32.xlu0 %v327
    %v329 = vpop.xlane.xlu0 %328
    %v330 = vrcp.pop %v326
    %v331 = vrcp.pop %v329
    %v332 = vmul.f32 %v321, %v330
    %v333 = vmul.f32 %v323, %v331
    %v334 = vpack.c.bf16 %v332, %v332
    %v335 = vpack.c.bf16 %v333, %v333
    %336 = vrot.lane.b32.xlu0 %v209, 64
    %v337 = vpop.permute.xlu0 %336
    %v339 = vsel %vm214, %v334, 0
    %vm341 = vcmask 1043456
    %v343 = vsel %vm341, %v337, 0
    %345 = vmatprep.subr.bf16.mxu0 0
    %346 = vmatpush1.bf16.msra.mxu0 %v343
    %347 = vmatprep.subr.bf16.mxu0 0
    %348 = vmatpush1.bf16.msra.mxu0 0
    %349 = vmatprep.subr.bf16.mxu0 0
    %350 = vmatpush1.bf16.msra.mxu0 0
    %351 = vmatprep.subr.bf16.mxu0 0
    %352 = vmatpush1.bf16.msra.mxu0 0
    %353 = vmatprep.subr.bf16.mxu0 0
    %354 = vmatpush1.bf16.msra.mxu0 0
    %355 = vmatprep.subr.bf16.mxu0 0
    %356 = vmatpush1.bf16.msra.mxu0 0
    %357 = vmatprep.subr.bf16.mxu0 0
    %358 = vmatpush1.bf16.msra.mxu0 0
    %359 = vmatprep.subr.bf16.mxu0 0
    %360 = vmatpush1.bf16.msra.mxu0 0
    %361 = vmatprep.subr.bf16.mxu0 0
    %362 = vmatpush1.bf16.msra.mxu0 0
    %363 = vmatprep.subr.bf16.mxu0 0
    %364 = vmatpush1.bf16.msra.mxu0 0
    %365 = vmatprep.subr.bf16.mxu0 0
    %366 = vmatpush1.bf16.msra.mxu0 0
    %367 = vmatprep.subr.bf16.mxu0 0
    %368 = vmatpush1.bf16.msra.mxu0 0
    %369 = vmatprep.subr.bf16.mxu0 0
    %370 = vmatpush1.bf16.msra.mxu0 0
    %371 = vmatprep.subr.bf16.mxu0 0
    %372 = vmatpush1.bf16.msra.mxu0 0
    %373 = vmatprep.subr.bf16.mxu0 0
    %374 = vmatpush1.bf16.msra.mxu0 0
    %375 = vmatprep.subr.bf16.mxu0 0
    %376 = vmatpush1.bf16.msra.mxu0 0
    %377 = vmatprep.mubr.bf16.mxu0 0
    %378 = vmatmul.mubr.bf16.gmra.mrb[0].mxu0 %v339
    %v379 = vpop.f32.mrb[0].mxu0
    %v380 = vadd.f32 0.0, %v379
    %v381 = vpop.f32.mrb[0].mxu0
    %v382 = vpop.f32.mrb[0].mxu0
    %v383 = vpop.f32.mrb[0].mxu0
    %384 = vdwg.mxu0
    %385 = vrot.lane.b32.xlu0 %v210, 64
    %v386 = vpop.permute.xlu0 %385
    %v388 = vsel %vm214, %v335, 0
    %v391 = vsel %vm341, %v386, 0
    %393 = vmatprep.subr.bf16.mxu0 0
    %394 = vmatpush1.bf16.msra.mxu0 %v391
    %395 = vmatprep.subr.bf16.mxu0 0
    %396 = vmatpush1.bf16.msra.mxu0 0
    %397 = vmatprep.subr.bf16.mxu0 0
    %398 = vmatpush1.bf16.msra.mxu0 0
    %399 = vmatprep.subr.bf16.mxu0 0
    %400 = vmatpush1.bf16.msra.mxu0 0
    %401 = vmatprep.subr.bf16.mxu0 0
    %402 = vmatpush1.bf16.msra.mxu0 0
    %403 = vmatprep.subr.bf16.mxu0 0
    %404 = vmatpush1.bf16.msra.mxu0 0
    %405 = vmatprep.subr.bf16.mxu0 0
    %406 = vmatpush1.bf16.msra.mxu0 0
    %407 = vmatprep.subr.bf16.mxu0 0
    %408 = vmatpush1.bf16.msra.mxu0 0
    %409 = vmatprep.subr.bf16.mxu0 0
    %410 = vmatpush1.bf16.msra.mxu0 0
    %411 = vmatprep.subr.bf16.mxu0 0
    %412 = vmatpush1.bf16.msra.mxu0 0
    %413 = vmatprep.subr.bf16.mxu0 0
    %414 = vmatpush1.bf16.msra.mxu0 0
    %415 = vmatprep.subr.bf16.mxu0 0
    %416 = vmatpush1.bf16.msra.mxu0 0
    %417 = vmatprep.subr.bf16.mxu0 0
    %418 = vmatpush1.bf16.msra.mxu0 0
    %419 = vmatprep.subr.bf16.mxu0 0
    %420 = vmatpush1.bf16.msra.mxu0 0
    %421 = vmatprep.subr.bf16.mxu0 0
    %422 = vmatpush1.bf16.msra.mxu0 0
    %423 = vmatprep.subr.bf16.mxu0 0
    %424 = vmatpush1.bf16.msra.mxu0 0
    %425 = vmatprep.mubr.bf16.mxu0 0
    %426 = vmatmul.mubr.bf16.gmra.mrb[0].mxu0 %v388
    %v427 = vpop.f32.mrb[0].mxu0
    %v428 = vadd.f32 0.0, %v427
    %v429 = vpop.f32.mrb[0].mxu0
    %v430 = vpop.f32.mrb[0].mxu0
    %v431 = vpop.f32.mrb[0].mxu0
    %432 = vdwg.mxu0
    %v433 = vpack.c.bf16 %v428, %v380
    %v435 = vsel %vm214, %v433, 0
    %v438 = vsel %vm341, %v120, 0
    %440 = vmatprep.subr.bf16.mxu0 0
    %441 = vmatpush1.bf16.msra.mxu0 %v438
    %442 = vmatprep.subr.bf16.mxu0 0
    %443 = vmatpush1.bf16.msra.mxu0 0
    %444 = vmatprep.subr.bf16.mxu0 0
    %445 = vmatpush1.bf16.msra.mxu0 0
    %446 = vmatprep.subr.bf16.mxu0 0
    %447 = vmatpush1.bf16.msra.mxu0 0
    %448 = vmatprep.subr.bf16.mxu0 0
    %449 = vmatpush1.bf16.msra.mxu0 0
    %450 = vmatprep.subr.bf16.mxu0 0
    %451 = vmatpush1.bf16.msra.mxu0 0
    %452 = vmatprep.subr.bf16.mxu0 0
    %453 = vmatpush1.bf16.msra.mxu0 0
    %454 = vmatprep.subr.bf16.mxu0 0
    %455 = vmatpush1.bf16.msra.mxu0 0
    %456 = vmatprep.subr.bf16.mxu0 0
    %457 = vmatpush1.bf16.msra.mxu0 0
    %458 = vmatprep.subr.bf16.mxu0 0
    %459 = vmatpush1.bf16.msra.mxu0 0
    %460 = vmatprep.subr.bf16.mxu0 0
    %461 = vmatpush1.bf16.msra.mxu0 0
    %462 = vmatprep.subr.bf16.mxu0 0
    %463 = vmatpush1.bf16.msra.mxu0 0
    %464 = vmatprep.subr.bf16.mxu0 0
    %465 = vmatpush1.bf16.msra.mxu0 0
    %466 = vmatprep.subr.bf16.mxu0 0
    %467 = vmatpush1.bf16.msra.mxu0 0
    %468 = vmatprep.subr.bf16.mxu0 0
    %469 = vmatpush1.bf16.msra.mxu0 0
    %470 = vmatprep.subr.bf16.mxu0 0
    %471 = vmatpush1.bf16.msra.mxu0 0
    %472 = vmatprep.mubr.bf16.mxu0 0
    %473 = vmatmul.mubr.bf16.gmra.mrb[0].mxu0 %v435
    %v474 = vpop.f32.mrb[0].mxu0
    %v475 = vadd.f32 0.0, %v474
    %v476 = vpop.f32.mrb[0].mxu0
    %v477 = vpop.f32.mrb[0].mxu0
    %v478 = vadd.f32 0.0, %v477
    %v479 = vpop.f32.mrb[0].mxu0
    %480 = vdwg.mxu0
    %v481 = vadd.f32 %v208, %v475
    %v482 = vadd.f32 %v208, %v478
    %483 = vrot.lane.b32.xlu0 %v209, 120
    %v484 = vpop.permute.xlu0 %483
    %485 = vrot.lane.b32.xlu0 %v209, 88
    %v486 = vpop.permute.xlu0 %485
    %v488 = vsel %vm214, %v484, 0
    %v491 = vsel %vm214, %v486, 0
    %493 = vmatprep.subr.bf16.mxu0 0
    %494 = vmatpush1.bf16.xpose.msra.mxu0 %v491
    %495 = vmatprep.subr.bf16.mxu0 0
    %496 = vmatpush1.bf16.xpose.msra.mxu0 0
    %497 = vmatprep.subr.bf16.mxu0 0
    %498 = vmatpush1.bf16.xpose.msra.mxu0 0
    %499 = vmatprep.subr.bf16.mxu0 0
    %500 = vmatpush1.bf16.xpose.msra.mxu0 0
    %501 = vmatprep.subr.bf16.mxu0 0
    %502 = vmatpush1.bf16.xpose.msra.mxu0 0
    %503 = vmatprep.subr.bf16.mxu0 0
    %504 = vmatpush1.bf16.xpose.msra.mxu0 0
    %505 = vmatprep.subr.bf16.mxu0 0
    %506 = vmatpush1.bf16.xpose.msra.mxu0 0
    %507 = vmatprep.subr.bf16.mxu0 0
    %508 = vmatpush1.bf16.xpose.msra.mxu0 0
    %509 = vmatprep.subr.bf16.mxu0 0
    %510 = vmatpush1.bf16.xpose.msra.mxu0 0
    %511 = vmatprep.subr.bf16.mxu0 0
    %512 = vmatpush1.bf16.xpose.msra.mxu0 0
    %513 = vmatprep.subr.bf16.mxu0 0
    %514 = vmatpush1.bf16.xpose.msra.mxu0 0
    %515 = vmatprep.subr.bf16.mxu0 0
    %516 = vmatpush1.bf16.xpose.msra.mxu0 0
    %517 = vmatprep.subr.bf16.mxu0 0
    %518 = vmatpush1.bf16.xpose.msra.mxu0 0
    %519 = vmatprep.subr.bf16.mxu0 0
    %520 = vmatpush1.bf16.xpose.msra.mxu0 0
    %521 = vmatprep.subr.bf16.mxu0 0
    %522 = vmatpush1.bf16.xpose.msra.mxu0 0
    %523 = vmatprep.subr.bf16.mxu0 0
    %524 = vmatpush1.bf16.xpose.msra.mxu0 0
    %525 = vmatprep.mubr.bf16.mxu0 0
    %526 = vmatmul.mubr.bf16.gmra.mrb[0].mxu0 %v488
    %v527 = vpop.f32.mrb[0].mxu0
    %v528 = vadd.f32 0.0, %v527
    %v529 = vpop.f32.mrb[0].mxu0
    %v530 = vpop.f32.mrb[0].mxu0
    %v531 = vpop.f32.mrb[0].mxu0
    %532 = vdwg.mxu0
    %533 = vrot.lane.b32.xlu0 %v210, 120
    %v534 = vpop.permute.xlu0 %533
    %535 = vrot.lane.b32.xlu0 %v210, 88
    %v536 = vpop.permute.xlu0 %535
    %v538 = vsel %vm214, %v534, 0
    %v541 = vsel %vm214, %v536, 0
    %543 = vmatprep.subr.bf16.mxu0 0
    %544 = vmatpush1.bf16.xpose.msra.mxu0 %v541
    %545 = vmatprep.subr.bf16.mxu0 0
    %546 = vmatpush1.bf16.xpose.msra.mxu0 0
    %547 = vmatprep.subr.bf16.mxu0 0
    %548 = vmatpush1.bf16.xpose.msra.mxu0 0
    %549 = vmatprep.subr.bf16.mxu0 0
    %550 = vmatpush1.bf16.xpose.msra.mxu0 0
    %551 = vmatprep.subr.bf16.mxu0 0
    %552 = vmatpush1.bf16.xpose.msra.mxu0 0
    %553 = vmatprep.subr.bf16.mxu0 0
    %554 = vmatpush1.bf16.xpose.msra.mxu0 0
    %555 = vmatprep.subr.bf16.mxu0 0
    %556 = vmatpush1.bf16.xpose.msra.mxu0 0
    %557 = vmatprep.subr.bf16.mxu0 0
    %558 = vmatpush1.bf16.xpose.msra.mxu0 0
    %559 = vmatprep.subr.bf16.mxu0 0
    %560 = vmatpush1.bf16.xpose.msra.mxu0 0
    %561 = vmatprep.subr.bf16.mxu0 0
    %562 = vmatpush1.bf16.xpose.msra.mxu0 0
    %563 = vmatprep.subr.bf16.mxu0 0
    %564 = vmatpush1.bf16.xpose.msra.mxu0 0
    %565 = vmatprep.subr.bf16.mxu0 0
    %566 = vmatpush1.bf16.xpose.msra.mxu0 0
    %567 = vmatprep.subr.bf16.mxu0 0
    %568 = vmatpush1.bf16.xpose.msra.mxu0 0
    %569 = vmatprep.subr.bf16.mxu0 0
    %570 = vmatpush1.bf16.xpose.msra.mxu0 0
    %571 = vmatprep.subr.bf16.mxu0 0
    %572 = vmatpush1.bf16.xpose.msra.mxu0 0
    %573 = vmatprep.subr.bf16.mxu0 0
    %574 = vmatpush1.bf16.xpose.msra.mxu0 0
    %575 = vmatprep.mubr.bf16.mxu0 0
    %576 = vmatmul.mubr.bf16.gmra.mrb[0].mxu0 %v538
    %v577 = vpop.f32.mrb[0].mxu0
    %v578 = vadd.f32 0.0, %v577
    %v579 = vpop.f32.mrb[0].mxu0
    %v580 = vpop.f32.mrb[0].mxu0
    %v581 = vpop.f32.mrb[0].mxu0
    %582 = vdwg.mxu0
    %v583 = vmul.f32 %v528, 0.35355338
    %v584 = vmul.f32 %v578, 0.35355338
    %v585 = vsel %vm214, %v583, -inf
    %586 = vmax.xlane.f32.xlu0 %v585
    %v587 = vpop.xlane.xlu0 %586
    %v588 = vsel %vm214, %v584, -inf
    %589 = vmax.xlane.f32.xlu0 %v588
    %v590 = vpop.xlane.xlu0 %589
    %v591 = vsub.f32 %v583, %v587
    %v592 = vsub.f32 %v584, %v590
    %v593 = vmul.f32 %v591, 1.442695
    %v594 = vpow.pop %v593
    %v595 = vmul.f32 %v592, 1.442695
    %v596 = vpow.pop %v595
    %v597 = vsel %vm214, %v594, 0.0
    %598 = vadd.xlane.f32.xlu0 %v597
    %v599 = vpop.xlane.xlu0 %598
    %v600 = vsel %vm214, %v596, 0.0
    %601 = vadd.xlane.f32.xlu0 %v600
    %v602 = vpop.xlane.xlu0 %601
    %v603 = vrcp.pop %v599
    %v604 = vrcp.pop %v602
    %v605 = vmul.f32 %v594, %v603
    %v606 = vmul.f32 %v596, %v604
    %v607 = vpack.c.bf16 %v605, %v605
    %v608 = vpack.c.bf16 %v606, %v606
    %609 = vrot.lane.b32.xlu0 %v209, 56
    %v610 = vpop.permute.xlu0 %609
    %v612 = vsel %vm214, %v607, 0
    %v615 = vsel %vm341, %v610, 0
    %617 = vmatprep.subr.bf16.mxu0 0
    %618 = vmatpush1.bf16.msra.mxu0 %v615
    %619 = vmatprep.subr.bf16.mxu0 0
    %620 = vmatpush1.bf16.msra.mxu0 0
    %621 = vmatprep.subr.bf16.mxu0 0
    %622 = vmatpush1.bf16.msra.mxu0 0
    %623 = vmatprep.subr.bf16.mxu0 0
    %624 = vmatpush1.bf16.msra.mxu0 0
    %625 = vmatprep.subr.bf16.mxu0 0
    %626 = vmatpush1.bf16.msra.mxu0 0
    %627 = vmatprep.subr.bf16.mxu0 0
    %628 = vmatpush1.bf16.msra.mxu0 0
    %629 = vmatprep.subr.bf16.mxu0 0
    %630 = vmatpush1.bf16.msra.mxu0 0
    %631 = vmatprep.subr.bf16.mxu0 0
    %632 = vmatpush1.bf16.msra.mxu0 0
    %633 = vmatprep.subr.bf16.mxu0 0
    %634 = vmatpush1.bf16.msra.mxu0 0
    %635 = vmatprep.subr.bf16.mxu0 0
    %636 = vmatpush1.bf16.msra.mxu0 0
    %637 = vmatprep.subr.bf16.mxu0 0
    %638 = vmatpush1.bf16.msra.mxu0 0
    %639 = vmatprep.subr.bf16.mxu0 0
    %640 = vmatpush1.bf16.msra.mxu0 0
    %641 = vmatprep.subr.bf16.mxu0 0
    %642 = vmatpush1.bf16.msra.mxu0 0
    %643 = vmatprep.subr.bf16.mxu0 0
    %644 = vmatpush1.bf16.msra.mxu0 0
    %645 = vmatprep.subr.bf16.mxu0 0
    %646 = vmatpush1.bf16.msra.mxu0 0
    %647 = vmatprep.subr.bf16.mxu0 0
    %648 = vmatpush1.bf16.msra.mxu0 0
    %649 = vmatprep.mubr.bf16.mxu0 0
    %650 = vmatmul.mubr.bf16.gmra.mrb[0].mxu0 %v612
    %v651 = vpop.f32.mrb[0].mxu0
    %v652 = vadd.f32 0.0, %v651
    %v653 = vpop.f32.mrb[0].mxu0
    %v654 = vpop.f32.mrb[0].mxu0
    %v655 = vpop.f32.mrb[0].mxu0
    %656 = vdwg.mxu0
    %657 = vrot.lane.b32.xlu0 %v210, 56
    %v658 = vpop.permute.xlu0 %657
    %v660 = vsel %vm214, %v608, 0
    %v663 = vsel %vm341, %v658, 0
    %665 = vmatprep.subr.bf16.mxu0 0
    %666 = vmatpush1.bf16.msra.mxu0 %v663
    %667 = vmatprep.subr.bf16.mxu0 0
    %668 = vmatpush1.bf16.msra.mxu0 0
    %669 = vmatprep.subr.bf16.mxu0 0
    %670 = vmatpush1.bf16.msra.mxu0 0
    %671 = vmatprep.subr.bf16.mxu0 0
    %672 = vmatpush1.bf16.msra.mxu0 0
    %673 = vmatprep.subr.bf16.mxu0 0
    %674 = vmatpush1.bf16.msra.mxu0 0
    %675 = vmatprep.subr.bf16.mxu0 0
    %676 = vmatpush1.bf16.msra.mxu0 0
    %677 = vmatprep.subr.bf16.mxu0 0
    %678 = vmatpush1.bf16.msra.mxu0 0
    %679 = vmatprep.subr.bf16.mxu0 0
    %680 = vmatpush1.bf16.msra.mxu0 0
    %681 = vmatprep.subr.bf16.mxu0 0
    %682 = vmatpush1.bf16.msra.mxu0 0
    %683 = vmatprep.subr.bf16.mxu0 0
    %684 = vmatpush1.bf16.msra.mxu0 0
    %685 = vmatprep.subr.bf16.mxu0 0
    %686 = vmatpush1.bf16.msra.mxu0 0
    %687 = vmatprep.subr.bf16.mxu0 0
    %688 = vmatpush1.bf16.msra.mxu0 0
    %689 = vmatprep.subr.bf16.mxu0 0
    %690 = vmatpush1.bf16.msra.mxu0 0
    %691 = vmatprep.subr.bf16.mxu0 0
    %692 = vmatpush1.bf16.msra.mxu0 0
    %693 = vmatprep.subr.bf16.mxu0 0
    %694 = vmatpush1.bf16.msra.mxu0 0
    %695 = vmatprep.subr.bf16.mxu0 0
    %696 = vmatpush1.bf16.msra.mxu0 0
    %697 = vmatprep.mubr.bf16.mxu0 0
    %698 = vmatmul.mubr.bf16.gmra.mrb[0].mxu0 %v660
    %v699 = vpop.f32.mrb[0].mxu0
    %v700 = vadd.f32 0.0, %v699
    %v701 = vpop.f32.mrb[0].mxu0
    %v702 = vpop.f32.mrb[0].mxu0
    %v703 = vpop.f32.mrb[0].mxu0
    %704 = vdwg.mxu0
    %v705 = vpack.c.bf16 %v700, %v652
    %v707 = vsel %vm214, %v705, 0
    %v710 = vsel %vm341, %v121, 0
    %712 = vmatprep.subr.bf16.mxu0 0
    %713 = vmatpush1.bf16.msra.mxu0 %v710
    %714 = vmatprep.subr.bf16.mxu0 0
    %715 = vmatpush1.bf16.msra.mxu0 0
    %716 = vmatprep.subr.bf16.mxu0 0
    %717 = vmatpush1.bf16.msra.mxu0 0
    %718 = vmatprep.subr.bf16.mxu0 0
    %719 = vmatpush1.bf16.msra.mxu0 0
    %720 = vmatprep.subr.bf16.mxu0 0
    %721 = vmatpush1.bf16.msra.mxu0 0
    %722 = vmatprep.subr.bf16.mxu0 0
    %723 = vmatpush1.bf16.msra.mxu0 0
    %724 = vmatprep.subr.bf16.mxu0 0
    %725 = vmatpush1.bf16.msra.mxu0 0
    %726 = vmatprep.subr.bf16.mxu0 0
    %727 = vmatpush1.bf16.msra.mxu0 0
    %728 = vmatprep.subr.bf16.mxu0 0
    %729 = vmatpush1.bf16.msra.mxu0 0
    %730 = vmatprep.subr.bf16.mxu0 0
    %731 = vmatpush1.bf16.msra.mxu0 0
    %732 = vmatprep.subr.bf16.mxu0 0
    %733 = vmatpush1.bf16.msra.mxu0 0
    %734 = vmatprep.subr.bf16.mxu0 0
    %735 = vmatpush1.bf16.msra.mxu0 0
    %736 = vmatprep.subr.bf16.mxu0 0
    %737 = vmatpush1.bf16.msra.mxu0 0
    %738 = vmatprep.subr.bf16.mxu0 0
    %739 = vmatpush1.bf16.msra.mxu0 0
    %740 = vmatprep.subr.bf16.mxu0 0
    %741 = vmatpush1.bf16.msra.mxu0 0
    %742 = vmatprep.subr.bf16.mxu0 0
    %743 = vmatpush1.bf16.msra.mxu0 0
    %744 = vmatprep.mubr.bf16.mxu0 0
    %745 = vmatmul.mubr.bf16.gmra.mrb[0].mxu0 %v707
    %v746 = vpop.f32.mrb[0].mxu0
    %v747 = vadd.f32 0.0, %v746
    %v748 = vpop.f32.mrb[0].mxu0
    %v749 = vpop.f32.mrb[0].mxu0
    %v750 = vadd.f32 0.0, %v749
    %v751 = vpop.f32.mrb[0].mxu0
    %752 = vdwg.mxu0
    %v753 = vadd.f32 %v481, %v747
    %v754 = vadd.f32 %v482, %v750
    %755 = vrot.lane.b32.xlu0 %v209, 112
    %v756 = vpop.permute.xlu0 %755
    %757 = vrot.lane.b32.xlu0 %v209, 80
    %v758 = vpop.permute.xlu0 %757
    %v760 = vsel %vm214, %v756, 0
    %v763 = vsel %vm214, %v758, 0
    %765 = vmatprep.subr.bf16.mxu0 0
    %766 = vmatpush1.bf16.xpose.msra.mxu0 %v763
    %767 = vmatprep.subr.bf16.mxu0 0
    %768 = vmatpush1.bf16.xpose.msra.mxu0 0
    %769 = vmatprep.subr.bf16.mxu0 0
    %770 = vmatpush1.bf16.xpose.msra.mxu0 0
    %771 = vmatprep.subr.bf16.mxu0 0
    %772 = vmatpush1.bf16.xpose.msra.mxu0 0
    %773 = vmatprep.subr.bf16.mxu0 0
    %774 = vmatpush1.bf16.xpose.msra.mxu0 0
    %775 = vmatprep.subr.bf16.mxu0 0
    %776 = vmatpush1.bf16.xpose.msra.mxu0 0
    %777 = vmatprep.subr.bf16.mxu0 0
    %778 = vmatpush1.bf16.xpose.msra.mxu0 0
    %779 = vmatprep.subr.bf16.mxu0 0
    %780 = vmatpush1.bf16.xpose.msra.mxu0 0
    %781 = vmatprep.subr.bf16.mxu0 0
    %782 = vmatpush1.bf16.xpose.msra.mxu0 0
    %783 = vmatprep.subr.bf16.mxu0 0
    %784 = vmatpush1.bf16.xpose.msra.mxu0 0
    %785 = vmatprep.subr.bf16.mxu0 0
    %786 = vmatpush1.bf16.xpose.msra.mxu0 0
    %787 = vmatprep.subr.bf16.mxu0 0
    %788 = vmatpush1.bf16.xpose.msra.mxu0 0
    %789 = vmatprep.subr.bf16.mxu0 0
    %790 = vmatpush1.bf16.xpose.msra.mxu0 0
    %791 = vmatprep.subr.bf16.mxu0 0
    %792 = vmatpush1.bf16.xpose.msra.mxu0 0
    %793 = vmatprep.subr.bf16.mxu0 0
    %794 = vmatpush1.bf16.xpose.msra.mxu0 0
    %795 = vmatprep.subr.bf16.mxu0 0
    %796 = vmatpush1.bf16.xpose.msra.mxu0 0
    %797 = vmatprep.mubr.bf16.mxu0 0
    %798 = vmatmul.mubr.bf16.gmra.mrb[0].mxu0 %v760
    %v799 = vpop.f32.mrb[0].mxu0
    %v800 = vadd.f32 0.0, %v799
    %v801 = vpop.f32.mrb[0].mxu0
    %v802 = vpop.f32.mrb[0].mxu0
    %v803 = vpop.f32.mrb[0].mxu0
    %804 = vdwg.mxu0
    %805 = vrot.lane.b32.xlu0 %v210, 112
    %v806 = vpop.permute.xlu0 %805
    %807 = vrot.lane.b32.xlu0 %v210, 80
    %v808 = vpop.permute.xlu0 %807
    %v810 = vsel %vm214, %v806, 0
    %v813 = vsel %vm214, %v808, 0
    %815 = vmatprep.subr.bf16.mxu0 0
    %816 = vmatpush1.bf16.xpose.msra.mxu0 %v813
    %817 = vmatprep.subr.bf16.mxu0 0
    %818 = vmatpush1.bf16.xpose.msra.mxu0 0
    %819 = vmatprep.subr.bf16.mxu0 0
    %820 = vmatpush1.bf16.xpose.msra.mxu0 0
    %821 = vmatprep.subr.bf16.mxu0 0
    %822 = vmatpush1.bf16.xpose.msra.mxu0 0
    %823 = vmatprep.subr.bf16.mxu0 0
    %824 = vmatpush1.bf16.xpose.msra.mxu0 0
    %825 = vmatprep.subr.bf16.mxu0 0
    %826 = vmatpush1.bf16.xpose.msra.mxu0 0
    %827 = vmatprep.subr.bf16.mxu0 0
    %828 = vmatpush1.bf16.xpose.msra.mxu0 0
    %829 = vmatprep.subr.bf16.mxu0 0
    %830 = vmatpush1.bf16.xpose.msra.mxu0 0
    %831 = vmatprep.subr.bf16.mxu0 0
    %832 = vmatpush1.bf16.xpose.msra.mxu0 0
    %833 = vmatprep.subr.bf16.mxu0 0
    %834 = vmatpush1.bf16.xpose.msra.mxu0 0
    %835 = vmatprep.subr.bf16.mxu0 0
    %836 = vmatpush1.bf16.xpose.msra.mxu0 0
    %837 = vmatprep.subr.bf16.mxu0 0
    %838 = vmatpush1.bf16.xpose.msra.mxu0 0
    %839 = vmatprep.subr.bf16.mxu0 0
    %840 = vmatpush1.bf16.xpose.msra.mxu0 0
    %841 = vmatprep.subr.bf16.mxu0 0
    %842 = vmatpush1.bf16.xpose.msra.mxu0 0
    %843 = vmatprep.subr.bf16.mxu0 0
    %844 = vmatpush1.bf16.xpose.msra.mxu0 0
    %845 = vmatprep.subr.bf16.mxu0 0
    %846 = vmatpush1.bf16.xpose.msra.mxu0 0
    %847 = vmatprep.mubr.bf16.mxu0 0
    %848 = vmatmul.mubr.bf16.gmra.mrb[0].mxu0 %v810
    %v849 = vpop.f32.mrb[0].mxu0
    %v850 = vadd.f32 0.0, %v849
    %v851 = vpop.f32.mrb[0].mxu0
    %v852 = vpop.f32.mrb[0].mxu0
    %v853 = vpop.f32.mrb[0].mxu0
    %854 = vdwg.mxu0
    %v855 = vmul.f32 %v800, 0.35355338
    %v856 = vmul.f32 %v850, 0.35355338
    %v857 = vsel %vm214, %v855, -inf
    %858 = vmax.xlane.f32.xlu0 %v857
    %v859 = vpop.xlane.xlu0 %858
    %v860 = vsel %vm214, %v856, -inf
    %861 = vmax.xlane.f32.xlu0 %v860
    %v862 = vpop.xlane.xlu0 %861
    %v863 = vsub.f32 %v855, %v859
    %v864 = vsub.f32 %v856, %v862
    %v865 = vmul.f32 %v863, 1.442695
    %v866 = vpow.pop %v865
    %v867 = vmul.f32 %v864, 1.442695
    %v868 = vpow.pop %v867
    %v869 = vsel %vm214, %v866, 0.0
    %870 = vadd.xlane.f32.xlu0 %v869
    %v871 = vpop.xlane.xlu0 %870
    %v872 = vsel %vm214, %v868, 0.0
    %873 = vadd.xlane.f32.xlu0 %v872
    %v874 = vpop.xlane.xlu0 %873
    %v875 = vrcp.pop %v871
    %v876 = vrcp.pop %v874
    %v877 = vmul.f32 %v866, %v875
    %v878 = vmul.f32 %v868, %v876
    %v879 = vpack.c.bf16 %v877, %v877
    %v880 = vpack.c.bf16 %v878, %v878
    %881 = vrot.lane.b32.xlu0 %v209, 48
    %v882 = vpop.permute.xlu0 %881
    %v884 = vsel %vm214, %v879, 0
    %v887 = vsel %vm341, %v882, 0
    %889 = vmatprep.subr.bf16.mxu0 0
    %890 = vmatpush1.bf16.msra.mxu0 %v887
    %891 = vmatprep.subr.bf16.mxu0 0
    %892 = vmatpush1.bf16.msra.mxu0 0
    %893 = vmatprep.subr.bf16.mxu0 0
    %894 = vmatpush1.bf16.msra.mxu0 0
    %895 = vmatprep.subr.bf16.mxu0 0
    %896 = vmatpush1.bf16.msra.mxu0 0
    %897 = vmatprep.subr.bf16.mxu0 0
    %898 = vmatpush1.bf16.msra.mxu0 0
    %899 = vmatprep.subr.bf16.mxu0 0
    %900 = vmatpush1.bf16.msra.mxu0 0
    %901 = vmatprep.subr.bf16.mxu0 0
    %902 = vmatpush1.bf16.msra.mxu0 0
    %903 = vmatprep.subr.bf16.mxu0 0
    %904 = vmatpush1.bf16.msra.mxu0 0
    %905 = vmatprep.subr.bf16.mxu0 0
    %906 = vmatpush1.bf16.msra.mxu0 0
    %907 = vmatprep.subr.bf16.mxu0 0
    %908 = vmatpush1.bf16.msra.mxu0 0
    %909 = vmatprep.subr.bf16.mxu0 0
    %910 = vmatpush1.bf16.msra.mxu0 0
    %911 = vmatprep.subr.bf16.mxu0 0
    %912 = vmatpush1.bf16.msra.mxu0 0
    %913 = vmatprep.subr.bf16.mxu0 0
    %914 = vmatpush1.bf16.msra.mxu0 0
    %915 = vmatprep.subr.bf16.mxu0 0
    %916 = vmatpush1.bf16.msra.mxu0 0
    %917 = vmatprep.subr.bf16.mxu0 0
    %918 = vmatpush1.bf16.msra.mxu0 0
    %919 = vmatprep.subr.bf16.mxu0 0
    %920 = vmatpush1.bf16.msra.mxu0 0
    %921 = vmatprep.mubr.bf16.mxu0 0
    %922 = vmatmul.mubr.bf16.gmra.mrb[0].mxu0 %v884
    %v923 = vpop.f32.mrb[0].mxu0
    %v924 = vadd.f32 0.0, %v923
    %v925 = vpop.f32.mrb[0].mxu0
    %v926 = vpop.f32.mrb[0].mxu0
    %v927 = vpop.f32.mrb[0].mxu0
    %928 = vdwg.mxu0
    %929 = vrot.lane.b32.xlu0 %v210, 48
    %v930 = vpop.permute.xlu0 %929
    %v932 = vsel %vm214, %v880, 0
    %v935 = vsel %vm341, %v930, 0
    %937 = vmatprep.subr.bf16.mxu0 0
    %938 = vmatpush1.bf16.msra.mxu0 %v935
    %939 = vmatprep.subr.bf16.mxu0 0
    %940 = vmatpush1.bf16.msra.mxu0 0
    %941 = vmatprep.subr.bf16.mxu0 0
    %942 = vmatpush1.bf16.msra.mxu0 0
    %943 = vmatprep.subr.bf16.mxu0 0
    %944 = vmatpush1.bf16.msra.mxu0 0
    %945 = vmatprep.subr.bf16.mxu0 0
    %946 = vmatpush1.bf16.msra.mxu0 0
    %947 = vmatprep.subr.bf16.mxu0 0
    %948 = vmatpush1.bf16.msra.mxu0 0
    %949 = vmatprep.subr.bf16.mxu0 0
    %950 = vmatpush1.bf16.msra.mxu0 0
    %951 = vmatprep.subr.bf16.mxu0 0
    %952 = vmatpush1.bf16.msra.mxu0 0
    %953 = vmatprep.subr.bf16.mxu0 0
    %954 = vmatpush1.bf16.msra.mxu0 0
    %955 = vmatprep.subr.bf16.mxu0 0
    %956 = vmatpush1.bf16.msra.mxu0 0
    %957 = vmatprep.subr.bf16.mxu0 0
    %958 = vmatpush1.bf16.msra.mxu0 0
    %959 = vmatprep.subr.bf16.mxu0 0
    %960 = vmatpush1.bf16.msra.mxu0 0
    %961 = vmatprep.subr.bf16.mxu0 0
    %962 = vmatpush1.bf16.msra.mxu0 0
    %963 = vmatprep.subr.bf16.mxu0 0
    %964 = vmatpush1.bf16.msra.mxu0 0
    %965 = vmatprep.subr.bf16.mxu0 0
    %966 = vmatpush1.bf16.msra.mxu0 0
    %967 = vmatprep.subr.bf16.mxu0 0
    %968 = vmatpush1.bf16.msra.mxu0 0
    %969 = vmatprep.mubr.bf16.mxu0 0
    %970 = vmatmul.mubr.bf16.gmra.mrb[0].mxu0 %v932
    %v971 = vpop.f32.mrb[0].mxu0
    %v972 = vadd.f32 0.0, %v971
    %v973 = vpop.f32.mrb[0].mxu0
    %v974 = vpop.f32.mrb[0].mxu0
    %v975 = vpop.f32.mrb[0].mxu0
    %976 = vdwg.mxu0
    %v977 = vpack.c.bf16 %v972, %v924
    %v979 = vsel %vm214, %v977, 0
    %v982 = vsel %vm341, %v122, 0
    %984 = vmatprep.subr.bf16.mxu0 0
    %985 = vmatpush1.bf16.msra.mxu0 %v982
    %986 = vmatprep.subr.bf16.mxu0 0
    %987 = vmatpush1.bf16.msra.mxu0 0
    %988 = vmatprep.subr.bf16.mxu0 0
    %989 = vmatpush1.bf16.msra.mxu0 0
    %990 = vmatprep.subr.bf16.mxu0 0
    %991 = vmatpush1.bf16.msra.mxu0 0
    %992 = vmatprep.subr.bf16.mxu0 0
    %993 = vmatpush1.bf16.msra.mxu0 0
    %994 = vmatprep.subr.bf16.mxu0 0
    %995 = vmatpush1.bf16.msra.mxu0 0
    %996 = vmatprep.subr.bf16.mxu0 0
    %997 = vmatpush1.bf16.msra.mxu0 0
    %998 = vmatprep.subr.bf16.mxu0 0
    %999 = vmatpush1.bf16.msra.mxu0 0
    %1000 = vmatprep.subr.bf16.mxu0 0
    %1001 = vmatpush1.bf16.msra.mxu0 0
    %1002 = vmatprep.subr.bf16.mxu0 0
    %1003 = vmatpush1.bf16.msra.mxu0 0
    %1004 = vmatprep.subr.bf16.mxu0 0
    %1005 = vmatpush1.bf16.msra.mxu0 0
    %1006 = vmatprep.subr.bf16.mxu0 0
    %1007 = vmatpush1.bf16.msra.mxu0 0
    %1008 = vmatprep.subr.bf16.mxu0 0
    %1009 = vmatpush1.bf16.msra.mxu0 0
    %1010 = vmatprep.subr.bf16.mxu0 0
    %1011 = vmatpush1.bf16.msra.mxu0 0
    %1012 = vmatprep.subr.bf16.mxu0 0
    %1013 = vmatpush1.bf16.msra.mxu0 0
    %1014 = vmatprep.subr.bf16.mxu0 0
    %1015 = vmatpush1.bf16.msra.mxu0 0
    %1016 = vmatprep.mubr.bf16.mxu0 0
    %1017 = vmatmul.mubr.bf16.gmra.mrb[0].mxu0 %v979
    %v1018 = vpop.f32.mrb[0].mxu0
    %v1019 = vadd.f32 0.0, %v1018
    %v1020 = vpop.f32.mrb[0].mxu0
    %v1021 = vpop.f32.mrb[0].mxu0
    %v1022 = vadd.f32 0.0, %v1021
    %v1023 = vpop.f32.mrb[0].mxu0
    %1024 = vdwg.mxu0
    %v1025 = vadd.f32 %v753, %v1019
    %v1026 = vadd.f32 %v754, %v1022
    %1027 = vrot.lane.b32.xlu0 %v209, 104
    %v1028 = vpop.permute.xlu0 %1027
    %1029 = vrot.lane.b32.xlu0 %v209, 72
    %v1030 = vpop.permute.xlu0 %1029
    %v1032 = vsel %vm214, %v1028, 0
    %v1035 = vsel %vm214, %v1030, 0
    %1037 = vmatprep.subr.bf16.mxu0 0
    %1038 = vmatpush1.bf16.xpose.msra.mxu0 %v1035
    %1039 = vmatprep.subr.bf16.mxu0 0
    %1040 = vmatpush1.bf16.xpose.msra.mxu0 0
    %1041 = vmatprep.subr.bf16.mxu0 0
    %1042 = vmatpush1.bf16.xpose.msra.mxu0 0
    %1043 = vmatprep.subr.bf16.mxu0 0
    %1044 = vmatpush1.bf16.xpose.msra.mxu0 0
    %1045 = vmatprep.subr.bf16.mxu0 0
    %1046 = vmatpush1.bf16.xpose.msra.mxu0 0
    %1047 = vmatprep.subr.bf16.mxu0 0
    %1048 = vmatpush1.bf16.xpose.msra.mxu0 0
    %1049 = vmatprep.subr.bf16.mxu0 0
    %1050 = vmatpush1.bf16.xpose.msra.mxu0 0
    %1051 = vmatprep.subr.bf16.mxu0 0
    %1052 = vmatpush1.bf16.xpose.msra.mxu0 0
    %1053 = vmatprep.subr.bf16.mxu0 0
    %1054 = vmatpush1.bf16.xpose.msra.mxu0 0
    %1055 = vmatprep.subr.bf16.mxu0 0
    %1056 = vmatpush1.bf16.xpose.msra.mxu0 0
    %1057 = vmatprep.subr.bf16.mxu0 0
    %1058 = vmatpush1.bf16.xpose.msra.mxu0 0
    %1059 = vmatprep.subr.bf16.mxu0 0
    %1060 = vmatpush1.bf16.xpose.msra.mxu0 0
    %1061 = vmatprep.subr.bf16.mxu0 0
    %1062 = vmatpush1.bf16.xpose.msra.mxu0 0
    %1063 = vmatprep.subr.bf16.mxu0 0
    %1064 = vmatpush1.bf16.xpose.msra.mxu0 0
    %1065 = vmatprep.subr.bf16.mxu0 0
    %1066 = vmatpush1.bf16.xpose.msra.mxu0 0
    %1067 = vmatprep.subr.bf16.mxu0 0
    %1068 = vmatpush1.bf16.xpose.msra.mxu0 0
    %1069 = vmatprep.mubr.bf16.mxu0 0
    %1070 = vmatmul.mubr.bf16.gmra.mrb[0].mxu0 %v1032
    %v1071 = vpop.f32.mrb[0].mxu0
    %v1072 = vadd.f32 0.0, %v1071
    %v1073 = vpop.f32.mrb[0].mxu0
    %v1074 = vpop.f32.mrb[0].mxu0
    %v1075 = vpop.f32.mrb[0].mxu0
    %1076 = vdwg.mxu0
    %1077 = vrot.lane.b32.xlu0 %v210, 104
    %v1078 = vpop.permute.xlu0 %1077
    %1079 = vrot.lane.b32.xlu0 %v210, 72
    %v1080 = vpop.permute.xlu0 %1079
    %v1082 = vsel %vm214, %v1078, 0
    %v1085 = vsel %vm214, %v1080, 0
    %1087 = vmatprep.subr.bf16.mxu0 0
    %1088 = vmatpush1.bf16.xpose.msra.mxu0 %v1085
    %1089 = vmatprep.subr.bf16.mxu0 0
    %1090 = vmatpush1.bf16.xpose.msra.mxu0 0
    %1091 = vmatprep.subr.bf16.mxu0 0
    %1092 = vmatpush1.bf16.xpose.msra.mxu0 0
    %1093 = vmatprep.subr.bf16.mxu0 0
    %1094 = vmatpush1.bf16.xpose.msra.mxu0 0
    %1095 = vmatprep.subr.bf16.mxu0 0
    %1096 = vmatpush1.bf16.xpose.msra.mxu0 0
    %1097 = vmatprep.subr.bf16.mxu0 0
    %1098 = vmatpush1.bf16.xpose.msra.mxu0 0
    %1099 = vmatprep.subr.bf16.mxu0 0
    %1100 = vmatpush1.bf16.xpose.msra.mxu0 0
    %1101 = vmatprep.subr.bf16.mxu0 0
    %1102 = vmatpush1.bf16.xpose.msra.mxu0 0
    %1103 = vmatprep.subr.bf16.mxu0 0
    %1104 = vmatpush1.bf16.xpose.msra.mxu0 0
    %1105 = vmatprep.subr.bf16.mxu0 0
    %1106 = vmatpush1.bf16.xpose.msra.mxu0 0
    %1107 = vmatprep.subr.bf16.mxu0 0
    %1108 = vmatpush1.bf16.xpose.msra.mxu0 0
    %1109 = vmatprep.subr.bf16.mxu0 0
    %1110 = vmatpush1.bf16.xpose.msra.mxu0 0
    %1111 = vmatprep.subr.bf16.mxu0 0
    %1112 = vmatpush1.bf16.xpose.msra.mxu0 0
    %1113 = vmatprep.subr.bf16.mxu0 0
    %1114 = vmatpush1.bf16.xpose.msra.mxu0 0
    %1115 = vmatprep.subr.bf16.mxu0 0
    %1116 = vmatpush1.bf16.xpose.msra.mxu0 0
    %1117 = vmatprep.subr.bf16.mxu0 0
    %1118 = vmatpush1.bf16.xpose.msra.mxu0 0
    %1119 = vmatprep.mubr.bf16.mxu0 0
    %1120 = vmatmul.mubr.bf16.gmra.mrb[0].mxu0 %v1082
    %v1121 = vpop.f32.mrb[0].mxu0
    %v1122 = vadd.f32 0.0, %v1121
    %v1123 = vpop.f32.mrb[0].mxu0
    %v1124 = vpop.f32.mrb[0].mxu0
    %v1125 = vpop.f32.mrb[0].mxu0
    %1126 = vdwg.mxu0
    %v1127 = vmul.f32 %v1072, 0.35355338
    %v1128 = vmul.f32 %v1122, 0.35355338
    %v1129 = vsel %vm214, %v1127, -inf
    %1130 = vmax.xlane.f32.xlu0 %v1129
    %v1131 = vpop.xlane.xlu0 %1130
    %v1132 = vsel %vm214, %v1128, -inf
    %1133 = vmax.xlane.f32.xlu0 %v1132
    %v1134 = vpop.xlane.xlu0 %1133
    %v1135 = vsub.f32 %v1127, %v1131
    %v1136 = vsub.f32 %v1128, %v1134
    %v1137 = vmul.f32 %v1135, 1.442695
    %v1138 = vpow.pop %v1137
    %v1139 = vmul.f32 %v1136, 1.442695
    %v1140 = vpow.pop %v1139
    %v1141 = vsel %vm214, %v1138, 0.0
    %1142 = vadd.xlane.f32.xlu0 %v1141
    %v1143 = vpop.xlane.xlu0 %1142
    %v1144 = vsel %vm214, %v1140, 0.0
    %1145 = vadd.xlane.f32.xlu0 %v1144
    %v1146 = vpop.xlane.xlu0 %1145
    %v1147 = vrcp.pop %v1143
    %v1148 = vrcp.pop %v1146
    %v1149 = vmul.f32 %v1138, %v1147
    %v1150 = vmul.f32 %v1140, %v1148
    %v1151 = vpack.c.bf16 %v1149, %v1149
    %v1152 = vpack.c.bf16 %v1150, %v1150
    %1153 = vrot.lane.b32.xlu0 %v209, 40
    %v1154 = vpop.permute.xlu0 %1153
    %v1156 = vsel %vm214, %v1151, 0
    %v1159 = vsel %vm341, %v1154, 0
    %1161 = vmatprep.subr.bf16.mxu0 0
    %1162 = vmatpush1.bf16.msra.mxu0 %v1159
    %1163 = vmatprep.subr.bf16.mxu0 0
    %1164 = vmatpush1.bf16.msra.mxu0 0
    %1165 = vmatprep.subr.bf16.mxu0 0
    %1166 = vmatpush1.bf16.msra.mxu0 0
    %1167 = vmatprep.subr.bf16.mxu0 0
    %1168 = vmatpush1.bf16.msra.mxu0 0
    %1169 = vmatprep.subr.bf16.mxu0 0
    %1170 = vmatpush1.bf16.msra.mxu0 0
    %1171 = vmatprep.subr.bf16.mxu0 0
    %1172 = vmatpush1.bf16.msra.mxu0 0
    %1173 = vmatprep.subr.bf16.mxu0 0
    %1174 = vmatpush1.bf16.msra.mxu0 0
    %1175 = vmatprep.subr.bf16.mxu0 0
    %1176 = vmatpush1.bf16.msra.mxu0 0
    %1177 = vmatprep.subr.bf16.mxu0 0
    %1178 = vmatpush1.bf16.msra.mxu0 0
    %1179 = vmatprep.subr.bf16.mxu0 0
    %1180 = vmatpush1.bf16.msra.mxu0 0
    %1181 = vmatprep.subr.bf16.mxu0 0
    %1182 = vmatpush1.bf16.msra.mxu0 0
    %1183 = vmatprep.subr.bf16.mxu0 0
    %1184 = vmatpush1.bf16.msra.mxu0 0
    %1185 = vmatprep.subr.bf16.mxu0 0
    %1186 = vmatpush1.bf16.msra.mxu0 0
    %1187 = vmatprep.subr.bf16.mxu0 0
    %1188 = vmatpush1.bf16.msra.mxu0 0
    %1189 = vmatprep.subr.bf16.mxu0 0
    %1190 = vmatpush1.bf16.msra.mxu0 0
    %1191 = vmatprep.subr.bf16.mxu0 0
    %1192 = vmatpush1.bf16.msra.mxu0 0
    %1193 = vmatprep.mubr.bf16.mxu0 0
    %1194 = vmatmul.mubr.bf16.gmra.mrb[0].mxu0 %v1156
    %v1195 = vpop.f32.mrb[0].mxu0
    %v1196 = vadd.f32 0.0, %v1195
    %v1197 = vpop.f32.mrb[0].mxu0
    %v1198 = vpop.f32.mrb[0].mxu0
    %v1199 = vpop.f32.mrb[0].mxu0
    %1200 = vdwg.mxu0
    %1201 = vrot.lane.b32.xlu0 %v210, 40
    %v1202 = vpop.permute.xlu0 %1201
    %v1204 = vsel %vm214, %v1152, 0
    %v1207 = vsel %vm341, %v1202, 0
    %1209 = vmatprep.subr.bf16.mxu0 0
    %1210 = vmatpush1.bf16.msra.mxu0 %v1207
    %1211 = vmatprep.subr.bf16.mxu0 0
    %1212 = vmatpush1.bf16.msra.mxu0 0
    %1213 = vmatprep.subr.bf16.mxu0 0
    %1214 = vmatpush1.bf16.msra.mxu0 0
    %1215 = vmatprep.subr.bf16.mxu0 0
    %1216 = vmatpush1.bf16.msra.mxu0 0
    %1217 = vmatprep.subr.bf16.mxu0 0
    %1218 = vmatpush1.bf16.msra.mxu0 0
    %1219 = vmatprep.subr.bf16.mxu0 0
    %1220 = vmatpush1.bf16.msra.mxu0 0
    %1221 = vmatprep.subr.bf16.mxu0 0
    %1222 = vmatpush1.bf16.msra.mxu0 0
    %1223 = vmatprep.subr.bf16.mxu0 0
    %1224 = vmatpush1.bf16.msra.mxu0 0
    %1225 = vmatprep.subr.bf16.mxu0 0
    %1226 = vmatpush1.bf16.msra.mxu0 0
    %1227 = vmatprep.subr.bf16.mxu0 0
    %1228 = vmatpush1.bf16.msra.mxu0 0
    %1229 = vmatprep.subr.bf16.mxu0 0
    %1230 = vmatpush1.bf16.msra.mxu0 0
    %1231 = vmatprep.subr.bf16.mxu0 0
    %1232 = vmatpush1.bf16.msra.mxu0 0
    %1233 = vmatprep.subr.bf16.mxu0 0
    %1234 = vmatpush1.bf16.msra.mxu0 0
    %1235 = vmatprep.subr.bf16.mxu0 0
    %1236 = vmatpush1.bf16.msra.mxu0 0
    %1237 = vmatprep.subr.bf16.mxu0 0
    %1238 = vmatpush1.bf16.msra.mxu0 0
    %1239 = vmatprep.subr.bf16.mxu0 0
    %1240 = vmatpush1.bf16.msra.mxu0 0
    %1241 = vmatprep.mubr.bf16.mxu0 0
    %1242 = vmatmul.mubr.bf16.gmra.mrb[0].mxu0 %v1204
    %v1243 = vpop.f32.mrb[0].mxu0
    %v1244 = vadd.f32 0.0, %v1243
    %v1245 = vpop.f32.mrb[0].mxu0
    %v1246 = vpop.f32.mrb[0].mxu0
    %v1247 = vpop.f32.mrb[0].mxu0
    %1248 = vdwg.mxu0
    %v1249 = vpack.c.bf16 %v1244, %v1196
    %v1251 = vsel %vm214, %v1249, 0
    %v1254 = vsel %vm341, %v123, 0
    %1256 = vmatprep.subr.bf16.mxu0 0
    %1257 = vmatpush1.bf16.msra.mxu0 %v1254
    %1258 = vmatprep.subr.bf16.mxu0 0
    %1259 = vmatpush1.bf16.msra.mxu0 0
    %1260 = vmatprep.subr.bf16.mxu0 0
    %1261 = vmatpush1.bf16.msra.mxu0 0
    %1262 = vmatprep.subr.bf16.mxu0 0
    %1263 = vmatpush1.bf16.msra.mxu0 0
    %1264 = vmatprep.subr.bf16.mxu0 0
    %1265 = vmatpush1.bf16.msra.mxu0 0
    %1266 = vmatprep.subr.bf16.mxu0 0
    %1267 = vmatpush1.bf16.msra.mxu0 0
    %1268 = vmatprep.subr.bf16.mxu0 0
    %1269 = vmatpush1.bf16.msra.mxu0 0
    %1270 = vmatprep.subr.bf16.mxu0 0
    %1271 = vmatpush1.bf16.msra.mxu0 0
    %1272 = vmatprep.subr.bf16.mxu0 0
    %1273 = vmatpush1.bf16.msra.mxu0 0
    %1274 = vmatprep.subr.bf16.mxu0 0
    %1275 = vmatpush1.bf16.msra.mxu0 0
    %1276 = vmatprep.subr.bf16.mxu0 0
    %1277 = vmatpush1.bf16.msra.mxu0 0
    %1278 = vmatprep.subr.bf16.mxu0 0
    %1279 = vmatpush1.bf16.msra.mxu0 0
    %1280 = vmatprep.subr.bf16.mxu0 0
    %1281 = vmatpush1.bf16.msra.mxu0 0
    %1282 = vmatprep.subr.bf16.mxu0 0
    %1283 = vmatpush1.bf16.msra.mxu0 0
    %1284 = vmatprep.subr.bf16.mxu0 0
    %1285 = vmatpush1.bf16.msra.mxu0 0
    %1286 = vmatprep.subr.bf16.mxu0 0
    %1287 = vmatpush1.bf16.msra.mxu0 0
    %1288 = vmatprep.mubr.bf16.mxu0 0
    %1289 = vmatmul.mubr.bf16.gmra.mrb[0].mxu0 %v1251
    %v1290 = vpop.f32.mrb[0].mxu0
    %v1291 = vadd.f32 0.0, %v1290
    %v1292 = vpop.f32.mrb[0].mxu0
    %v1293 = vpop.f32.mrb[0].mxu0
    %v1294 = vadd.f32 0.0, %v1293
    %v1295 = vpop.f32.mrb[0].mxu0
    %1296 = vdwg.mxu0
    %v1297 = vadd.f32 %v1025, %v1291
    %v1298 = vadd.f32 %v1026, %v1294
    %v1299 = vadd.f32 %v114, %v1297
    %v1300 = vadd.f32 %v115, %v1298
    %v1301 = vld [vmem:[#allocation7] sm:$0x1]
    %v1302 = vld [vmem:[#allocation8] sm:$0x1]
    %v1303 = vsel %vm156, %v1299, 0.0
    %1304 = vadd.xlane.f32.xlu0 %v1303
    %v1305 = vpop.xlane.xlu0 %1304
    %v1306 = vsel %vm156, %v1300, 0.0
    %1307 = vadd.xlane.f32.xlu0 %v1306
    %v1308 = vpop.xlane.xlu0 %1307
    %v1309 = vrcp.pop 32.0
    %v1310 = vmul.f32 %v1305, %v1309
    %v1311 = vmul.f32 %v1308, %v1309
    %v1312 = vsub.f32 %v1299, %v1310
    %v1313 = vsub.f32 %v1300, %v1311
    %v1314 = vmul.f32 %v1312, %v1312
    %v1315 = vmul.f32 %v1313, %v1313
    %v1316 = vsel %vm156, %v1314, 0.0
    %1317 = vadd.xlane.f32.xlu0 %v1316
    %v1318 = vpop.xlane.xlu0 %1317
    %v1319 = vsel %vm156, %v1315, 0.0
    %1320 = vadd.xlane.f32.xlu0 %v1319
    %v1321 = vpop.xlane.xlu0 %1320
    %v1322 = vmul.f32 %v1318, %v1309
    %v1323 = vmul.f32 %v1321, %v1309
    %v1324 = vadd.f32 %v1322, 1e-05
    %v1325 = vadd.f32 %v1323, 1e-05
    %v1326 = vrsqrt.pop %v1324
    %v1327 = vrsqrt.pop %v1325
    %v1328 = vmul.f32 %v1312, %v1326
    %v1329 = vmul.f32 %v1313, %v1327
    %v1331 = vlaneseq
    %v1332 = vshrl.u32 %v1331, 7
    %v1333 = vsub.s32 0, %v1332
    %v1334 = vrot.slane %v1301, %v1333
    %v1336 = vmul.f32 %v1328, %v1334
    %v1337 = vmul.f32 %v1329, %v1334
    %v1339 = vlaneseq
    %v1340 = vshrl.u32 %v1339, 7
    %v1341 = vsub.s32 0, %v1340
    %v1342 = vrot.slane %v1302, %v1341
    %v1344 = vadd.f32 %v1336, %v1342
    %v1345 = vadd.f32 %v1337, %v1342
    %v1346 = vpack.c.bf16 %v1345, %v1344
    %v1347 = vld [vmem:[#allocation10] sm:$0x1]
    %v1349 = vlaneseq
    %v1350 = vshrl.u32 %v1349, 7
    %v1351 = vsub.s32 0, %v1350
    %v1352 = vrot.slane %v1347, %v1351
    %v1358 = vunpack.c.l.b16 %v124
    %v1359 = vunpack.c.l.b16 %v125
    %v1360 = vunpack.c.l.b16 %v126
    %v1361 = vunpack.c.l.b16 %v127
    %v1362 = vpack.c.b16 %v1359, %v1358
    %v1363 = vpack.c.b16 %v1361, %v1360
    %v1367 = vsel %vm156, %v1346, 0
    %1369 = vmatprep.subr.bf16.mxu0 0
    %1370 = vmatpush1.bf16.msra.mxu0 %v1362
    %1371 = vmatprep.subr.bf16.mxu0 0
    %1372 = vmatpush1.bf16.msra.mxu0 %v1363
    %1373 = vmatprep.subr.bf16.mxu0 0
    %1374 = vmatpush1.bf16.msra.mxu0 0
    %1375 = vmatprep.subr.bf16.mxu0 0
    %1376 = vmatpush1.bf16.msra.mxu0 0
    %1377 = vmatprep.subr.bf16.mxu0 0
    %1378 = vmatpush1.bf16.msra.mxu0 0
    %1379 = vmatprep.subr.bf16.mxu0 0
    %1380 = vmatpush1.bf16.msra.mxu0 0
    %1381 = vmatprep.subr.bf16.mxu0 0
    %1382 = vmatpush1.bf16.msra.mxu0 0
    %1383 = vmatprep.subr.bf16.mxu0 0
    %1384 = vmatpush1.bf16.msra.mxu0 0
    %1385 = vmatprep.subr.bf16.mxu0 0
    %1386 = vmatpush1.bf16.msra.mxu0 0
    %1387 = vmatprep.subr.bf16.mxu0 0
    %1388 = vmatpush1.bf16.msra.mxu0 0
    %1389 = vmatprep.subr.bf16.mxu0 0
    %1390 = vmatpush1.bf16.msra.mxu0 0
    %1391 = vmatprep.subr.bf16.mxu0 0
    %1392 = vmatpush1.bf16.msra.mxu0 0
    %1393 = vmatprep.subr.bf16.mxu0 0
    %1394 = vmatpush1.bf16.msra.mxu0 0
    %1395 = vmatprep.subr.bf16.mxu0 0
    %1396 = vmatpush1.bf16.msra.mxu0 0
    %1397 = vmatprep.subr.bf16.mxu0 0
    %1398 = vmatpush1.bf16.msra.mxu0 0
    %1399 = vmatprep.subr.bf16.mxu0 0
    %1400 = vmatpush1.bf16.msra.mxu0 0
    %1401 = vmatprep.mubr.bf16.mxu0 0
    %1402 = vmatmul.mubr.bf16.gmra.mrb[0].mxu0 %v1367
    %v1403 = vpop.f32.mrb[0].mxu0
    %v1404 = vadd.f32 %v1352, %v1403
    %v1405 = vpop.f32.mrb[0].mxu0
    %v1406 = vpop.f32.mrb[0].mxu0
    %v1407 = vadd.f32 %v1352, %v1406
    %v1408 = vpop.f32.mrb[0].mxu0
    %1409 = vdwg.mxu0
    %v1410 = vmax.f32 %v1404, 0.0
    %v1411 = vmax.f32 %v1407, 0.0
    %v1412 = vpack.c.bf16 %v1411, %v1410
    %v1413 = vld [vmem:[%s10] sm:$0x1]
    %v1415 = vlaneseq
    %v1416 = vshrl.u32 %v1415, 7
    %v1417 = vsub.s32 0, %v1416
    %v1418 = vrot.slane %v1413, %v1417
    %v1428 = vunpack.c.l.b16 %v128
    %v1429 = vunpack.c.l.b16 %v129
    %v1430 = vunpack.c.l.b16 %v130
    %v1431 = vunpack.c.l.b16 %v131
    %v1432 = vunpack.c.l.b16 %v132
    %v1433 = vunpack.c.l.b16 %v133
    %v1434 = vunpack.c.l.b16 %v134
    %v1435 = vunpack.c.l.b16 %v135
    %v1436 = vpack.c.b16 %v1429, %v1428
    %v1437 = vpack.c.b16 %v1431, %v1430
    %v1438 = vpack.c.b16 %v1433, %v1432
    %v1439 = vpack.c.b16 %v1435, %v1434
    %vm1444 = vcmask 523264
    %v1446 = vsel %vm1444, %v1412, 0
    %1448 = vmatprep.subr.bf16.mxu0 0
    %1449 = vmatpush1.bf16.msra.mxu0 %v1436
    %1450 = vmatprep.subr.bf16.mxu0 0
    %1451 = vmatpush1.bf16.msra.mxu0 %v1437
    %1452 = vmatprep.subr.bf16.mxu0 0
    %1453 = vmatpush1.bf16.msra.mxu0 %v1438
    %1454 = vmatprep.subr.bf16.mxu0 0
    %1455 = vmatpush1.bf16.msra.mxu0 %v1439
    %1456 = vmatprep.subr.bf16.mxu0 0
    %1457 = vmatpush1.bf16.msra.mxu0 0
    %1458 = vmatprep.subr.bf16.mxu0 0
    %1459 = vmatpush1.bf16.msra.mxu0 0
    %1460 = vmatprep.subr.bf16.mxu0 0
    %1461 = vmatpush1.bf16.msra.mxu0 0
    %1462 = vmatprep.subr.bf16.mxu0 0
    %1463 = vmatpush1.bf16.msra.mxu0 0
    %1464 = vmatprep.subr.bf16.mxu0 0
    %1465 = vmatpush1.bf16.msra.mxu0 0
    %1466 = vmatprep.subr.bf16.mxu0 0
    %1467 = vmatpush1.bf16.msra.mxu0 0
    %1468 = vmatprep.subr.bf16.mxu0 0
    %1469 = vmatpush1.bf16.msra.mxu0 0
    %1470 = vmatprep.subr.bf16.mxu0 0
    %1471 = vmatpush1.bf16.msra.mxu0 0
    %1472 = vmatprep.subr.bf16.mxu0 0
    %1473 = vmatpush1.bf16.msra.mxu0 0
    %1474 = vmatprep.subr.bf16.mxu0 0
    %1475 = vmatpush1.bf16.msra.mxu0 0
    %1476 = vmatprep.subr.bf16.mxu0 0
    %1477 = vmatpush1.bf16.msra.mxu0 0
    %1478 = vmatprep.subr.bf16.mxu0 0
    %1479 = vmatpush1.bf16.msra.mxu0 0
    %1480 = vmatprep.mubr.bf16.mxu0 0
    %1481 = vmatmul.mubr.bf16.gmra.mrb[0].mxu0 %v1446
    %v1482 = vpop.f32.mrb[0].mxu0
    %v1483 = vadd.f32 %v1418, %v1482
    %v1484 = vpop.f32.mrb[0].mxu0
    %v1485 = vpop.f32.mrb[0].mxu0
    %v1486 = vadd.f32 %v1418, %v1485
    %v1487 = vpop.f32.mrb[0].mxu0
    %1488 = vdwg.mxu0
    %v1489 = vadd.f32 %v1344, %v1483
    %v1490 = vadd.f32 %v1345, %v1486
    %v1491 = vld [vmem:[%s11] sm:$0x1]
    %v1492 = vld [vmem:[%s12] sm:$0x1]
    %v1493 = vsel %vm156, %v1489, 0.0
    %1494 = vadd.xlane.f32.xlu0 %v1493
    %v1495 = vpop.xlane.xlu0 %1494
    %v1496 = vsel %vm156, %v1490, 0.0
    %1497 = vadd.xlane.f32.xlu0 %v1496
    %v1498 = vpop.xlane.xlu0 %1497
    %v1499 = vmul.f32 %v1495, %v1309
    %v1500 = vmul.f32 %v1498, %v1309
    %v1501 = vsub.f32 %v1489, %v1499
    %v1502 = vsub.f32 %v1490, %v1500
    %v1503 = vmul.f32 %v1501, %v1501
    %v1504 = vmul.f32 %v1502, %v1502
    %v1505 = vsel %vm156, %v1503, 0.0
    %1506 = vadd.xlane.f32.xlu0 %v1505
    %v1507 = vpop.xlane.xlu0 %1506
    %v1508 = vsel %vm156, %v1504, 0.0
    %1509 = vadd.xlane.f32.xlu0 %v1508
    %v1510 = vpop.xlane.xlu0 %1509
    %v1511 = vmul.f32 %v1507, %v1309
    %v1512 = vmul.f32 %v1510, %v1309
    %v1513 = vadd.f32 %v1511, 1e-05
    %v1514 = vadd.f32 %v1512, 1e-05
    %v1515 = vrsqrt.pop %v1513
    %v1516 = vrsqrt.pop %v1514
    %v1517 = vmul.f32 %v1501, %v1515
    %v1518 = vmul.f32 %v1502, %v1516
    %v1520 = vlaneseq
    %v1521 = vshrl.u32 %v1520, 7
    %v1522 = vsub.s32 0, %v1521
    %v1523 = vrot.slane %v1491, %v1522
    %v1525 = vmul.f32 %v1517, %v1523
    %v1526 = vmul.f32 %v1518, %v1523
    %v1528 = vlaneseq
    %v1529 = vshrl.u32 %v1528, 7
    %v1530 = vsub.s32 0, %v1529
    %v1531 = vrot.slane %v1492, %v1530
    %v1533 = vadd.f32 %v1525, %v1531
    %v1534 = vadd.f32 %v1526, %v1531
    %s1535 = scalar_lea.vmem %s1, 16
    %v1536 = vld [vmem:[%s1535] sm:$0xf]
    %v1537 = vld [vmem:[%s1535 + $0x4] sm:$0xf]
    %v1538 = vld [vmem:[%s1535 + $0x8] sm:$0xf]
    %v1539 = vld [vmem:[%s1535 + $0xc] sm:$0xf]
    %s1540 = scalar_lea.vmem %s3, 16
    %v1541 = vld [vmem:[%s1540] sm:$0xf]
    %v1542 = vld [vmem:[%s1540 + $0x4] sm:$0xf]
    %v1543 = vld [vmem:[%s1540 + $0x8] sm:$0xf]
    %v1544 = vld [vmem:[%s1540 + $0xc] sm:$0xf]
    %s1545 = scalar_lea.vmem %s7, 16
    %v1546 = vld [vmem:[%s1545] sm:$0xf]
    %v1547 = vld [vmem:[%s1545 + $0x4] sm:$0xf]
    %v1548 = vld [vmem:[%s1545 + $0x8] sm:$0xf]
    %v1549 = vld [vmem:[%s1545 + $0xc] sm:$0xf]
    %s1550 = scalar_lea.vmem %s9, 32
    %v1551 = vld [vmem:[%s1550] sm:$0xf]
    %v1552 = vld [vmem:[%s1550 + $0x4] sm:$0xf]
    %v1553 = vld [vmem:[%s1550 + $0x8] sm:$0xf]
    %v1554 = vld [vmem:[%s1550 + $0xc] sm:$0xf]
    %v1555 = vld [vmem:[%s1550 + $0x10] sm:$0xf]
    %v1556 = vld [vmem:[%s1550 + $0x14] sm:$0xf]
    %v1557 = vld [vmem:[%s1550 + $0x18] sm:$0xf]
    %v1558 = vld [vmem:[%s1550 + $0x1c] sm:$0xf]
    %v1559 = vpack.c.bf16 %v1534, %v1533
    %s1560 = scalar_lea.vmem %s2, 1
    %v1561 = vld [vmem:[%s1560] sm:$0x1]
    %v1563 = vlaneseq
    %v1564 = vshrl.u32 %v1563, 7
    %v1565 = vsub.s32 0, %v1564
    %v1566 = vrot.slane %v1561, %v1565
    %v1572 = vunpack.c.l.b16 %v1536
    %v1573 = vunpack.c.l.b16 %v1537
    %v1574 = vunpack.c.l.b16 %v1538
    %v1575 = vunpack.c.l.b16 %v1539
    %v1576 = vpack.c.b16 %v1573, %v1572
    %v1577 = vpack.c.b16 %v1575, %v1574
    %v1581 = vsel %vm156, %v1559, 0
    %1583 = vmatprep.subr.bf16.mxu0 0
    %1584 = vmatpush1.bf16.msra.mxu0 %v1576
    %1585 = vmatprep.subr.bf16.mxu0 0
    %1586 = vmatpush1.bf16.msra.mxu0 %v1577
    %1587 = vmatprep.subr.bf16.mxu0 0
    %1588 = vmatpush1.bf16.msra.mxu0 0
    %1589 = vmatprep.subr.bf16.mxu0 0
    %1590 = vmatpush1.bf16.msra.mxu0 0
    %1591 = vmatprep.subr.bf16.mxu0 0
    %1592 = vmatpush1.bf16.msra.mxu0 0
    %1593 = vmatprep.subr.bf16.mxu0 0
    %1594 = vmatpush1.bf16.msra.mxu0 0
    %1595 = vmatprep.subr.bf16.mxu0 0
    %1596 = vmatpush1.bf16.msra.mxu0 0
    %1597 = vmatprep.subr.bf16.mxu0 0
    %1598 = vmatpush1.bf16.msra.mxu0 0
    %1599 = vmatprep.subr.bf16.mxu0 0
    %1600 = vmatpush1.bf16.msra.mxu0 0
    %1601 = vmatprep.subr.bf16.mxu0 0
    %1602 = vmatpush1.bf16.msra.mxu0 0
    %1603 = vmatprep.subr.bf16.mxu0 0
    %1604 = vmatpush1.bf16.msra.mxu0 0
    %1605 = vmatprep.subr.bf16.mxu0 0
    %1606 = vmatpush1.bf16.msra.mxu0 0
    %1607 = vmatprep.subr.bf16.mxu0 0
    %1608 = vmatpush1.bf16.msra.mxu0 0
    %1609 = vmatprep.subr.bf16.mxu0 0
    %1610 = vmatpush1.bf16.msra.mxu0 0
    %1611 = vmatprep.subr.bf16.mxu0 0
    %1612 = vmatpush1.bf16.msra.mxu0 0
    %1613 = vmatprep.subr.bf16.mxu0 0
    %1614 = vmatpush1.bf16.msra.mxu0 0
    %1615 = vmatprep.mubr.bf16.mxu0 0
    %1616 = vmatmul.mubr.bf16.gmra.mrb[0].mxu0 %v1581
    %v1617 = vpop.f32.mrb[0].mxu0
    %v1618 = vadd.f32 %v1566, %v1617
    %v1619 = vpop.f32.mrb[0].mxu0
    %v1620 = vpop.f32.mrb[0].mxu0
    %v1621 = vadd.f32 %v1566, %v1620
    %v1622 = vpop.f32.mrb[0].mxu0
    %1623 = vdwg.mxu0
    %s1624 = scalar_lea.vmem [#allocation5], 1
    %v1625 = vld [vmem:[%s1624] sm:$0x1]
    %v1627 = vlaneseq
    %v1628 = vshrl.u32 %v1627, 7
    %v1629 = vsub.s32 0, %v1628
    %v1630 = vrot.slane %v1625, %v1629
    %v1632 = vadd.f32 %v1630, 0.0
    %v1633 = vpack.c.bf16 %v1618, %v1618
    %v1634 = vpack.c.bf16 %v1621, %v1621
    %1636 = vrot.lane.b32.xlu0 %v1633, 96
    %v1637 = vpop.permute.xlu0 %1636
    %v1639 = vsel %vm214, %v1633, 0
    %v1642 = vsel %vm214, %v1637, 0
    %1644 = vmatprep.subr.bf16.mxu0 0
    %1645 = vmatpush1.bf16.xpose.msra.mxu0 %v1642
    %1646 = vmatprep.subr.bf16.mxu0 0
    %1647 = vmatpush1.bf16.xpose.msra.mxu0 0
    %1648 = vmatprep.subr.bf16.mxu0 0
    %1649 = vmatpush1.bf16.xpose.msra.mxu0 0
    %1650 = vmatprep.subr.bf16.mxu0 0
    %1651 = vmatpush1.bf16.xpose.msra.mxu0 0
    %1652 = vmatprep.subr.bf16.mxu0 0
    %1653 = vmatpush1.bf16.xpose.msra.mxu0 0
    %1654 = vmatprep.subr.bf16.mxu0 0
    %1655 = vmatpush1.bf16.xpose.msra.mxu0 0
    %1656 = vmatprep.subr.bf16.mxu0 0
    %1657 = vmatpush1.bf16.xpose.msra.mxu0 0
    %1658 = vmatprep.subr.bf16.mxu0 0
    %1659 = vmatpush1.bf16.xpose.msra.mxu0 0
    %1660 = vmatprep.subr.bf16.mxu0 0
    %1661 = vmatpush1.bf16.xpose.msra.mxu0 0
    %1662 = vmatprep.subr.bf16.mxu0 0
    %1663 = vmatpush1.bf16.xpose.msra.mxu0 0
    %1664 = vmatprep.subr.bf16.mxu0 0
    %1665 = vmatpush1.bf16.xpose.msra.mxu0 0
    %1666 = vmatprep.subr.bf16.mxu0 0
    %1667 = vmatpush1.bf16.xpose.msra.mxu0 0
    %1668 = vmatprep.subr.bf16.mxu0 0
    %1669 = vmatpush1.bf16.xpose.msra.mxu0 0
    %1670 = vmatprep.subr.bf16.mxu0 0
    %1671 = vmatpush1.bf16.xpose.msra.mxu0 0
    %1672 = vmatprep.subr.bf16.mxu0 0
    %1673 = vmatpush1.bf16.xpose.msra.mxu0 0
    %1674 = vmatprep.subr.bf16.mxu0 0
    %1675 = vmatpush1.bf16.xpose.msra.mxu0 0
    %1676 = vmatprep.mubr.bf16.mxu0 0
    %1677 = vmatmul.mubr.bf16.gmra.mrb[0].mxu0 %v1639
    %v1678 = vpop.f32.mrb[0].mxu0
    %v1679 = vadd.f32 0.0, %v1678
    %v1680 = vpop.f32.mrb[0].mxu0
    %v1681 = vpop.f32.mrb[0].mxu0
    %v1682 = vpop.f32.mrb[0].mxu0
    %1683 = vdwg.mxu0
    %1685 = vrot.lane.b32.xlu0 %v1634, 96
    %v1686 = vpop.permute.xlu0 %1685
    %v1688 = vsel %vm214, %v1634, 0
    %v1691 = vsel %vm214, %v1686, 0
    %1693 = vmatprep.subr.bf16.mxu0 0
    %1694 = vmatpush1.bf16.xpose.msra.mxu0 %v1691
    %1695 = vmatprep.subr.bf16.mxu0 0
    %1696 = vmatpush1.bf16.xpose.msra.mxu0 0
    %1697 = vmatprep.subr.bf16.mxu0 0
    %1698 = vmatpush1.bf16.xpose.msra.mxu0 0
    %1699 = vmatprep.subr.bf16.mxu0 0
    %1700 = vmatpush1.bf16.xpose.msra.mxu0 0
    %1701 = vmatprep.subr.bf16.mxu0 0
    %1702 = vmatpush1.bf16.xpose.msra.mxu0 0
    %1703 = vmatprep.subr.bf16.mxu0 0
    %1704 = vmatpush1.bf16.xpose.msra.mxu0 0
    %1705 = vmatprep.subr.bf16.mxu0 0
    %1706 = vmatpush1.bf16.xpose.msra.mxu0 0
    %1707 = vmatprep.subr.bf16.mxu0 0
    %1708 = vmatpush1.bf16.xpose.msra.mxu0 0
    %1709 = vmatprep.subr.bf16.mxu0 0
    %1710 = vmatpush1.bf16.xpose.msra.mxu0 0
    %1711 = vmatprep.subr.bf16.mxu0 0
    %1712 = vmatpush1.bf16.xpose.msra.mxu0 0
    %1713 = vmatprep.subr.bf16.mxu0 0
    %1714 = vmatpush1.bf16.xpose.msra.mxu0 0
    %1715 = vmatprep.subr.bf16.mxu0 0
    %1716 = vmatpush1.bf16.xpose.msra.mxu0 0
    %1717 = vmatprep.subr.bf16.mxu0 0
    %1718 = vmatpush1.bf16.xpose.msra.mxu0 0
    %1719 = vmatprep.subr.bf16.mxu0 0
    %1720 = vmatpush1.bf16.xpose.msra.mxu0 0
    %1721 = vmatprep.subr.bf16.mxu0 0
    %1722 = vmatpush1.bf16.xpose.msra.mxu0 0
    %1723 = vmatprep.subr.bf16.mxu0 0
    %1724 = vmatpush1.bf16.xpose.msra.mxu0 0
    %1725 = vmatprep.mubr.bf16.mxu0 0
    %1726 = vmatmul.mubr.bf16.gmra.mrb[0].mxu0 %v1688
    %v1727 = vpop.f32.mrb[0].mxu0
    %v1728 = vadd.f32 0.0, %v1727
    %v1729 = vpop.f32.mrb[0].mxu0
    %v1730 = vpop.f32.mrb[0].mxu0
    %v1731 = vpop.f32.mrb[0].mxu0
    %1732 = vdwg.mxu0
    %v1733 = vmul.f32 %v1679, 0.35355338
    %v1734 = vmul.f32 %v1728, 0.35355338
    %v1735 = vsel %vm214, %v1733, -inf
    %1736 = vmax.xlane.f32.xlu0 %v1735
    %v1737 = vpop.xlane.xlu0 %1736
    %v1738 = vsel %vm214, %v1734, -inf
    %1739 = vmax.xlane.f32.xlu0 %v1738
    %v1740 = vpop.xlane.xlu0 %1739
    %v1741 = vsub.f32 %v1733, %v1737
    %v1742 = vsub.f32 %v1734, %v1740
    %v1743 = vmul.f32 %v1741, 1.442695
    %v1744 = vpow.pop %v1743
    %v1745 = vmul.f32 %v1742, 1.442695
    %v1746 = vpow.pop %v1745
    %v1747 = vsel %vm214, %v1744, 0.0
    %1748 = vadd.xlane.f32.xlu0 %v1747
    %v1749 = vpop.xlane.xlu0 %1748
    %v1750 = vsel %vm214, %v1746, 0.0
    %1751 = vadd.xlane.f32.xlu0 %v1750
    %v1752 = vpop.xlane.xlu0 %1751
    %v1753 = vrcp.pop %v1749
    %v1754 = vrcp.pop %v1752
    %v1755 = vmul.f32 %v1744, %v1753
    %v1756 = vmul.f32 %v1746, %v1754
    %v1757 = vpack.c.bf16 %v1755, %v1755
    %v1758 = vpack.c.bf16 %v1756, %v1756
    %1759 = vrot.lane.b32.xlu0 %v1633, 64
    %v1760 = vpop.permute.xlu0 %1759
    %v1762 = vsel %vm214, %v1757, 0
    %v1765 = vsel %vm341, %v1760, 0
    %1767 = vmatprep.subr.bf16.mxu0 0
    %1768 = vmatpush1.bf16.msra.mxu0 %v1765
    %1769 = vmatprep.subr.bf16.mxu0 0
    %1770 = vmatpush1.bf16.msra.mxu0 0
    %1771 = vmatprep.subr.bf16.mxu0 0
    %1772 = vmatpush1.bf16.msra.mxu0 0
    %1773 = vmatprep.subr.bf16.mxu0 0
    %1774 = vmatpush1.bf16.msra.mxu0 0
    %1775 = vmatprep.subr.bf16.mxu0 0
    %1776 = vmatpush1.bf16.msra.mxu0 0
    %1777 = vmatprep.subr.bf16.mxu0 0
    %1778 = vmatpush1.bf16.msra.mxu0 0
    %1779 = vmatprep.subr.bf16.mxu0 0
    %1780 = vmatpush1.bf16.msra.mxu0 0
    %1781 = vmatprep.subr.bf16.mxu0 0
    %1782 = vmatpush1.bf16.msra.mxu0 0
    %1783 = vmatprep.subr.bf16.mxu0 0
    %1784 = vmatpush1.bf16.msra.mxu0 0
    %1785 = vmatprep.subr.bf16.mxu0 0
    %1786 = vmatpush1.bf16.msra.mxu0 0
    %1787 = vmatprep.subr.bf16.mxu0 0
    %1788 = vmatpush1.bf16.msra.mxu0 0
    %1789 = vmatprep.subr.bf16.mxu0 0
    %1790 = vmatpush1.bf16.msra.mxu0 0
    %1791 = vmatprep.subr.bf16.mxu0 0
    %1792 = vmatpush1.bf16.msra.mxu0 0
    %1793 = vmatprep.subr.bf16.mxu0 0
    %1794 = vmatpush1.bf16.msra.mxu0 0
    %1795 = vmatprep.subr.bf16.mxu0 0
    %1796 = vmatpush1.bf16.msra.mxu0 0
    %1797 = vmatprep.subr.bf16.mxu0 0
    %1798 = vmatpush1.bf16.msra.mxu0 0
    %1799 = vmatprep.mubr.bf16.mxu0 0
    %1800 = vmatmul.mubr.bf16.gmra.mrb[0].mxu0 %v1762
    %v1801 = vpop.f32.mrb[0].mxu0
    %v1802 = vadd.f32 0.0, %v1801
    %v1803 = vpop.f32.mrb[0].mxu0
    %v1804 = vpop.f32.mrb[0].mxu0
    %v1805 = vpop.f32.mrb[0].mxu0
    %1806 = vdwg.mxu0
    %1807 = vrot.lane.b32.xlu0 %v1634, 64
    %v1808 = vpop.permute.xlu0 %1807
    %v1810 = vsel %vm214, %v1758, 0
    %v1813 = vsel %vm341, %v1808, 0
    %1815 = vmatprep.subr.bf16.mxu0 0
    %1816 = vmatpush1.bf16.msra.mxu0 %v1813
    %1817 = vmatprep.subr.bf16.mxu0 0
    %1818 = vmatpush1.bf16.msra.mxu0 0
    %1819 = vmatprep.subr.bf16.mxu0 0
    %1820 = vmatpush1.bf16.msra.mxu0 0
    %1821 = vmatprep.subr.bf16.mxu0 0
    %1822 = vmatpush1.bf16.msra.mxu0 0
    %1823 = vmatprep.subr.bf16.mxu0 0
    %1824 = vmatpush1.bf16.msra.mxu0 0
    %1825 = vmatprep.subr.bf16.mxu0 0
    %1826 = vmatpush1.bf16.msra.mxu0 0
    %1827 = vmatprep.subr.bf16.mxu0 0
    %1828 = vmatpush1.bf16.msra.mxu0 0
    %1829 = vmatprep.subr.bf16.mxu0 0
    %1830 = vmatpush1.bf16.msra.mxu0 0
    %1831 = vmatprep.subr.bf16.mxu0 0
    %1832 = vmatpush1.bf16.msra.mxu0 0
    %1833 = vmatprep.subr.bf16.mxu0 0
    %1834 = vmatpush1.bf16.msra.mxu0 0
    %1835 = vmatprep.subr.bf16.mxu0 0
    %1836 = vmatpush1.bf16.msra.mxu0 0
    %1837 = vmatprep.subr.bf16.mxu0 0
    %1838 = vmatpush1.bf16.msra.mxu0 0
    %1839 = vmatprep.subr.bf16.mxu0 0
    %1840 = vmatpush1.bf16.msra.mxu0 0
    %1841 = vmatprep.subr.bf16.mxu0 0
    %1842 = vmatpush1.bf16.msra.mxu0 0
    %1843 = vmatprep.subr.bf16.mxu0 0
    %1844 = vmatpush1.bf16.msra.mxu0 0
    %1845 = vmatprep.subr.bf16.mxu0 0
    %1846 = vmatpush1.bf16.msra.mxu0 0
    %1847 = vmatprep.mubr.bf16.mxu0 0
    %1848 = vmatmul.mubr.bf16.gmra.mrb[0].mxu0 %v1810
    %v1849 = vpop.f32.mrb[0].mxu0
    %v1850 = vadd.f32 0.0, %v1849
    %v1851 = vpop.f32.mrb[0].mxu0
    %v1852 = vpop.f32.mrb[0].mxu0
    %v1853 = vpop.f32.mrb[0].mxu0
    %1854 = vdwg.mxu0
    %v1855 = vpack.c.bf16 %v1850, %v1802
    %v1857 = vsel %vm214, %v1855, 0
    %v1860 = vsel %vm341, %v1541, 0
    %1862 = vmatprep.subr.bf16.mxu0 0
    %1863 = vmatpush1.bf16.msra.mxu0 %v1860
    %1864 = vmatprep.subr.bf16.mxu0 0
    %1865 = vmatpush1.bf16.msra.mxu0 0
    %1866 = vmatprep.subr.bf16.mxu0 0
    %1867 = vmatpush1.bf16.msra.mxu0 0
    %1868 = vmatprep.subr.bf16.mxu0 0
    %1869 = vmatpush1.bf16.msra.mxu0 0
    %1870 = vmatprep.subr.bf16.mxu0 0
    %1871 = vmatpush1.bf16.msra.mxu0 0
    %1872 = vmatprep.subr.bf16.mxu0 0
    %1873 = vmatpush1.bf16.msra.mxu0 0
    %1874 = vmatprep.subr.bf16.mxu0 0
    %1875 = vmatpush1.bf16.msra.mxu0 0
    %1876 = vmatprep.subr.bf16.mxu0 0
    %1877 = vmatpush1.bf16.msra.mxu0 0
    %1878 = vmatprep.subr.bf16.mxu0 0
    %1879 = vmatpush1.bf16.msra.mxu0 0
    %1880 = vmatprep.subr.bf16.mxu0 0
    %1881 = vmatpush1.bf16.msra.mxu0 0
    %1882 = vmatprep.subr.bf16.mxu0 0
    %1883 = vmatpush1.bf16.msra.mxu0 0
    %1884 = vmatprep.subr.bf16.mxu0 0
    %1885 = vmatpush1.bf16.msra.mxu0 0
    %1886 = vmatprep.subr.bf16.mxu0 0
    %1887 = vmatpush1.bf16.msra.mxu0 0
    %1888 = vmatprep.subr.bf16.mxu0 0
    %1889 = vmatpush1.bf16.msra.mxu0 0
    %1890 = vmatprep.subr.bf16.mxu0 0
    %1891 = vmatpush1.bf16.msra.mxu0 0
    %1892 = vmatprep.subr.bf16.mxu0 0
    %1893 = vmatpush1.bf16.msra.mxu0 0
    %1894 = vmatprep.mubr.bf16.mxu0 0
    %1895 = vmatmul.mubr.bf16.gmra.mrb[0].mxu0 %v1857
    %v1896 = vpop.f32.mrb[0].mxu0
    %v1897 = vadd.f32 0.0, %v1896
    %v1898 = vpop.f32.mrb[0].mxu0
    %v1899 = vpop.f32.mrb[0].mxu0
    %v1900 = vadd.f32 0.0, %v1899
    %v1901 = vpop.f32.mrb[0].mxu0
    %1902 = vdwg.mxu0
    %v1903 = vadd.f32 %v1632, %v1897
    %v1904 = vadd.f32 %v1632, %v1900
    %1905 = vrot.lane.b32.xlu0 %v1633, 120
    %v1906 = vpop.permute.xlu0 %1905
    %1907 = vrot.lane.b32.xlu0 %v1633, 88
    %v1908 = vpop.permute.xlu0 %1907
    %v1910 = vsel %vm214, %v1906, 0
    %v1913 = vsel %vm214, %v1908, 0
    %1915 = vmatprep.subr.bf16.mxu0 0
    %1916 = vmatpush1.bf16.xpose.msra.mxu0 %v1913
    %1917 = vmatprep.subr.bf16.mxu0 0
    %1918 = vmatpush1.bf16.xpose.msra.mxu0 0
    %1919 = vmatprep.subr.bf16.mxu0 0
    %1920 = vmatpush1.bf16.xpose.msra.mxu0 0
    %1921 = vmatprep.subr.bf16.mxu0 0
    %1922 = vmatpush1.bf16.xpose.msra.mxu0 0
    %1923 = vmatprep.subr.bf16.mxu0 0
    %1924 = vmatpush1.bf16.xpose.msra.mxu0 0
    %1925 = vmatprep.subr.bf16.mxu0 0
    %1926 = vmatpush1.bf16.xpose.msra.mxu0 0
    %1927 = vmatprep.subr.bf16.mxu0 0
    %1928 = vmatpush1.bf16.xpose.msra.mxu0 0
    %1929 = vmatprep.subr.bf16.mxu0 0
    %1930 = vmatpush1.bf16.xpose.msra.mxu0 0
    %1931 = vmatprep.subr.bf16.mxu0 0
    %1932 = vmatpush1.bf16.xpose.msra.mxu0 0
    %1933 = vmatprep.subr.bf16.mxu0 0
    %1934 = vmatpush1.bf16.xpose.msra.mxu0 0
    %1935 = vmatprep.subr.bf16.mxu0 0
    %1936 = vmatpush1.bf16.xpose.msra.mxu0 0
    %1937 = vmatprep.subr.bf16.mxu0 0
    %1938 = vmatpush1.bf16.xpose.msra.mxu0 0
    %1939 = vmatprep.subr.bf16.mxu0 0
    %1940 = vmatpush1.bf16.xpose.msra.mxu0 0
    %1941 = vmatprep.subr.bf16.mxu0 0
    %1942 = vmatpush1.bf16.xpose.msra.mxu0 0
    %1943 = vmatprep.subr.bf16.mxu0 0
    %1944 = vmatpush1.bf16.xpose.msra.mxu0 0
    %1945 = vmatprep.subr.bf16.mxu0 0
    %1946 = vmatpush1.bf16.xpose.msra.mxu0 0
    %1947 = vmatprep.mubr.bf16.mxu0 0
    %1948 = vmatmul.mubr.bf16.gmra.mrb[0].mxu0 %v1910
    %v1949 = vpop.f32.mrb[0].mxu0
    %v1950 = vadd.f32 0.0, %v1949
    %v1951 = vpop.f32.mrb[0].mxu0
    %v1952 = vpop.f32.mrb[0].mxu0
    %v1953 = vpop.f32.mrb[0].mxu0
    %1954 = vdwg.mxu0
    %1955 = vrot.lane.b32.xlu0 %v1634, 120
    %v1956 = vpop.permute.xlu0 %1955
    %1957 = vrot.lane.b32.xlu0 %v1634, 88
    %v1958 = vpop.permute.xlu0 %1957
    %v1960 = vsel %vm214, %v1956, 0
    %v1963 = vsel %vm214, %v1958, 0
    %1965 = vmatprep.subr.bf16.mxu0 0
    %1966 = vmatpush1.bf16.xpose.msra.mxu0 %v1963
    %1967 = vmatprep.subr.bf16.mxu0 0
    %1968 = vmatpush1.bf16.xpose.msra.mxu0 0
    %1969 = vmatprep.subr.bf16.mxu0 0
    %1970 = vmatpush1.bf16.xpose.msra.mxu0 0
    %1971 = vmatprep.subr.bf16.mxu0 0
    %1972 = vmatpush1.bf16.xpose.msra.mxu0 0
    %1973 = vmatprep.subr.bf16.mxu0 0
    %1974 = vmatpush1.bf16.xpose.msra.mxu0 0
    %1975 = vmatprep.subr.bf16.mxu0 0
    %1976 = vmatpush1.bf16.xpose.msra.mxu0 0
    %1977 = vmatprep.subr.bf16.mxu0 0
    %1978 = vmatpush1.bf16.xpose.msra.mxu0 0
    %1979 = vmatprep.subr.bf16.mxu0 0
    %1980 = vmatpush1.bf16.xpose.msra.mxu0 0
    %1981 = vmatprep.subr.bf16.mxu0 0
    %1982 = vmatpush1.bf16.xpose.msra.mxu0 0
    %1983 = vmatprep.subr.bf16.mxu0 0
    %1984 = vmatpush1.bf16.xpose.msra.mxu0 0
    %1985 = vmatprep.subr.bf16.mxu0 0
    %1986 = vmatpush1.bf16.xpose.msra.mxu0 0
    %1987 = vmatprep.subr.bf16.mxu0 0
    %1988 = vmatpush1.bf16.xpose.msra.mxu0 0
    %1989 = vmatprep.subr.bf16.mxu0 0
    %1990 = vmatpush1.bf16.xpose.msra.mxu0 0
    %1991 = vmatprep.subr.bf16.mxu0 0
    %1992 = vmatpush1.bf16.xpose.msra.mxu0 0
    %1993 = vmatprep.subr.bf16.mxu0 0
    %1994 = vmatpush1.bf16.xpose.msra.mxu0 0
    %1995 = vmatprep.subr.bf16.mxu0 0
    %1996 = vmatpush1.bf16.xpose.msra.mxu0 0
    %1997 = vmatprep.mubr.bf16.mxu0 0
    %1998 = vmatmul.mubr.bf16.gmra.mrb[0].mxu0 %v1960
    %v1999 = vpop.f32.mrb[0].mxu0
    %v2000 = vadd.f32 0.0, %v1999
    %v2001 = vpop.f32.mrb[0].mxu0
    %v2002 = vpop.f32.mrb[0].mxu0
    %v2003 = vpop.f32.mrb[0].mxu0
    %2004 = vdwg.mxu0
    %v2005 = vmul.f32 %v1950, 0.35355338
    %v2006 = vmul.f32 %v2000, 0.35355338
    %v2007 = vsel %vm214, %v2005, -inf
    %2008 = vmax.xlane.f32.xlu0 %v2007
    %v2009 = vpop.xlane.xlu0 %2008
    %v2010 = vsel %vm214, %v2006, -inf
    %2011 = vmax.xlane.f32.xlu0 %v2010
    %v2012 = vpop.xlane.xlu0 %2011
    %v2013 = vsub.f32 %v2005, %v2009
    %v2014 = vsub.f32 %v2006, %v2012
    %v2015 = vmul.f32 %v2013, 1.442695
    %v2016 = vpow.pop %v2015
    %v2017 = vmul.f32 %v2014, 1.442695
    %v2018 = vpow.pop %v2017
    %v2019 = vsel %vm214, %v2016, 0.0
    %2020 = vadd.xlane.f32.xlu0 %v2019
    %v2021 = vpop.xlane.xlu0 %2020
    %v2022 = vsel %vm214, %v2018, 0.0
    %2023 = vadd.xlane.f32.xlu0 %v2022
    %v2024 = vpop.xlane.xlu0 %2023
    %v2025 = vrcp.pop %v2021
    %v2026 = vrcp.pop %v2024
    %v2027 = vmul.f32 %v2016, %v2025
    %v2028 = vmul.f32 %v2018, %v2026
    %v2029 = vpack.c.bf16 %v2027, %v2027
    %v2030 = vpack.c.bf16 %v2028, %v2028
    %2031 = vrot.lane.b32.xlu0 %v1633, 56
    %v2032 = vpop.permute.xlu0 %2031
    %v2034 = vsel %vm214, %v2029, 0
    %v2037 = vsel %vm341, %v2032, 0
    %2039 = vmatprep.subr.bf16.mxu0 0
    %2040 = vmatpush1.bf16.msra.mxu0 %v2037
    %2041 = vmatprep.subr.bf16.mxu0 0
    %2042 = vmatpush1.bf16.msra.mxu0 0
    %2043 = vmatprep.subr.bf16.mxu0 0
    %2044 = vmatpush1.bf16.msra.mxu0 0
    %2045 = vmatprep.subr.bf16.mxu0 0
    %2046 = vmatpush1.bf16.msra.mxu0 0
    %2047 = vmatprep.subr.bf16.mxu0 0
    %2048 = vmatpush1.bf16.msra.mxu0 0
    %2049 = vmatprep.subr.bf16.mxu0 0
    %2050 = vmatpush1.bf16.msra.mxu0 0
    %2051 = vmatprep.subr.bf16.mxu0 0
    %2052 = vmatpush1.bf16.msra.mxu0 0
    %2053 = vmatprep.subr.bf16.mxu0 0
    %2054 = vmatpush1.bf16.msra.mxu0 0
    %2055 = vmatprep.subr.bf16.mxu0 0
    %2056 = vmatpush1.bf16.msra.mxu0 0
    %2057 = vmatprep.subr.bf16.mxu0 0
    %2058 = vmatpush1.bf16.msra.mxu0 0
    %2059 = vmatprep.subr.bf16.mxu0 0
    %2060 = vmatpush1.bf16.msra.mxu0 0
    %2061 = vmatprep.subr.bf16.mxu0 0
    %2062 = vmatpush1.bf16.msra.mxu0 0
    %2063 = vmatprep.subr.bf16.mxu0 0
    %2064 = vmatpush1.bf16.msra.mxu0 0
    %2065 = vmatprep.subr.bf16.mxu0 0
    %2066 = vmatpush1.bf16.msra.mxu0 0
    %2067 = vmatprep.subr.bf16.mxu0 0
    %2068 = vmatpush1.bf16.msra.mxu0 0
    %2069 = vmatprep.subr.bf16.mxu0 0
    %2070 = vmatpush1.bf16.msra.mxu0 0
    %2071 = vmatprep.mubr.bf16.mxu0 0
    %2072 = vmatmul.mubr.bf16.gmra.mrb[0].mxu0 %v2034
    %v2073 = vpop.f32.mrb[0].mxu0
    %v2074 = vadd.f32 0.0, %v2073
    %v2075 = vpop.f32.mrb[0].mxu0
    %v2076 = vpop.f32.mrb[0].mxu0
    %v2077 = vpop.f32.mrb[0].mxu0
    %2078 = vdwg.mxu0
    %2079 = vrot.lane.b32.xlu0 %v1634, 56
    %v2080 = vpop.permute.xlu0 %2079
    %v2082 = vsel %vm214, %v2030, 0
    %v2085 = vsel %vm341, %v2080, 0
    %2087 = vmatprep.subr.bf16.mxu0 0
    %2088 = vmatpush1.bf16.msra.mxu0 %v2085
    %2089 = vmatprep.subr.bf16.mxu0 0
    %2090 = vmatpush1.bf16.msra.mxu0 0
    %2091 = vmatprep.subr.bf16.mxu0 0
    %2092 = vmatpush1.bf16.msra.mxu0 0
    %2093 = vmatprep.subr.bf16.mxu0 0
    %2094 = vmatpush1.bf16.msra.mxu0 0
    %2095 = vmatprep.subr.bf16.mxu0 0
    %2096 = vmatpush1.bf16.msra.mxu0 0
    %2097 = vmatprep.subr.bf16.mxu0 0
    %2098 = vmatpush1.bf16.msra.mxu0 0
    %2099 = vmatprep.subr.bf16.mxu0 0
    %2100 = vmatpush1.bf16.msra.mxu0 0
    %2101 = vmatprep.subr.bf16.mxu0 0
    %2102 = vmatpush1.bf16.msra.mxu0 0
    %2103 = vmatprep.subr.bf16.mxu0 0
    %2104 = vmatpush1.bf16.msra.mxu0 0
    %2105 = vmatprep.subr.bf16.mxu0 0
    %2106 = vmatpush1.bf16.msra.mxu0 0
    %2107 = vmatprep.subr.bf16.mxu0 0
    %2108 = vmatpush1.bf16.msra.mxu0 0
    %2109 = vmatprep.subr.bf16.mxu0 0
    %2110 = vmatpush1.bf16.msra.mxu0 0
    %2111 = vmatprep.subr.bf16.mxu0 0
    %2112 = vmatpush1.bf16.msra.mxu0 0
    %2113 = vmatprep.subr.bf16.mxu0 0
    %2114 = vmatpush1.bf16.msra.mxu0 0
    %2115 = vmatprep.subr.bf16.mxu0 0
    %2116 = vmatpush1.bf16.msra.mxu0 0
    %2117 = vmatprep.subr.bf16.mxu0 0
    %2118 = vmatpush1.bf16.msra.mxu0 0
    %2119 = vmatprep.mubr.bf16.mxu0 0
    %2120 = vmatmul.mubr.bf16.gmra.mrb[0].mxu0 %v2082
    %v2121 = vpop.f32.mrb[0].mxu0
    %v2122 = vadd.f32 0.0, %v2121
    %v2123 = vpop.f32.mrb[0].mxu0
    %v2124 = vpop.f32.mrb[0].mxu0
    %v2125 = vpop.f32.mrb[0].mxu0
    %2126 = vdwg.mxu0
    %v2127 = vpack.c.bf16 %v2122, %v2074
    %v2129 = vsel %vm214, %v2127, 0
    %v2132 = vsel %vm341, %v1542, 0
    %2134 = vmatprep.subr.bf16.mxu0 0
    %2135 = vmatpush1.bf16.msra.mxu0 %v2132
    %2136 = vmatprep.subr.bf16.mxu0 0
    %2137 = vmatpush1.bf16.msra.mxu0 0
    %2138 = vmatprep.subr.bf16.mxu0 0
    %2139 = vmatpush1.bf16.msra.mxu0 0
    %2140 = vmatprep.subr.bf16.mxu0 0
    %2141 = vmatpush1.bf16.msra.mxu0 0
    %2142 = vmatprep.subr.bf16.mxu0 0
    %2143 = vmatpush1.bf16.msra.mxu0 0
    %2144 = vmatprep.subr.bf16.mxu0 0
    %2145 = vmatpush1.bf16.msra.mxu0 0
    %2146 = vmatprep.subr.bf16.mxu0 0
    %2147 = vmatpush1.bf16.msra.mxu0 0
    %2148 = vmatprep.subr.bf16.mxu0 0
    %2149 = vmatpush1.bf16.msra.mxu0 0
    %2150 = vmatprep.subr.bf16.mxu0 0
    %2151 = vmatpush1.bf16.msra.mxu0 0
    %2152 = vmatprep.subr.bf16.mxu0 0
    %2153 = vmatpush1.bf16.msra.mxu0 0
    %2154 = vmatprep.subr.bf16.mxu0 0
    %2155 = vmatpush1.bf16.msra.mxu0 0
    %2156 = vmatprep.subr.bf16.mxu0 0
    %2157 = vmatpush1.bf16.msra.mxu0 0
    %2158 = vmatprep.subr.bf16.mxu0 0
    %2159 = vmatpush1.bf16.msra.mxu0 0
    %2160 = vmatprep.subr.bf16.mxu0 0
    %2161 = vmatpush1.bf16.msra.mxu0 0
    %2162 = vmatprep.subr.bf16.mxu0 0
    %2163 = vmatpush1.bf16.msra.mxu0 0
    %2164 = vmatprep.subr.bf16.mxu0 0
    %2165 = vmatpush1.bf16.msra.mxu0 0
    %2166 = vmatprep.mubr.bf16.mxu0 0
    %2167 = vmatmul.mubr.bf16.gmra.mrb[0].mxu0 %v2129
    %v2168 = vpop.f32.mrb[0].mxu0
    %v2169 = vadd.f32 0.0, %v2168
    %v2170 = vpop.f32.mrb[0].mxu0
    %v2171 = vpop.f32.mrb[0].mxu0
    %v2172 = vadd.f32 0.0, %v2171
    %v2173 = vpop.f32.mrb[0].mxu0
    %2174 = vdwg.mxu0
    %v2175 = vadd.f32 %v1903, %v2169
    %v2176 = vadd.f32 %v1904, %v2172
    %2177 = vrot.lane.b32.xlu0 %v1633, 112
    %v2178 = vpop.permute.xlu0 %2177
    %2179 = vrot.lane.b32.xlu0 %v1633, 80
    %v2180 = vpop.permute.xlu0 %2179
    %v2182 = vsel %vm214, %v2178, 0
    %v2185 = vsel %vm214, %v2180, 0
    %2187 = vmatprep.subr.bf16.mxu0 0
    %2188 = vmatpush1.bf16.xpose.msra.mxu0 %v2185
    %2189 = vmatprep.subr.bf16.mxu0 0
    %2190 = vmatpush1.bf16.xpose.msra.mxu0 0
    %2191 = vmatprep.subr.bf16.mxu0 0
    %2192 = vmatpush1.bf16.xpose.msra.mxu0 0
    %2193 = vmatprep.subr.bf16.mxu0 0
    %2194 = vmatpush1.bf16.xpose.msra.mxu0 0
    %2195 = vmatprep.subr.bf16.mxu0 0
    %2196 = vmatpush1.bf16.xpose.msra.mxu0 0
    %2197 = vmatprep.subr.bf16.mxu0 0
    %2198 = vmatpush1.bf16.xpose.msra.mxu0 0
    %2199 = vmatprep.subr.bf16.mxu0 0
    %2200 = vmatpush1.bf16.xpose.msra.mxu0 0
    %2201 = vmatprep.subr.bf16.mxu0 0
    %2202 = vmatpush1.bf16.xpose.msra.mxu0 0
    %2203 = vmatprep.subr.bf16.mxu0 0
    %2204 = vmatpush1.bf16.xpose.msra.mxu0 0
    %2205 = vmatprep.subr.bf16.mxu0 0
    %2206 = vmatpush1.bf16.xpose.msra.mxu0 0
    %2207 = vmatprep.subr.bf16.mxu0 0
    %2208 = vmatpush1.bf16.xpose.msra.mxu0 0
    %2209 = vmatprep.subr.bf16.mxu0 0
    %2210 = vmatpush1.bf16.xpose.msra.mxu0 0
    %2211 = vmatprep.subr.bf16.mxu0 0
    %2212 = vmatpush1.bf16.xpose.msra.mxu0 0
    %2213 = vmatprep.subr.bf16.mxu0 0
    %2214 = vmatpush1.bf16.xpose.msra.mxu0 0
    %2215 = vmatprep.subr.bf16.mxu0 0
    %2216 = vmatpush1.bf16.xpose.msra.mxu0 0
    %2217 = vmatprep.subr.bf16.mxu0 0
    %2218 = vmatpush1.bf16.xpose.msra.mxu0 0
    %2219 = vmatprep.mubr.bf16.mxu0 0
    %2220 = vmatmul.mubr.bf16.gmra.mrb[0].mxu0 %v2182
    %v2221 = vpop.f32.mrb[0].mxu0
    %v2222 = vadd.f32 0.0, %v2221
    %v2223 = vpop.f32.mrb[0].mxu0
    %v2224 = vpop.f32.mrb[0].mxu0
    %v2225 = vpop.f32.mrb[0].mxu0
    %2226 = vdwg.mxu0
    %2227 = vrot.lane.b32.xlu0 %v1634, 112
    %v2228 = vpop.permute.xlu0 %2227
    %2229 = vrot.lane.b32.xlu0 %v1634, 80
    %v2230 = vpop.permute.xlu0 %2229
    %v2232 = vsel %vm214, %v2228, 0
    %v2235 = vsel %vm214, %v2230, 0
    %2237 = vmatprep.subr.bf16.mxu0 0
    %2238 = vmatpush1.bf16.xpose.msra.mxu0 %v2235
    %2239 = vmatprep.subr.bf16.mxu0 0
    %2240 = vmatpush1.bf16.xpose.msra.mxu0 0
    %2241 = vmatprep.subr.bf16.mxu0 0
    %2242 = vmatpush1.bf16.xpose.msra.mxu0 0
    %2243 = vmatprep.subr.bf16.mxu0 0
    %2244 = vmatpush1.bf16.xpose.msra.mxu0 0
    %2245 = vmatprep.subr.bf16.mxu0 0
    %2246 = vmatpush1.bf16.xpose.msra.mxu0 0
    %2247 = vmatprep.subr.bf16.mxu0 0
    %2248 = vmatpush1.bf16.xpose.msra.mxu0 0
    %2249 = vmatprep.subr.bf16.mxu0 0
    %2250 = vmatpush1.bf16.xpose.msra.mxu0 0
    %2251 = vmatprep.subr.bf16.mxu0 0
    %2252 = vmatpush1.bf16.xpose.msra.mxu0 0
    %2253 = vmatprep.subr.bf16.mxu0 0
    %2254 = vmatpush1.bf16.xpose.msra.mxu0 0
    %2255 = vmatprep.subr.bf16.mxu0 0
    %2256 = vmatpush1.bf16.xpose.msra.mxu0 0
    %2257 = vmatprep.subr.bf16.mxu0 0
    %2258 = vmatpush1.bf16.xpose.msra.mxu0 0
    %2259 = vmatprep.subr.bf16.mxu0 0
    %2260 = vmatpush1.bf16.xpose.msra.mxu0 0
    %2261 = vmatprep.subr.bf16.mxu0 0
    %2262 = vmatpush1.bf16.xpose.msra.mxu0 0
    %2263 = vmatprep.subr.bf16.mxu0 0
    %2264 = vmatpush1.bf16.xpose.msra.mxu0 0
    %2265 = vmatprep.subr.bf16.mxu0 0
    %2266 = vmatpush1.bf16.xpose.msra.mxu0 0
    %2267 = vmatprep.subr.bf16.mxu0 0
    %2268 = vmatpush1.bf16.xpose.msra.mxu0 0
    %2269 = vmatprep.mubr.bf16.mxu0 0
    %2270 = vmatmul.mubr.bf16.gmra.mrb[0].mxu0 %v2232
    %v2271 = vpop.f32.mrb[0].mxu0
    %v2272 = vadd.f32 0.0, %v2271
    %v2273 = vpop.f32.mrb[0].mxu0
    %v2274 = vpop.f32.mrb[0].mxu0
    %v2275 = vpop.f32.mrb[0].mxu0
    %2276 = vdwg.mxu0
    %v2277 = vmul.f32 %v2222, 0.35355338
    %v2278 = vmul.f32 %v2272, 0.35355338
    %v2279 = vsel %vm214, %v2277, -inf
    %2280 = vmax.xlane.f32.xlu0 %v2279
    %v2281 = vpop.xlane.xlu0 %2280
    %v2282 = vsel %vm214, %v2278, -inf
    %2283 = vmax.xlane.f32.xlu0 %v2282
    %v2284 = vpop.xlane.xlu0 %2283
    %v2285 = vsub.f32 %v2277, %v2281
    %v2286 = vsub.f32 %v2278, %v2284
    %v2287 = vmul.f32 %v2285, 1.442695
    %v2288 = vpow.pop %v2287
    %v2289 = vmul.f32 %v2286, 1.442695
    %v2290 = vpow.pop %v2289
    %v2291 = vsel %vm214, %v2288, 0.0
    %2292 = vadd.xlane.f32.xlu0 %v2291
    %v2293 = vpop.xlane.xlu0 %2292
    %v2294 = vsel %vm214, %v2290, 0.0
    %2295 = vadd.xlane.f32.xlu0 %v2294
    %v2296 = vpop.xlane.xlu0 %2295
    %v2297 = vrcp.pop %v2293
    %v2298 = vrcp.pop %v2296
    %v2299 = vmul.f32 %v2288, %v2297
    %v2300 = vmul.f32 %v2290, %v2298
    %v2301 = vpack.c.bf16 %v2299, %v2299
    %v2302 = vpack.c.bf16 %v2300, %v2300
    %2303 = vrot.lane.b32.xlu0 %v1633, 48
    %v2304 = vpop.permute.xlu0 %2303
    %v2306 = vsel %vm214, %v2301, 0
    %v2309 = vsel %vm341, %v2304, 0
    %2311 = vmatprep.subr.bf16.mxu0 0
    %2312 = vmatpush1.bf16.msra.mxu0 %v2309
    %2313 = vmatprep.subr.bf16.mxu0 0
    %2314 = vmatpush1.bf16.msra.mxu0 0
    %2315 = vmatprep.subr.bf16.mxu0 0
    %2316 = vmatpush1.bf16.msra.mxu0 0
    %2317 = vmatprep.subr.bf16.mxu0 0
    %2318 = vmatpush1.bf16.msra.mxu0 0
    %2319 = vmatprep.subr.bf16.mxu0 0
    %2320 = vmatpush1.bf16.msra.mxu0 0
    %2321 = vmatprep.subr.bf16.mxu0 0
    %2322 = vmatpush1.bf16.msra.mxu0 0
    %2323 = vmatprep.subr.bf16.mxu0 0
    %2324 = vmatpush1.bf16.msra.mxu0 0
    %2325 = vmatprep.subr.bf16.mxu0 0
    %2326 = vmatpush1.bf16.msra.mxu0 0
    %2327 = vmatprep.subr.bf16.mxu0 0
    %2328 = vmatpush1.bf16.msra.mxu0 0
    %2329 = vmatprep.subr.bf16.mxu0 0
    %2330 = vmatpush1.bf16.msra.mxu0 0
    %2331 = vmatprep.subr.bf16.mxu0 0
    %2332 = vmatpush1.bf16.msra.mxu0 0
    %2333 = vmatprep.subr.bf16.mxu0 0
    %2334 = vmatpush1.bf16.msra.mxu0 0
    %2335 = vmatprep.subr.bf16.mxu0 0
    %2336 = vmatpush1.bf16.msra.mxu0 0
    %2337 = vmatprep.subr.bf16.mxu0 0
    %2338 = vmatpush1.bf16.msra.mxu0 0
    %2339 = vmatprep.subr.bf16.mxu0 0
    %2340 = vmatpush1.bf16.msra.mxu0 0
    %2341 = vmatprep.subr.bf16.mxu0 0
    %2342 = vmatpush1.bf16.msra.mxu0 0
    %2343 = vmatprep.mubr.bf16.mxu0 0
    %2344 = vmatmul.mubr.bf16.gmra.mrb[0].mxu0 %v2306
    %v2345 = vpop.f32.mrb[0].mxu0
    %v2346 = vadd.f32 0.0, %v2345
    %v2347 = vpop.f32.mrb[0].mxu0
    %v2348 = vpop.f32.mrb[0].mxu0
    %v2349 = vpop.f32.mrb[0].mxu0
    %2350 = vdwg.mxu0
    %2351 = vrot.lane.b32.xlu0 %v1634, 48
    %v2352 = vpop.permute.xlu0 %2351
    %v2354 = vsel %vm214, %v2302, 0
    %v2357 = vsel %vm341, %v2352, 0
    %2359 = vmatprep.subr.bf16.mxu0 0
    %2360 = vmatpush1.bf16.msra.mxu0 %v2357
    %2361 = vmatprep.subr.bf16.mxu0 0
    %2362 = vmatpush1.bf16.msra.mxu0 0
    %2363 = vmatprep.subr.bf16.mxu0 0
    %2364 = vmatpush1.bf16.msra.mxu0 0
    %2365 = vmatprep.subr.bf16.mxu0 0
    %2366 = vmatpush1.bf16.msra.mxu0 0
    %2367 = vmatprep.subr.bf16.mxu0 0
    %2368 = vmatpush1.bf16.msra.mxu0 0
    %2369 = vmatprep.subr.bf16.mxu0 0
    %2370 = vmatpush1.bf16.msra.mxu0 0
    %2371 = vmatprep.subr.bf16.mxu0 0
    %2372 = vmatpush1.bf16.msra.mxu0 0
    %2373 = vmatprep.subr.bf16.mxu0 0
    %2374 = vmatpush1.bf16.msra.mxu0 0
    %2375 = vmatprep.subr.bf16.mxu0 0
    %2376 = vmatpush1.bf16.msra.mxu0 0
    %2377 = vmatprep.subr.bf16.mxu0 0
    %2378 = vmatpush1.bf16.msra.mxu0 0
    %2379 = vmatprep.subr.bf16.mxu0 0
    %2380 = vmatpush1.bf16.msra.mxu0 0
    %2381 = vmatprep.subr.bf16.mxu0 0
    %2382 = vmatpush1.bf16.msra.mxu0 0
    %2383 = vmatprep.subr.bf16.mxu0 0
    %2384 = vmatpush1.bf16.msra.mxu0 0
    %2385 = vmatprep.subr.bf16.mxu0 0
    %2386 = vmatpush1.bf16.msra.mxu0 0
    %2387 = vmatprep.subr.bf16.mxu0 0
    %2388 = vmatpush1.bf16.msra.mxu0 0
    %2389 = vmatprep.subr.bf16.mxu0 0
    %2390 = vmatpush1.bf16.msra.mxu0 0
    %2391 = vmatprep.mubr.bf16.mxu0 0
    %2392 = vmatmul.mubr.bf16.gmra.mrb[0].mxu0 %v2354
    %v2393 = vpop.f32.mrb[0].mxu0
    %v2394 = vadd.f32 0.0, %v2393
    %v2395 = vpop.f32.mrb[0].mxu0
    %v2396 = vpop.f32.mrb[0].mxu0
    %v2397 = vpop.f32.mrb[0].mxu0
    %2398 = vdwg.mxu0
    %v2399 = vpack.c.bf16 %v2394, %v2346
    %v2401 = vsel %vm214, %v2399, 0
    %v2404 = vsel %vm341, %v1543, 0
    %2406 = vmatprep.subr.bf16.mxu0 0
    %2407 = vmatpush1.bf16.msra.mxu0 %v2404
    %2408 = vmatprep.subr.bf16.mxu0 0
    %2409 = vmatpush1.bf16.msra.mxu0 0
    %2410 = vmatprep.subr.bf16.mxu0 0
    %2411 = vmatpush1.bf16.msra.mxu0 0
    %2412 = vmatprep.subr.bf16.mxu0 0
    %2413 = vmatpush1.bf16.msra.mxu0 0
    %2414 = vmatprep.subr.bf16.mxu0 0
    %2415 = vmatpush1.bf16.msra.mxu0 0
    %2416 = vmatprep.subr.bf16.mxu0 0
    %2417 = vmatpush1.bf16.msra.mxu0 0
    %2418 = vmatprep.subr.bf16.mxu0 0
    %2419 = vmatpush1.bf16.msra.mxu0 0
    %2420 = vmatprep.subr.bf16.mxu0 0
    %2421 = vmatpush1.bf16.msra.mxu0 0
    %2422 = vmatprep.subr.bf16.mxu0 0
    %2423 = vmatpush1.bf16.msra.mxu0 0
    %2424 = vmatprep.subr.bf16.mxu0 0
    %2425 = vmatpush1.bf16.msra.mxu0 0
    %2426 = vmatprep.subr.bf16.mxu0 0
    %2427 = vmatpush1.bf16.msra.mxu0 0
    %2428 = vmatprep.subr.bf16.mxu0 0
    %2429 = vmatpush1.bf16.msra.mxu0 0
    %2430 = vmatprep.subr.bf16.mxu0 0
    %2431 = vmatpush1.bf16.msra.mxu0 0
    %2432 = vmatprep.subr.bf16.mxu0 0
    %2433 = vmatpush1.bf16.msra.mxu0 0
    %2434 = vmatprep.subr.bf16.mxu0 0
    %2435 = vmatpush1.bf16.msra.mxu0 0
    %2436 = vmatprep.subr.bf16.mxu0 0
    %2437 = vmatpush1.bf16.msra.mxu0 0
    %2438 = vmatprep.mubr.bf16.mxu0 0
    %2439 = vmatmul.mubr.bf16.gmra.mrb[0].mxu0 %v2401
    %v2440 = vpop.f32.mrb[0].mxu0
    %v2441 = vadd.f32 0.0, %v2440
    %v2442 = vpop.f32.mrb[0].mxu0
    %v2443 = vpop.f32.mrb[0].mxu0
    %v2444 = vadd.f32 0.0, %v2443
    %v2445 = vpop.f32.mrb[0].mxu0
    %2446 = vdwg.mxu0
    %v2447 = vadd.f32 %v2175, %v2441
    %v2448 = vadd.f32 %v2176, %v2444
    %2449 = vrot.lane.b32.xlu0 %v1633, 104
    %v2450 = vpop.permute.xlu0 %2449
    %2451 = vrot.lane.b32.xlu0 %v1633, 72
    %v2452 = vpop.permute.xlu0 %2451
    %v2454 = vsel %vm214, %v2450, 0
    %v2457 = vsel %vm214, %v2452, 0
    %2459 = vmatprep.subr.bf16.mxu0 0
    %2460 = vmatpush1.bf16.xpose.msra.mxu0 %v2457
    %2461 = vmatprep.subr.bf16.mxu0 0
    %2462 = vmatpush1.bf16.xpose.msra.mxu0 0
    %2463 = vmatprep.subr.bf16.mxu0 0
    %2464 = vmatpush1.bf16.xpose.msra.mxu0 0
    %2465 = vmatprep.subr.bf16.mxu0 0
    %2466 = vmatpush1.bf16.xpose.msra.mxu0 0
    %2467 = vmatprep.subr.bf16.mxu0 0
    %2468 = vmatpush1.bf16.xpose.msra.mxu0 0
    %2469 = vmatprep.subr.bf16.mxu0 0
    %2470 = vmatpush1.bf16.xpose.msra.mxu0 0
    %2471 = vmatprep.subr.bf16.mxu0 0
    %2472 = vmatpush1.bf16.xpose.msra.mxu0 0
    %2473 = vmatprep.subr.bf16.mxu0 0
    %2474 = vmatpush1.bf16.xpose.msra.mxu0 0
    %2475 = vmatprep.subr.bf16.mxu0 0
    %2476 = vmatpush1.bf16.xpose.msra.mxu0 0
    %2477 = vmatprep.subr.bf16.mxu0 0
    %2478 = vmatpush1.bf16.xpose.msra.mxu0 0
    %2479 = vmatprep.subr.bf16.mxu0 0
    %2480 = vmatpush1.bf16.xpose.msra.mxu0 0
    %2481 = vmatprep.subr.bf16.mxu0 0
    %2482 = vmatpush1.bf16.xpose.msra.mxu0 0
    %2483 = vmatprep.subr.bf16.mxu0 0
    %2484 = vmatpush1.bf16.xpose.msra.mxu0 0
    %2485 = vmatprep.subr.bf16.mxu0 0
    %2486 = vmatpush1.bf16.xpose.msra.mxu0 0
    %2487 = vmatprep.subr.bf16.mxu0 0
    %2488 = vmatpush1.bf16.xpose.msra.mxu0 0
    %2489 = vmatprep.subr.bf16.mxu0 0
    %2490 = vmatpush1.bf16.xpose.msra.mxu0 0
    %2491 = vmatprep.mubr.bf16.mxu0 0
    %2492 = vmatmul.mubr.bf16.gmra.mrb[0].mxu0 %v2454
    %v2493 = vpop.f32.mrb[0].mxu0
    %v2494 = vadd.f32 0.0, %v2493
    %v2495 = vpop.f32.mrb[0].mxu0
    %v2496 = vpop.f32.mrb[0].mxu0
    %v2497 = vpop.f32.mrb[0].mxu0
    %2498 = vdwg.mxu0
    %2499 = vrot.lane.b32.xlu0 %v1634, 104
    %v2500 = vpop.permute.xlu0 %2499
    %2501 = vrot.lane.b32.xlu0 %v1634, 72
    %v2502 = vpop.permute.xlu0 %2501
    %v2504 = vsel %vm214, %v2500, 0
    %v2507 = vsel %vm214, %v2502, 0
    %2509 = vmatprep.subr.bf16.mxu0 0
    %2510 = vmatpush1.bf16.xpose.msra.mxu0 %v2507
    %2511 = vmatprep.subr.bf16.mxu0 0
    %2512 = vmatpush1.bf16.xpose.msra.mxu0 0
    %2513 = vmatprep.subr.bf16.mxu0 0
    %2514 = vmatpush1.bf16.xpose.msra.mxu0 0
    %2515 = vmatprep.subr.bf16.mxu0 0
    %2516 = vmatpush1.bf16.xpose.msra.mxu0 0
    %2517 = vmatprep.subr.bf16.mxu0 0
    %2518 = vmatpush1.bf16.xpose.msra.mxu0 0
    %2519 = vmatprep.subr.bf16.mxu0 0
    %2520 = vmatpush1.bf16.xpose.msra.mxu0 0
    %2521 = vmatprep.subr.bf16.mxu0 0
    %2522 = vmatpush1.bf16.xpose.msra.mxu0 0
    %2523 = vmatprep.subr.bf16.mxu0 0
    %2524 = vmatpush1.bf16.xpose.msra.mxu0 0
    %2525 = vmatprep.subr.bf16.mxu0 0
    %2526 = vmatpush1.bf16.xpose.msra.mxu0 0
    %2527 = vmatprep.subr.bf16.mxu0 0
    %2528 = vmatpush1.bf16.xpose.msra.mxu0 0
    %2529 = vmatprep.subr.bf16.mxu0 0
    %2530 = vmatpush1.bf16.xpose.msra.mxu0 0
    %2531 = vmatprep.subr.bf16.mxu0 0
    %2532 = vmatpush1.bf16.xpose.msra.mxu0 0
    %2533 = vmatprep.subr.bf16.mxu0 0
    %2534 = vmatpush1.bf16.xpose.msra.mxu0 0
    %2535 = vmatprep.subr.bf16.mxu0 0
    %2536 = vmatpush1.bf16.xpose.msra.mxu0 0
    %2537 = vmatprep.subr.bf16.mxu0 0
    %2538 = vmatpush1.bf16.xpose.msra.mxu0 0
    %2539 = vmatprep.subr.bf16.mxu0 0
    %2540 = vmatpush1.bf16.xpose.msra.mxu0 0
    %2541 = vmatprep.mubr.bf16.mxu0 0
    %2542 = vmatmul.mubr.bf16.gmra.mrb[0].mxu0 %v2504
    %v2543 = vpop.f32.mrb[0].mxu0
    %v2544 = vadd.f32 0.0, %v2543
    %v2545 = vpop.f32.mrb[0].mxu0
    %v2546 = vpop.f32.mrb[0].mxu0
    %v2547 = vpop.f32.mrb[0].mxu0
    %2548 = vdwg.mxu0
    %v2549 = vmul.f32 %v2494, 0.35355338
    %v2550 = vmul.f32 %v2544, 0.35355338
    %v2551 = vsel %vm214, %v2549, -inf
    %2552 = vmax.xlane.f32.xlu0 %v2551
    %v2553 = vpop.xlane.xlu0 %2552
    %v2554 = vsel %vm214, %v2550, -inf
    %2555 = vmax.xlane.f32.xlu0 %v2554
    %v2556 = vpop.xlane.xlu0 %2555
    %v2557 = vsub.f32 %v2549, %v2553
    %v2558 = vsub.f32 %v2550, %v2556
    %v2559 = vmul.f32 %v2557, 1.442695
    %v2560 = vpow.pop %v2559
    %v2561 = vmul.f32 %v2558, 1.442695
    %v2562 = vpow.pop %v2561
    %v2563 = vsel %vm214, %v2560, 0.0
    %2564 = vadd.xlane.f32.xlu0 %v2563
    %v2565 = vpop.xlane.xlu0 %2564
    %v2566 = vsel %vm214, %v2562, 0.0
    %2567 = vadd.xlane.f32.xlu0 %v2566
    %v2568 = vpop.xlane.xlu0 %2567
    %v2569 = vrcp.pop %v2565
    %v2570 = vrcp.pop %v2568
    %v2571 = vmul.f32 %v2560, %v2569
    %v2572 = vmul.f32 %v2562, %v2570
    %v2573 = vpack.c.bf16 %v2571, %v2571
    %v2574 = vpack.c.bf16 %v2572, %v2572
    %2575 = vrot.lane.b32.xlu0 %v1633, 40
    %v2576 = vpop.permute.xlu0 %2575
    %v2578 = vsel %vm214, %v2573, 0
    %v2581 = vsel %vm341, %v2576, 0
    %2583 = vmatprep.subr.bf16.mxu0 0
    %2584 = vmatpush1.bf16.msra.mxu0 %v2581
    %2585 = vmatprep.subr.bf16.mxu0 0
    %2586 = vmatpush1.bf16.msra.mxu0 0
    %2587 = vmatprep.subr.bf16.mxu0 0
    %2588 = vmatpush1.bf16.msra.mxu0 0
    %2589 = vmatprep.subr.bf16.mxu0 0
    %2590 = vmatpush1.bf16.msra.mxu0 0
    %2591 = vmatprep.subr.bf16.mxu0 0
    %2592 = vmatpush1.bf16.msra.mxu0 0
    %2593 = vmatprep.subr.bf16.mxu0 0
    %2594 = vmatpush1.bf16.msra.mxu0 0
    %2595 = vmatprep.subr.bf16.mxu0 0
    %2596 = vmatpush1.bf16.msra.mxu0 0
    %2597 = vmatprep.subr.bf16.mxu0 0
    %2598 = vmatpush1.bf16.msra.mxu0 0
    %2599 = vmatprep.subr.bf16.mxu0 0
    %2600 = vmatpush1.bf16.msra.mxu0 0
    %2601 = vmatprep.subr.bf16.mxu0 0
    %2602 = vmatpush1.bf16.msra.mxu0 0
    %2603 = vmatprep.subr.bf16.mxu0 0
    %2604 = vmatpush1.bf16.msra.mxu0 0
    %2605 = vmatprep.subr.bf16.mxu0 0
    %2606 = vmatpush1.bf16.msra.mxu0 0
    %2607 = vmatprep.subr.bf16.mxu0 0
    %2608 = vmatpush1.bf16.msra.mxu0 0
    %2609 = vmatprep.subr.bf16.mxu0 0
    %2610 = vmatpush1.bf16.msra.mxu0 0
    %2611 = vmatprep.subr.bf16.mxu0 0
    %2612 = vmatpush1.bf16.msra.mxu0 0
    %2613 = vmatprep.subr.bf16.mxu0 0
    %2614 = vmatpush1.bf16.msra.mxu0 0
    %2615 = vmatprep.mubr.bf16.mxu0 0
    %2616 = vmatmul.mubr.bf16.gmra.mrb[0].mxu0 %v2578
    %v2617 = vpop.f32.mrb[0].mxu0
    %v2618 = vadd.f32 0.0, %v2617
    %v2619 = vpop.f32.mrb[0].mxu0
    %v2620 = vpop.f32.mrb[0].mxu0
    %v2621 = vpop.f32.mrb[0].mxu0
    %2622 = vdwg.mxu0
    %2623 = vrot.lane.b32.xlu0 %v1634, 40
    %v2624 = vpop.permute.xlu0 %2623
    %v2626 = vsel %vm214, %v2574, 0
    %v2629 = vsel %vm341, %v2624, 0
    %2631 = vmatprep.subr.bf16.mxu0 0
    %2632 = vmatpush1.bf16.msra.mxu0 %v2629
    %2633 = vmatprep.subr.bf16.mxu0 0
    %2634 = vmatpush1.bf16.msra.mxu0 0
    %2635 = vmatprep.subr.bf16.mxu0 0
    %2636 = vmatpush1.bf16.msra.mxu0 0
    %2637 = vmatprep.subr.bf16.mxu0 0
    %2638 = vmatpush1.bf16.msra.mxu0 0
    %2639 = vmatprep.subr.bf16.mxu0 0
    %2640 = vmatpush1.bf16.msra.mxu0 0
    %2641 = vmatprep.subr.bf16.mxu0 0
    %2642 = vmatpush1.bf16.msra.mxu0 0
    %2643 = vmatprep.subr.bf16.mxu0 0
    %2644 = vmatpush1.bf16.msra.mxu0 0
    %2645 = vmatprep.subr.bf16.mxu0 0
    %2646 = vmatpush1.bf16.msra.mxu0 0
    %2647 = vmatprep.subr.bf16.mxu0 0
    %2648 = vmatpush1.bf16.msra.mxu0 0
    %2649 = vmatprep.subr.bf16.mxu0 0
    %2650 = vmatpush1.bf16.msra.mxu0 0
    %2651 = vmatprep.subr.bf16.mxu0 0
    %2652 = vmatpush1.bf16.msra.mxu0 0
    %2653 = vmatprep.subr.bf16.mxu0 0
    %2654 = vmatpush1.bf16.msra.mxu0 0
    %2655 = vmatprep.subr.bf16.mxu0 0
    %2656 = vmatpush1.bf16.msra.mxu0 0
    %2657 = vmatprep.subr.bf16.mxu0 0
    %2658 = vmatpush1.bf16.msra.mxu0 0
    %2659 = vmatprep.subr.bf16.mxu0 0
    %2660 = vmatpush1.bf16.msra.mxu0 0
    %2661 = vmatprep.subr.bf16.mxu0 0
    %2662 = vmatpush1.bf16.msra.mxu0 0
    %2663 = vmatprep.mubr.bf16.mxu0 0
    %2664 = vmatmul.mubr.bf16.gmra.mrb[0].mxu0 %v2626
    %v2665 = vpop.f32.mrb[0].mxu0
    %v2666 = vadd.f32 0.0, %v2665
    %v2667 = vpop.f32.mrb[0].mxu0
    %v2668 = vpop.f32.mrb[0].mxu0
    %v2669 = vpop.f32.mrb[0].mxu0
    %2670 = vdwg.mxu0
    %v2671 = vpack.c.bf16 %v2666, %v2618
    %v2673 = vsel %vm214, %v2671, 0
    %v2676 = vsel %vm341, %v1544, 0
    %2678 = vmatprep.subr.bf16.mxu0 0
    %2679 = vmatpush1.bf16.msra.mxu0 %v2676
    %2680 = vmatprep.subr.bf16.mxu0 0
    %2681 = vmatpush1.bf16.msra.mxu0 0
    %2682 = vmatprep.subr.bf16.mxu0 0
    %2683 = vmatpush1.bf16.msra.mxu0 0
    %2684 = vmatprep.subr.bf16.mxu0 0
    %2685 = vmatpush1.bf16.msra.mxu0 0
    %2686 = vmatprep.subr.bf16.mxu0 0
    %2687 = vmatpush1.bf16.msra.mxu0 0
    %2688 = vmatprep.subr.bf16.mxu0 0
    %2689 = vmatpush1.bf16.msra.mxu0 0
    %2690 = vmatprep.subr.bf16.mxu0 0
    %2691 = vmatpush1.bf16.msra.mxu0 0
    %2692 = vmatprep.subr.bf16.mxu0 0
    %2693 = vmatpush1.bf16.msra.mxu0 0
    %2694 = vmatprep.subr.bf16.mxu0 0
    %2695 = vmatpush1.bf16.msra.mxu0 0
    %2696 = vmatprep.subr.bf16.mxu0 0
    %2697 = vmatpush1.bf16.msra.mxu0 0
    %2698 = vmatprep.subr.bf16.mxu0 0
    %2699 = vmatpush1.bf16.msra.mxu0 0
    %2700 = vmatprep.subr.bf16.mxu0 0
    %2701 = vmatpush1.bf16.msra.mxu0 0
    %2702 = vmatprep.subr.bf16.mxu0 0
    %2703 = vmatpush1.bf16.msra.mxu0 0
    %2704 = vmatprep.subr.bf16.mxu0 0
    %2705 = vmatpush1.bf16.msra.mxu0 0
    %2706 = vmatprep.subr.bf16.mxu0 0
    %2707 = vmatpush1.bf16.msra.mxu0 0
    %2708 = vmatprep.subr.bf16.mxu0 0
    %2709 = vmatpush1.bf16.msra.mxu0 0
    %2710 = vmatprep.mubr.bf16.mxu0 0
    %2711 = vmatmul.mubr.bf16.gmra.mrb[0].mxu0 %v2673
    %v2712 = vpop.f32.mrb[0].mxu0
    %v2713 = vadd.f32 0.0, %v2712
    %v2714 = vpop.f32.mrb[0].mxu0
    %v2715 = vpop.f32.mrb[0].mxu0
    %v2716 = vadd.f32 0.0, %v2715
    %v2717 = vpop.f32.mrb[0].mxu0
    %2718 = vdwg.mxu0
    %v2719 = vadd.f32 %v2447, %v2713
    %v2720 = vadd.f32 %v2448, %v2716
    %v2721 = vadd.f32 %v1533, %v2719
    %v2722 = vadd.f32 %v1534, %v2720
    %s2723 = scalar_lea.vmem [#allocation7], 1
    %v2724 = vld [vmem:[%s2723] sm:$0x1]
    %s2725 = scalar_lea.vmem [#allocation8], 1
    %v2726 = vld [vmem:[%s2725] sm:$0x1]
    %v2727 = vsel %vm156, %v2721, 0.0
    %2728 = vadd.xlane.f32.xlu0 %v2727
    %v2729 = vpop.xlane.xlu0 %2728
    %v2730 = vsel %vm156, %v2722, 0.0
    %2731 = vadd.xlane.f32.xlu0 %v2730
    %v2732 = vpop.xlane.xlu0 %2731
    %v2733 = vmul.f32 %v2729, %v1309
    %v2734 = vmul.f32 %v2732, %v1309
    %v2735 = vsub.f32 %v2721, %v2733
    %v2736 = vsub.f32 %v2722, %v2734
    %v2737 = vmul.f32 %v2735, %v2735
    %v2738 = vmul.f32 %v2736, %v2736
    %v2739 = vsel %vm156, %v2737, 0.0
    %2740 = vadd.xlane.f32.xlu0 %v2739
    %v2741 = vpop.xlane.xlu0 %2740
    %v2742 = vsel %vm156, %v2738, 0.0
    %2743 = vadd.xlane.f32.xlu0 %v2742
    %v2744 = vpop.xlane.xlu0 %2743
    %v2745 = vmul.f32 %v2741, %v1309
    %v2746 = vmul.f32 %v2744, %v1309
    %v2747 = vadd.f32 %v2745, 1e-05
    %v2748 = vadd.f32 %v2746, 1e-05
    %v2749 = vrsqrt.pop %v2747
    %v2750 = vrsqrt.pop %v2748
    %v2751 = vmul.f32 %v2735, %v2749
    %v2752 = vmul.f32 %v2736, %v2750
    %v2754 = vlaneseq
    %v2755 = vshrl.u32 %v2754, 7
    %v2756 = vsub.s32 0, %v2755
    %v2757 = vrot.slane %v2724, %v2756
    %v2759 = vmul.f32 %v2751, %v2757
    %v2760 = vmul.f32 %v2752, %v2757
    %v2762 = vlaneseq
    %v2763 = vshrl.u32 %v2762, 7
    %v2764 = vsub.s32 0, %v2763
    %v2765 = vrot.slane %v2726, %v2764
    %v2767 = vadd.f32 %v2759, %v2765
    %v2768 = vadd.f32 %v2760, %v2765
    %v2769 = vpack.c.bf16 %v2768, %v2767
    %s2770 = scalar_lea.vmem [#allocation10], 1
    %v2771 = vld [vmem:[%s2770] sm:$0x1]
    %v2773 = vlaneseq
    %v2774 = vshrl.u32 %v2773, 7
    %v2775 = vsub.s32 0, %v2774
    %v2776 = vrot.slane %v2771, %v2775
    %v2782 = vunpack.c.l.b16 %v1546
    %v2783 = vunpack.c.l.b16 %v1547
    %v2784 = vunpack.c.l.b16 %v1548
    %v2785 = vunpack.c.l.b16 %v1549
    %v2786 = vpack.c.b16 %v2783, %v2782
    %v2787 = vpack.c.b16 %v2785, %v2784
    %v2791 = vsel %vm156, %v2769, 0
    %2793 = vmatprep.subr.bf16.mxu0 0
    %2794 = vmatpush1.bf16.msra.mxu0 %v2786
    %2795 = vmatprep.subr.bf16.mxu0 0
    %2796 = vmatpush1.bf16.msra.mxu0 %v2787
    %2797 = vmatprep.subr.bf16.mxu0 0
    %2798 = vmatpush1.bf16.msra.mxu0 0
    %2799 = vmatprep.subr.bf16.mxu0 0
    %2800 = vmatpush1.bf16.msra.mxu0 0
    %2801 = vmatprep.subr.bf16.mxu0 0
    %2802 = vmatpush1.bf16.msra.mxu0 0
    %2803 = vmatprep.subr.bf16.mxu0 0
    %2804 = vmatpush1.bf16.msra.mxu0 0
    %2805 = vmatprep.subr.bf16.mxu0 0
    %2806 = vmatpush1.bf16.msra.mxu0 0
    %2807 = vmatprep.subr.bf16.mxu0 0
    %2808 = vmatpush1.bf16.msra.mxu0 0
    %2809 = vmatprep.subr.bf16.mxu0 0
    %2810 = vmatpush1.bf16.msra.mxu0 0
    %2811 = vmatprep.subr.bf16.mxu0 0
    %2812 = vmatpush1.bf16.msra.mxu0 0
    %2813 = vmatprep.subr.bf16.mxu0 0
    %2814 = vmatpush1.bf16.msra.mxu0 0
    %2815 = vmatprep.subr.bf16.mxu0 0
    %2816 = vmatpush1.bf16.msra.mxu0 0
    %2817 = vmatprep.subr.bf16.mxu0 0
    %2818 = vmatpush1.bf16.msra.mxu0 0
    %2819 = vmatprep.subr.bf16.mxu0 0
    %2820 = vmatpush1.bf16.msra.mxu0 0
    %2821 = vmatprep.subr.bf16.mxu0 0
    %2822 = vmatpush1.bf16.msra.mxu0 0
    %2823 = vmatprep.subr.bf16.mxu0 0
    %2824 = vmatpush1.bf16.msra.mxu0 0
    %2825 = vmatprep.mubr.bf16.mxu0 0
    %2826 = vmatmul.mubr.bf16.gmra.mrb[0].mxu0 %v2791
    %v2827 = vpop.f32.mrb[0].mxu0
    %v2828 = vadd.f32 %v2776, %v2827
    %v2829 = vpop.f32.mrb[0].mxu0
    %v2830 = vpop.f32.mrb[0].mxu0
    %v2831 = vadd.f32 %v2776, %v2830
    %v2832 = vpop.f32.mrb[0].mxu0
    %2833 = vdwg.mxu0
    %v2834 = vmax.f32 %v2828, 0.0
    %v2835 = vmax.f32 %v2831, 0.0
    %v2836 = vpack.c.bf16 %v2835, %v2834
    %s2837 = scalar_lea.vmem %s10, 1
    %v2838 = vld [vmem:[%s2837] sm:$0x1]
    %v2840 = vlaneseq
    %v2841 = vshrl.u32 %v2840, 7
    %v2842 = vsub.s32 0, %v2841
    %v2843 = vrot.slane %v2838, %v2842
    %v2853 = vunpack.c.l.b16 %v1551
    %v2854 = vunpack.c.l.b16 %v1552
    %v2855 = vunpack.c.l.b16 %v1553
    %v2856 = vunpack.c.l.b16 %v1554
    %v2857 = vunpack.c.l.b16 %v1555
    %v2858 = vunpack.c.l.b16 %v1556
    %v2859 = vunpack.c.l.b16 %v1557
    %v2860 = vunpack.c.l.b16 %v1558
    %v2861 = vpack.c.b16 %v2854, %v2853
    %v2862 = vpack.c.b16 %v2856, %v2855
    %v2863 = vpack.c.b16 %v2858, %v2857
    %v2864 = vpack.c.b16 %v2860, %v2859
    %v2870 = vsel %vm1444, %v2836, 0
    %2872 = vmatprep.subr.bf16.mxu0 0
    %2873 = vmatpush1.bf16.msra.mxu0 %v2861
    %2874 = vmatprep.subr.bf16.mxu0 0
    %2875 = vmatpush1.bf16.msra.mxu0 %v2862
    %2876 = vmatprep.subr.bf16.mxu0 0
    %2877 = vmatpush1.bf16.msra.mxu0 %v2863
    %2878 = vmatprep.subr.bf16.mxu0 0
    %2879 = vmatpush1.bf16.msra.mxu0 %v2864
    %2880 = vmatprep.subr.bf16.mxu0 0
    %2881 = vmatpush1.bf16.msra.mxu0 0
    %2882 = vmatprep.subr.bf16.mxu0 0
    %2883 = vmatpush1.bf16.msra.mxu0 0
    %2884 = vmatprep.subr.bf16.mxu0 0
    %2885 = vmatpush1.bf16.msra.mxu0 0
    %2886 = vmatprep.subr.bf16.mxu0 0
    %2887 = vmatpush1.bf16.msra.mxu0 0
    %2888 = vmatprep.subr.bf16.mxu0 0
    %2889 = vmatpush1.bf16.msra.mxu0 0
    %2890 = vmatprep.subr.bf16.mxu0 0
    %2891 = vmatpush1.bf16.msra.mxu0 0
    %2892 = vmatprep.subr.bf16.mxu0 0
    %2893 = vmatpush1.bf16.msra.mxu0 0
    %2894 = vmatprep.subr.bf16.mxu0 0
    %2895 = vmatpush1.bf16.msra.mxu0 0
    %2896 = vmatprep.subr.bf16.mxu0 0
    %2897 = vmatpush1.bf16.msra.mxu0 0
    %2898 = vmatprep.subr.bf16.mxu0 0
    %2899 = vmatpush1.bf16.msra.mxu0 0
    %2900 = vmatprep.subr.bf16.mxu0 0
    %2901 = vmatpush1.bf16.msra.mxu0 0
    %2902 = vmatprep.subr.bf16.mxu0 0
    %2903 = vmatpush1.bf16.msra.mxu0 0
    %2904 = vmatprep.mubr.bf16.mxu0 0
    %2905 = vmatmul.mubr.bf16.gmra.mrb[0].mxu0 %v2870
    %v2906 = vpop.f32.mrb[0].mxu0
    %v2907 = vadd.f32 %v2843, %v2906
    %v2908 = vpop.f32.mrb[0].mxu0
    %v2909 = vpop.f32.mrb[0].mxu0
    %v2910 = vadd.f32 %v2843, %v2909
    %v2911 = vpop.f32.mrb[0].mxu0
    %2912 = vdwg.mxu0
    %v2913 = vadd.f32 %v2767, %v2907
    %v2914 = vadd.f32 %v2768, %v2910
    %s2915 = scalar_lea.vmem %s11, 1
    %v2916 = vld [vmem:[%s2915] sm:$0x1]
    %s2917 = scalar_lea.vmem %s12, 1
    %v2918 = vld [vmem:[%s2917] sm:$0x1]
    %v2919 = vsel %vm156, %v2913, 0.0
    %2920 = vadd.xlane.f32.xlu0 %v2919
    %v2921 = vpop.xlane.xlu0 %2920
    %v2922 = vsel %vm156, %v2914, 0.0
    %2923 = vadd.xlane.f32.xlu0 %v2922
    %v2924 = vpop.xlane.xlu0 %2923
    %v2925 = vmul.f32 %v2921, %v1309
    %v2926 = vmul.f32 %v2924, %v1309
    %v2927 = vsub.f32 %v2913, %v2925
    %v2928 = vsub.f32 %v2914, %v2926
    %v2929 = vmul.f32 %v2927, %v2927
    %v2930 = vmul.f32 %v2928, %v2928
    %v2931 = vsel %vm156, %v2929, 0.0
    %2932 = vadd.xlane.f32.xlu0 %v2931
    %v2933 = vpop.xlane.xlu0 %2932
    %v2934 = vsel %vm156, %v2930, 0.0
    %2935 = vadd.xlane.f32.xlu0 %v2934
    %v2936 = vpop.xlane.xlu0 %2935
    %v2937 = vmul.f32 %v2933, %v1309
    %v2938 = vmul.f32 %v2936, %v1309
    %v2939 = vadd.f32 %v2937, 1e-05
    %v2940 = vadd.f32 %v2938, 1e-05
    %v2941 = vrsqrt.pop %v2939
    %v2942 = vrsqrt.pop %v2940
    %v2943 = vmul.f32 %v2927, %v2941
    %v2944 = vmul.f32 %v2928, %v2942
    %v2946 = vlaneseq
    %v2947 = vshrl.u32 %v2946, 7
    %v2948 = vsub.s32 0, %v2947
    %v2949 = vrot.slane %v2916, %v2948
    %v2951 = vmul.f32 %v2943, %v2949
    %v2952 = vmul.f32 %v2944, %v2949
    %v2954 = vlaneseq
    %v2955 = vshrl.u32 %v2954, 7
    %v2956 = vsub.s32 0, %v2955
    %v2957 = vrot.slane %v2918, %v2956
    %v2959 = vadd.f32 %v2951, %v2957
    %v2960 = vadd.f32 %v2952, %v2957
    %2961 = vst.msk [vmem:[#allocation11] sm:$0xff] %vm156, %v2959
    %2962 = vst.msk [vmem:[#allocation11 + $0x8] sm:$0xff] %vm156, %v2960
    // Predicated region
    $region74: #{tpu_custom_call.1} parent=1 // pred_check
      _
    $region75: #{tpu_custom_call.1} parent=1 // pred_check_branch
      %2964 = sbr.rel (0) target = $region77
    $region76: #{tpu_custom_call.1} parent=1 // pred_region
      %s2966 = ssub.s32 256, 256
      %2967 = vsyncadd [#allocation4], %s2966
      %s2968 = sshll.u32 [#allocation11], 4
      %s2969 = int_to_ptr.vmem [resolvable:$true] %s2968
      %2974 = dma.vmem_to_hbm [thread:$0]  %s2969, 256, %s13, [#allocation4], 128, 128, 8
    $region77: #{tpu_custom_call.1} parent=1 // pred_fallthru
      _
    // Predicated region
    $region78: #{tpu_custom_call.1} parent=1 // pred_check
      _
    $region79: #{tpu_custom_call.1} parent=1 // pred_check_branch
      %2976 = sbr.rel (0) target = $region81
    $region80: #{tpu_custom_call.1} parent=1 // pred_region
      %2977 = dma.done [#allocation4], 256
    $region81: #{tpu_custom_call.1} parent=1 // pred_fallthru
      _
    %2978 = vsyncpa [#allocation3], 1
    %2979 = vsyncpa [#allocation6], 1
    %2980 = vsyncpa [#allocation9], 1
    %2981 = vsyncpa [#allocation4], 1

</llo_original>
